<compile_context>
chip_gen: v5e
topology: v5e:2x2
jax: 0.10.0
libtpu: 0.0.40
codegen_flags: <defaults>
</compile_context>

<pallas_src>
import functools
import math

import jax
import jax.numpy as jnp
from jax.experimental import pallas as pl
from jax.experimental.pallas import tpu as pltpu

NEG_INF = -1e9


# ----------------------------------------------------------------------------
# In-kernel helpers (traced inside the Pallas kernel body)
# ----------------------------------------------------------------------------
def _layer_norm(y, gamma, beta, eps):
    mu = jnp.mean(y, axis=-1, keepdims=True)
    var = jnp.mean((y - mu) * (y - mu), axis=-1, keepdims=True)
    return (y - mu) * jax.lax.rsqrt(var + eps) * gamma + beta


def _softmax_rows(s):
    s = s - jnp.max(s, axis=-1, keepdims=True)
    p = jnp.exp(s)
    return p * pl.reciprocal(jnp.sum(p, axis=-1, keepdims=True), approx=True)


def _batched_mha(q_all, k_all, v_all, mask, wo, bt, s_q, s_k, n_head, dh):
    """Multi-head attention over a batch-block.

    q_all: (bt*s_q, D) f32, already scaled by 1/sqrt(dh) via the weight fold;
    k_all/v_all: (bt*s_k, D) f32; mask: (bt, s_q, s_k) f32 (>0 = attend);
    wo: (D, D) bf16 output projection (bias added by caller).
    Returns (bt*s_q, D) f32.
    # TODO(synk): for long sequences use flash-style KV tiling (online softmax)
    #             so VMEM stays O(Sq_tile*Sk_tile) instead of O(S^2).
    # TODO(synk): for large n_head, switch the static head loop to
    #             lax.fori_loop to bound live ranges / vreg pressure.
    """
    d = q_all.shape[-1]
    outs = []
    for b in range(bt):                                   # static batch loop
        qb = q_all[b * s_q:(b + 1) * s_q].astype(jnp.bfloat16)
        kb = k_all[b * s_k:(b + 1) * s_k].astype(jnp.bfloat16)
        vb = v_all[b * s_k:(b + 1) * s_k].astype(jnp.bfloat16)
        bias = jnp.where(mask[b] > 0, jnp.float32(0.0), jnp.float32(NEG_INF))
        if dh % 128 == 0:
            # dh lane-dense: per-head contexts, one fused (Sq,D)@(D,D) Wo GEMM.
            ctxs = []
            for h in range(n_head):
                lo = h * dh
                s = jax.lax.dot_general(
                    qb[:, lo:lo + dh], kb[:, lo:lo + dh],
                    (((1,), (1,)), ((), ())),
                    preferred_element_type=jnp.float32) + bias
                p = _softmax_rows(s)
                ctxs.append(jnp.dot(p.astype(jnp.bfloat16), vb[:, lo:lo + dh],
                                    preferred_element_type=jnp.float32))
            ctx = jnp.concatenate(ctxs, axis=-1)
            out = jnp.dot(ctx.astype(jnp.bfloat16), wo,
                          preferred_element_type=jnp.float32)
        else:
            # dh < 128: fold each head's context into Wo to keep every matmul
            # output D-lane dense (no sub-128-lane concat).
            out = jnp.zeros((s_q, d), jnp.float32)
            for h in range(n_head):
                lo = h * dh
                s = jax.lax.dot_general(
                    qb[:, lo:lo + dh], kb[:, lo:lo + dh],
                    (((1,), (1,)), ((), ())),
                    preferred_element_type=jnp.float32) + bias
                p = _softmax_rows(s)
                ctx = jnp.dot(p.astype(jnp.bfloat16), vb[:, lo:lo + dh],
                              preferred_element_type=jnp.float32)
                out = out + jnp.dot(ctx.astype(jnp.bfloat16), wo[lo:lo + dh, :],
                                    preferred_element_type=jnp.float32)
        outs.append(out)
    return jnp.concatenate(outs, axis=0) if bt > 1 else outs[0]


# ----------------------------------------------------------------------------
# Fused decoder-stack kernel: grid = (batch_blocks, n_layer)
#   * activation carried in VMEM scratch across the (inner, "arbitrary")
#     layer axis; initialized from `target` at l == 0.
#   * final LayerNorm + HBM writeback fused under pl.when(l == L-1).
# ----------------------------------------------------------------------------
def _decoder_stack_kernel(
        x_ref, enc_ref, tmask_ref, smask_ref,
        wqkv_ref, bqkv_ref, sa_wo_ref, sa_bo_ref,
        ca_wq_ref, ca_bq_ref, ca_wkv_ref, ca_bkv_ref, ca_wo_ref, ca_bo_ref,
        ff_w1_ref, ff_b1_ref, ff_w2_ref, ff_b2_ref,
        ln1_g_ref, ln1_b_ref, ln2_g_ref, ln2_b_ref, ln3_g_ref, ln3_b_ref,
        fn_g_ref, fn_b_ref,
        out_ref, act_ref, *, n_head, eps):
    l = pl.program_id(1)
    n_layer = pl.num_programs(1)
    bt, s_q, d = x_ref.shape
    s_kv = enc_ref.shape[1]
    dh = d // n_head

    @pl.when(l == 0)
    def _():
        act_ref[...] = x_ref[...].reshape(bt * s_q, d)

    x = act_ref[...]                                    # (bt*S, D) f32
    enc = enc_ref[...].reshape(bt * s_kv, d)            # (bt*Skv, D) f32
    tmask = tmask_ref[...]                              # (bt, S, S)
    smask = smask_ref[...]                              # (bt, S, Skv)

    # ---- masked self-attention + residual + LayerNorm ----------------------
    # 1/sqrt(dh) is already folded into the q columns of wqkv/bqkv.
    qkv = jnp.dot(x.astype(jnp.bfloat16), wqkv_ref[0],
                  preferred_element_type=jnp.float32) + bqkv_ref[0]
    sa = _batched_mha(qkv[:, 0:d], qkv[:, d:2 * d], qkv[:, 2 * d:3 * d],
                      tmask, sa_wo_ref[0], bt, s_q, s_q, n_head, dh)
    sa = sa + sa_bo_ref[0]
    x = _layer_norm(x + sa, ln1_g_ref[0], ln1_b_ref[0], eps)

    # ---- cross-attention + residual + LayerNorm -----------------------------
    q = jnp.dot(x.astype(jnp.bfloat16), ca_wq_ref[0],
                preferred_element_type=jnp.float32) + ca_bq_ref[0]
    kv = jnp.dot(enc.astype(jnp.bfloat16), ca_wkv_ref[0],
                 preferred_element_type=jnp.float32) + ca_bkv_ref[0]
    ca = _batched_mha(q, kv[:, 0:d], kv[:, d:2 * d],
                      smask, ca_wo_ref[0], bt, s_q, s_kv, n_head, dh)
    ca = ca + ca_bo_ref[0]
    x = _layer_norm(x + ca, ln2_g_ref[0], ln2_b_ref[0], eps)

    # ---- position-wise FFN + residual + LayerNorm ---------------------------
    # TODO(synk): for large D/F (real model sizes) tile w1/w2 over F (inner
    #             pipeline / extra grid axis) to bound per-step weight VMEM.
    h = jnp.dot(x.astype(jnp.bfloat16), ff_w1_ref[0],
                preferred_element_type=jnp.float32) + ff_b1_ref[0]
    h = jnp.maximum(h, 0.0)                                           # ReLU
    ff = jnp.dot(h.astype(jnp.bfloat16), ff_w2_ref[0],
                 preferred_element_type=jnp.float32) + ff_b2_ref[0]
    x = _layer_norm(x + ff, ln3_g_ref[0], ln3_b_ref[0], eps)

    act_ref[...] = x                                     # carry to layer l+1

    @pl.when(l == n_layer - 1)
    def _():
        y = _layer_norm(x, fn_g_ref[...], fn_b_ref[...], eps)   # final norm
        out_ref[...] = y.reshape(bt, s_q, d).astype(out_ref.dtype)


# ----------------------------------------------------------------------------
# Wrapper: one pallas_call for the whole decoder stack
# ----------------------------------------------------------------------------
def _pick_batch_block(batch, seq, target_rows=128):
    """Largest divisor of `batch` giving <= ~target_rows rows per GEMM."""
    bt = max(1, min(batch, target_rows // max(seq, 1)))
    while batch % bt:
        bt -= 1
    return bt


def decoder_forward(params, target, encoder_out, target_mask, src_target_mask,
                    n_head, eps=1e-5, target_rows=128):
    B, S, D = target.shape
    Skv = encoder_out.shape[1]
    L = params["wqkv"].shape[0]
    F = params["ff_w1"].shape[-1]
    bt = _pick_batch_block(B, S, target_rows)
    nb = B // bt

    act_map = lambda b, l: (b, 0, 0)     # batch-resident, layer-invariant
    lay_map = lambda b, l: (l, 0, 0)     # streamed over layer axis
    fix_map = lambda b, l: (0, 0)        # fully resident

    def act_spec(rows, cols):
        return pl.BlockSpec((bt, rows, cols), act_map)

    def lay_spec(d0, d1):
        return pl.BlockSpec((1, d0, d1), lay_map)

    in_specs = [
        act_spec(S, D),                      # target
        act_spec(Skv, D),                    # encoder_out
        act_spec(S, S),                      # target mask
        act_spec(S, Skv),                    # src-target mask
        lay_spec(D, 3 * D), lay_spec(1, 3 * D),   # self-attn packed qkv
        lay_spec(D, D), lay_spec(1, D),           # self-attn out proj
        lay_spec(D, D), lay_spec(1, D),           # cross-attn q
        lay_spec(D, 2 * D), lay_spec(1, 2 * D),   # cross-attn packed kv
        lay_spec(D, D), lay_spec(1, D),           # cross-attn out proj
        lay_spec(D, F), lay_spec(1, F),           # ffn w1/b1
        lay_spec(F, D), lay_spec(1, D),           # ffn w2/b2
        lay_spec(1, D), lay_spec(1, D),           # ln1 gamma/beta
        lay_spec(1, D), lay_spec(1, D),           # ln2 gamma/beta
        lay_spec(1, D), lay_spec(1, D),           # ln3 gamma/beta
        pl.BlockSpec((1, D), fix_map),            # final norm gamma
        pl.BlockSpec((1, D), fix_map),            # final norm beta
    ]

    return pl.pallas_call(
        functools.partial(_decoder_stack_kernel, n_head=n_head, eps=eps),
        out_shape=jax.ShapeDtypeStruct((B, S, D), jnp.float32),
        grid=(nb, L),
        in_specs=in_specs,
        out_specs=act_spec(S, D),
        scratch_shapes=[pltpu.VMEM((bt * S, D), jnp.float32)],   # layer carry
        compiler_params=pltpu.CompilerParams(
            dimension_semantics=("parallel", "arbitrary")),
    )(target, encoder_out, target_mask, src_target_mask,
      params["wqkv"], params["bqkv"], params["sa_wo"], params["sa_bo"],
      params["ca_wq"], params["ca_bq"], params["ca_wkv"], params["ca_bkv"],
      params["ca_wo"], params["ca_bo"],
      params["ff_w1"], params["ff_b1"], params["ff_w2"], params["ff_b2"],
      params["ln1_g"], params["ln1_b"], params["ln2_g"], params["ln2_b"],
      params["ln3_g"], params["ln3_b"],
      params["fn_g"], params["fn_b"])


# ----------------------------------------------------------------------------
# Deterministic parameter init (synthetic). Weights stored in bf16 for the
# MXU; biases / LayerNorm params in f32. 1/sqrt(dh) is folded into the q
# projection weights (and biases) once, host-side.
# ----------------------------------------------------------------------------
def init_params(key, n_layer, d_model, d_ff, n_head):
    dh = d_model // n_head
    q_scale = 1.0 / math.sqrt(dh)
    s_d = 1.0 / math.sqrt(d_model)
    s_f = 1.0 / math.sqrt(d_ff)
    k = jax.random.split(key, 6)

    def w(kk, shape, scale):
        return jax.random.normal(kk, shape, jnp.float32) * scale

    wqkv = w(k[0], (n_layer, d_model, 3 * d_model), s_d)
    wqkv = wqkv.at[:, :, :d_model].multiply(q_scale)        # fold 1/sqrt(dh)
    ca_wq = w(k[1], (n_layer, d_model, d_model), s_d) * q_scale

    params = {
        "wqkv": wqkv.astype(jnp.bfloat16),
        "bqkv": jnp.zeros((n_layer, 1, 3 * d_model), jnp.float32),  # q part
        # of the bias would also carry the 1/sqrt(dh) fold (zero here).
        "sa_wo": w(k[2], (n_layer, d_model, d_model), s_d).astype(jnp.bfloat16),
        "sa_bo": jnp.zeros((n_layer, 1, d_model), jnp.float32),
        "ca_wq": ca_wq.astype(jnp.bfloat16),
        "ca_bq": jnp.zeros((n_layer, 1, d_model), jnp.float32),
        "ca_wkv": w(k[3], (n_layer, d_model, 2 * d_model),
                    s_d).astype(jnp.bfloat16),
        "ca_bkv": jnp.zeros((n_layer, 1, 2 * d_model), jnp.float32),
        "ca_wo": w(k[2], (n_layer, d_model, d_model), s_d).astype(jnp.bfloat16),
        "ca_bo": jnp.zeros((n_layer, 1, d_model), jnp.float32),
        "ff_w1": w(k[4], (n_layer, d_model, d_ff), s_d).astype(jnp.bfloat16),
        "ff_b1": jnp.zeros((n_layer, 1, d_ff), jnp.float32),
        "ff_w2": w(k[5], (n_layer, d_ff, d_model), s_f).astype(jnp.bfloat16),
        "ff_b2": jnp.zeros((n_layer, 1, d_model), jnp.float32),
        "fn_g": jnp.ones((1, d_model), jnp.float32),
        "fn_b": jnp.zeros((1, d_model), jnp.float32),
    }
    for name in ("ln1", "ln2", "ln3"):
        params[name + "_g"] = jnp.ones((n_layer, 1, d_model), jnp.float32)
        params[name + "_b"] = jnp.zeros((n_layer, 1, d_model), jnp.float32)
    return params


if __name__ == "__main__":
    B, S_TGT, S_SRC = 2, 8, 8
    D_MODEL, N_HEAD, D_FF, N_LAYER = 128, 4, 256, 2   # lane-dense D (=128)

    key = jax.random.PRNGKey(0)
    k_tgt, k_enc, k_par = jax.random.split(key, 3)

    target = jax.random.normal(k_tgt, (B, S_TGT, D_MODEL), jnp.float32)
    encoder_out = jax.random.normal(k_enc, (B, S_SRC, D_MODEL), jnp.float32)
    # causal target mask (1.0 = attend), full source-target mask
    target_mask = jnp.broadcast_to(
        jnp.tril(jnp.ones((S_TGT, S_TGT), jnp.float32)), (B, S_TGT, S_TGT))
    src_target_mask = jnp.ones((B, S_TGT, S_SRC), jnp.float32)

    params = init_params(k_par, N_LAYER, D_MODEL, D_FF, N_HEAD)

    fwd = jax.jit(functools.partial(decoder_forward, n_head=N_HEAD))
    out = fwd(params, target, encoder_out, target_mask, src_target_mask)
    out = jax.block_until_ready(out)

    assert out.shape == (B, S_TGT, D_MODEL)
    assert bool(jnp.all(jnp.isfinite(out)))
    print("KERNEL_OK")
</pallas_src>

<mosaic_0001>
module attributes {stable_mosaic.version = 11 : i64} {
  func.func @_decoder_stack_kernel(%arg0: i32, %arg1: i32, %arg2: memref<2x8x128xf32, #tpu.memory_space<vmem>>, %arg3: memref<2x8x128xf32, #tpu.memory_space<vmem>>, %arg4: memref<2x8x8xf32, #tpu.memory_space<vmem>>, %arg5: memref<2x8x8xf32, #tpu.memory_space<vmem>>, %arg6: memref<1x128x384xbf16, #tpu.memory_space<vmem>>, %arg7: memref<1x1x384xf32, #tpu.memory_space<vmem>>, %arg8: memref<1x128x128xbf16, #tpu.memory_space<vmem>>, %arg9: memref<1x1x128xf32, #tpu.memory_space<vmem>>, %arg10: memref<1x128x128xbf16, #tpu.memory_space<vmem>>, %arg11: memref<1x1x128xf32, #tpu.memory_space<vmem>>, %arg12: memref<1x128x256xbf16, #tpu.memory_space<vmem>>, %arg13: memref<1x1x256xf32, #tpu.memory_space<vmem>>, %arg14: memref<1x128x128xbf16, #tpu.memory_space<vmem>>, %arg15: memref<1x1x128xf32, #tpu.memory_space<vmem>>, %arg16: memref<1x128x256xbf16, #tpu.memory_space<vmem>>, %arg17: memref<1x1x256xf32, #tpu.memory_space<vmem>>, %arg18: memref<1x256x128xbf16, #tpu.memory_space<vmem>>, %arg19: memref<1x1x128xf32, #tpu.memory_space<vmem>>, %arg20: memref<1x1x128xf32, #tpu.memory_space<vmem>>, %arg21: memref<1x1x128xf32, #tpu.memory_space<vmem>>, %arg22: memref<1x1x128xf32, #tpu.memory_space<vmem>>, %arg23: memref<1x1x128xf32, #tpu.memory_space<vmem>>, %arg24: memref<1x1x128xf32, #tpu.memory_space<vmem>>, %arg25: memref<1x1x128xf32, #tpu.memory_space<vmem>>, %arg26: memref<1x128xf32, #tpu.memory_space<vmem>>, %arg27: memref<1x128xf32, #tpu.memory_space<vmem>>, %arg28: memref<2x8x128xf32, #tpu.memory_space<vmem>>, %arg29: memref<16x128xf32, #tpu.memory_space<vmem>>) attributes {dimension_semantics = [#tpu.dimension_semantics<parallel>, #tpu.dimension_semantics<arbitrary>], iteration_bounds = array<i64: 1, 2>, scalar_prefetch = 0 : i64, scratch_operands = 1 : i64, tpu.core_type = #tpu.core_type<tc>, window_params = [{transform_indices = @transform_0, window_bounds = array<i64: 2, 8, 128>}, {transform_indices = @transform_1, window_bounds = array<i64: 2, 8, 128>}, {transform_indices = @transform_2, window_bounds = array<i64: 2, 8, 8>}, {transform_indices = @transform_3, window_bounds = array<i64: 2, 8, 8>}, {transform_indices = @transform_4, window_bounds = array<i64: 1, 128, 384>}, {transform_indices = @transform_5, window_bounds = array<i64: 1, 1, 384>}, {transform_indices = @transform_6, window_bounds = array<i64: 1, 128, 128>}, {transform_indices = @transform_7, window_bounds = array<i64: 1, 1, 128>}, {transform_indices = @transform_8, window_bounds = array<i64: 1, 128, 128>}, {transform_indices = @transform_9, window_bounds = array<i64: 1, 1, 128>}, {transform_indices = @transform_10, window_bounds = array<i64: 1, 128, 256>}, {transform_indices = @transform_11, window_bounds = array<i64: 1, 1, 256>}, {transform_indices = @transform_12, window_bounds = array<i64: 1, 128, 128>}, {transform_indices = @transform_13, window_bounds = array<i64: 1, 1, 128>}, {transform_indices = @transform_14, window_bounds = array<i64: 1, 128, 256>}, {transform_indices = @transform_15, window_bounds = array<i64: 1, 1, 256>}, {transform_indices = @transform_16, window_bounds = array<i64: 1, 256, 128>}, {transform_indices = @transform_17, window_bounds = array<i64: 1, 1, 128>}, {transform_indices = @transform_18, window_bounds = array<i64: 1, 1, 128>}, {transform_indices = @transform_19, window_bounds = array<i64: 1, 1, 128>}, {transform_indices = @transform_20, window_bounds = array<i64: 1, 1, 128>}, {transform_indices = @transform_21, window_bounds = array<i64: 1, 1, 128>}, {transform_indices = @transform_22, window_bounds = array<i64: 1, 1, 128>}, {transform_indices = @transform_23, window_bounds = array<i64: 1, 1, 128>}, {pipeline_mode = #tpu.pipeline_mode<synchronous>, transform_indices = @transform_24, window_bounds = array<i64: 1, 128>}, {pipeline_mode = #tpu.pipeline_mode<synchronous>, transform_indices = @transform_25, window_bounds = array<i64: 1, 128>}, {transform_indices = @transform_26, window_bounds = array<i64: 2, 8, 128>}]} {
    %c0_i32 = arith.constant 0 : i32
    %0 = arith.cmpi eq, %arg1, %c0_i32 : i32
    %1 = arith.extui %0 : i1 to i32
    %c0_i32_0 = arith.constant 0 : i32
    %2 = arith.cmpi ne, %1, %c0_i32_0 : i32
    scf.if %2 {
      %c0_190 = arith.constant 0 : index
      %c0_191 = arith.constant 0 : index
      %c0_192 = arith.constant 0 : index
      %552 = vector.load %arg2[%c0_190, %c0_191, %c0_192] : memref<2x8x128xf32, #tpu.memory_space<vmem>>, vector<2x8x128xf32>
      %553 = vector.shape_cast %552 : vector<2x8x128xf32> to vector<16x128xf32>
      %c0_193 = arith.constant 0 : index
      %c0_194 = arith.constant 0 : index
      %554 = vector.load %arg29[%c0_193, %c0_194] : memref<16x128xf32, #tpu.memory_space<vmem>>, vector<16x128xf32>
      tpu.vector_store %arg29[%c0_193, %c0_194], %553 {strides = array<i32>} : memref<16x128xf32, #tpu.memory_space<vmem>>, vector<16x128xf32>,
    } else {
    }
    %c0 = arith.constant 0 : index
    %c0_1 = arith.constant 0 : index
    %3 = vector.load %arg29[%c0, %c0_1] : memref<16x128xf32, #tpu.memory_space<vmem>>, vector<16x128xf32>
    %c0_2 = arith.constant 0 : index
    %c0_3 = arith.constant 0 : index
    %c0_4 = arith.constant 0 : index
    %4 = vector.load %arg3[%c0_2, %c0_3, %c0_4] : memref<2x8x128xf32, #tpu.memory_space<vmem>>, vector<2x8x128xf32>
    %5 = vector.shape_cast %4 : vector<2x8x128xf32> to vector<16x128xf32>
    %c0_5 = arith.constant 0 : index
    %c0_6 = arith.constant 0 : index
    %c0_7 = arith.constant 0 : index
    %6 = vector.load %arg4[%c0_5, %c0_6, %c0_7] : memref<2x8x8xf32, #tpu.memory_space<vmem>>, vector<2x8x8xf32>
    %c0_8 = arith.constant 0 : index
    %c0_9 = arith.constant 0 : index
    %c0_10 = arith.constant 0 : index
    %7 = vector.load %arg5[%c0_8, %c0_9, %c0_10] : memref<2x8x8xf32, #tpu.memory_space<vmem>>, vector<2x8x8xf32>
    %8 = arith.truncf %3 : vector<16x128xf32> to vector<16x128xbf16>
    %c0_11 = arith.constant 0 : index
    %c0_12 = arith.constant 0 : index
    %c0_13 = arith.constant 0 : index
    %9 = vector.load %arg6[%c0_11, %c0_12, %c0_13] : memref<1x128x384xbf16, #tpu.memory_space<vmem>>, vector<1x128x384xbf16>
    %10 = vector.shape_cast %9 : vector<1x128x384xbf16> to vector<128x384xbf16>
    %cst = arith.constant dense<0.000000e+00> : vector<16x384xf32>
    %11 = tpu.matmul %8, %10, %cst {dimension_numbers = #tpu.dot_dimension_numbers<[1], [0], [0], [1], [0, 0, 1, 1], [], []>} : vector<16x128xbf16>, vector<128x384xbf16>, vector<16x384xf32> -> vector<16x384xf32>
    %c0_14 = arith.constant 0 : index
    %c0_15 = arith.constant 0 : index
    %c0_16 = arith.constant 0 : index
    %12 = vector.load %arg7[%c0_14, %c0_15, %c0_16] : memref<1x1x384xf32, #tpu.memory_space<vmem>>, vector<1x1x384xf32>
    %13 = vector.shape_cast %12 : vector<1x1x384xf32> to vector<1x384xf32>
    %14 = vector.broadcast %13 : vector<1x384xf32> to vector<16x384xf32>
    %15 = arith.addf %11, %14 : vector<16x384xf32>
    %16 = vector.extract_strided_slice %15 {offsets = [0, 0], sizes = [16, 128], strides = [1, 1]} : vector<16x384xf32> to vector<16x128xf32>
    %17 = vector.extract_strided_slice %15 {offsets = [0, 128], sizes = [16, 128], strides = [1, 1]} : vector<16x384xf32> to vector<16x128xf32>
    %18 = vector.extract_strided_slice %15 {offsets = [0, 256], sizes = [16, 128], strides = [1, 1]} : vector<16x384xf32> to vector<16x128xf32>
    %c0_17 = arith.constant 0 : index
    %c0_18 = arith.constant 0 : index
    %c0_19 = arith.constant 0 : index
    %19 = vector.load %arg8[%c0_17, %c0_18, %c0_19] : memref<1x128x128xbf16, #tpu.memory_space<vmem>>, vector<1x128x128xbf16>
    %20 = vector.shape_cast %19 : vector<1x128x128xbf16> to vector<128x128xbf16>
    %21 = vector.extract_strided_slice %16 {offsets = [0, 0], sizes = [8, 128], strides = [1, 1]} : vector<16x128xf32> to vector<8x128xf32>
    %22 = arith.truncf %21 : vector<8x128xf32> to vector<8x128xbf16>
    %23 = vector.extract_strided_slice %17 {offsets = [0, 0], sizes = [8, 128], strides = [1, 1]} : vector<16x128xf32> to vector<8x128xf32>
    %24 = arith.truncf %23 : vector<8x128xf32> to vector<8x128xbf16>
    %25 = vector.extract_strided_slice %18 {offsets = [0, 0], sizes = [8, 128], strides = [1, 1]} : vector<16x128xf32> to vector<8x128xf32>
    %26 = arith.truncf %25 : vector<8x128xf32> to vector<8x128xbf16>
    %27 = vector.extract_strided_slice %6 {offsets = [0, 0, 0], sizes = [1, 8, 8], strides = [1, 1, 1]} : vector<2x8x8xf32> to vector<1x8x8xf32>
    %28 = vector.shape_cast %27 : vector<1x8x8xf32> to vector<8x8xf32>
    %cst_20 = arith.constant 0.000000e+00 : f32
    %29 = vector.broadcast %cst_20 : f32 to vector<8x8xf32>
    %30 = arith.cmpf ogt, %28, %29 : vector<8x8xf32>
    %cst_21 = arith.constant 0.000000e+00 : f32
    %cst_22 = arith.constant -1.000000e+09 : f32
    %31 = vector.broadcast %cst_21 : f32 to vector<8x8xf32>
    %32 = vector.broadcast %cst_22 : f32 to vector<8x8xf32>
    %33 = arith.select %30, %31, %32 : vector<8x8xi1>, vector<8x8xf32>
    %cst_23 = arith.constant 0.000000e+00 : f32
    %34 = vector.broadcast %cst_23 : f32 to vector<8x128xf32>
    %35 = vector.extract_strided_slice %22 {offsets = [0, 0], sizes = [8, 32], strides = [1, 1]} : vector<8x128xbf16> to vector<8x32xbf16>
    %36 = vector.extract_strided_slice %24 {offsets = [0, 0], sizes = [8, 32], strides = [1, 1]} : vector<8x128xbf16> to vector<8x32xbf16>
    %cst_24 = arith.constant dense<0.000000e+00> : vector<8x8xf32>
    %37 = tpu.matmul %35, %36, %cst_24 {dimension_numbers = #tpu.dot_dimension_numbers<[1], [1], [0], [0], [0, 0, 1, 0], [], []>} : vector<8x32xbf16>, vector<8x32xbf16>, vector<8x8xf32> -> vector<8x8xf32>
    %38 = arith.addf %37, %33 : vector<8x8xf32>
    %cst_25 = arith.constant dense<0xFF800000> : vector<8xf32>
    %39 = vector.multi_reduction <maximumf>, %38, %cst_25 [1] : vector<8x8xf32> to vector<8xf32>
    %40 = vector.shape_cast %39 : vector<8xf32> to vector<8x1xf32>
    %41 = vector.broadcast %40 : vector<8x1xf32> to vector<8x8xf32>
    %42 = arith.subf %38, %41 : vector<8x8xf32>
    %43 = math.exp %42 : vector<8x8xf32>
    %cst_26 = arith.constant dense<0.000000e+00> : vector<8xf32>
    %44 = vector.multi_reduction <add>, %43, %cst_26 [1] : vector<8x8xf32> to vector<8xf32>
    %45 = vector.shape_cast %44 : vector<8xf32> to vector<8x1xf32>
    %46 = tpu.reciprocal %45 {approx = true} : vector<8x1xf32> -> vector<8x1xf32>
    %47 = vector.broadcast %46 : vector<8x1xf32> to vector<8x8xf32>
    %48 = arith.mulf %43, %47 : vector<8x8xf32>
    %49 = arith.truncf %48 : vector<8x8xf32> to vector<8x8xbf16>
    %50 = vector.extract_strided_slice %26 {offsets = [0, 0], sizes = [8, 32], strides = [1, 1]} : vector<8x128xbf16> to vector<8x32xbf16>
    %cst_27 = arith.constant dense<0.000000e+00> : vector<8x32xf32>
    %51 = tpu.matmul %49, %50, %cst_27 {dimension_numbers = #tpu.dot_dimension_numbers<[1], [0], [0], [1], [0, 0, 1, 1], [], []>} : vector<8x8xbf16>, vector<8x32xbf16>, vector<8x32xf32> -> vector<8x32xf32>
    %52 = arith.truncf %51 : vector<8x32xf32> to vector<8x32xbf16>
    %53 = vector.extract_strided_slice %20 {offsets = [0, 0], sizes = [32, 128], strides = [1, 1]} : vector<128x128xbf16> to vector<32x128xbf16>
    %cst_28 = arith.constant dense<0.000000e+00> : vector<8x128xf32>
    %54 = tpu.matmul %52, %53, %cst_28 {dimension_numbers = #tpu.dot_dimension_numbers<[1], [0], [0], [1], [0, 0, 1, 1], [], []>} : vector<8x32xbf16>, vector<32x128xbf16>, vector<8x128xf32> -> vector<8x128xf32>
    %55 = arith.addf %34, %54 : vector<8x128xf32>
    %56 = vector.extract_strided_slice %22 {offsets = [0, 32], sizes = [8, 32], strides = [1, 1]} : vector<8x128xbf16> to vector<8x32xbf16>
    %57 = vector.extract_strided_slice %24 {offsets = [0, 32], sizes = [8, 32], strides = [1, 1]} : vector<8x128xbf16> to vector<8x32xbf16>
    %cst_29 = arith.constant dense<0.000000e+00> : vector<8x8xf32>
    %58 = tpu.matmul %56, %57, %cst_29 {dimension_numbers = #tpu.dot_dimension_numbers<[1], [1], [0], [0], [0, 0, 1, 0], [], []>} : vector<8x32xbf16>, vector<8x32xbf16>, vector<8x8xf32> -> vector<8x8xf32>
    %59 = arith.addf %58, %33 : vector<8x8xf32>
    %cst_30 = arith.constant dense<0xFF800000> : vector<8xf32>
    %60 = vector.multi_reduction <maximumf>, %59, %cst_30 [1] : vector<8x8xf32> to vector<8xf32>
    %61 = vector.shape_cast %60 : vector<8xf32> to vector<8x1xf32>
    %62 = vector.broadcast %61 : vector<8x1xf32> to vector<8x8xf32>
    %63 = arith.subf %59, %62 : vector<8x8xf32>
    %64 = math.exp %63 : vector<8x8xf32>
    %cst_31 = arith.constant dense<0.000000e+00> : vector<8xf32>
    %65 = vector.multi_reduction <add>, %64, %cst_31 [1] : vector<8x8xf32> to vector<8xf32>
    %66 = vector.shape_cast %65 : vector<8xf32> to vector<8x1xf32>
    %67 = tpu.reciprocal %66 {approx = true} : vector<8x1xf32> -> vector<8x1xf32>
    %68 = vector.broadcast %67 : vector<8x1xf32> to vector<8x8xf32>
    %69 = arith.mulf %64, %68 : vector<8x8xf32>
    %70 = arith.truncf %69 : vector<8x8xf32> to vector<8x8xbf16>
    %71 = vector.extract_strided_slice %26 {offsets = [0, 32], sizes = [8, 32], strides = [1, 1]} : vector<8x128xbf16> to vector<8x32xbf16>
    %cst_32 = arith.constant dense<0.000000e+00> : vector<8x32xf32>
    %72 = tpu.matmul %70, %71, %cst_32 {dimension_numbers = #tpu.dot_dimension_numbers<[1], [0], [0], [1], [0, 0, 1, 1], [], []>} : vector<8x8xbf16>, vector<8x32xbf16>, vector<8x32xf32> -> vector<8x32xf32>
    %73 = arith.truncf %72 : vector<8x32xf32> to vector<8x32xbf16>
    %74 = vector.extract_strided_slice %20 {offsets = [32, 0], sizes = [32, 128], strides = [1, 1]} : vector<128x128xbf16> to vector<32x128xbf16>
    %cst_33 = arith.constant dense<0.000000e+00> : vector<8x128xf32>
    %75 = tpu.matmul %73, %74, %cst_33 {dimension_numbers = #tpu.dot_dimension_numbers<[1], [0], [0], [1], [0, 0, 1, 1], [], []>} : vector<8x32xbf16>, vector<32x128xbf16>, vector<8x128xf32> -> vector<8x128xf32>
    %76 = arith.addf %55, %75 : vector<8x128xf32>
    %77 = vector.extract_strided_slice %22 {offsets = [0, 64], sizes = [8, 32], strides = [1, 1]} : vector<8x128xbf16> to vector<8x32xbf16>
    %78 = vector.extract_strided_slice %24 {offsets = [0, 64], sizes = [8, 32], strides = [1, 1]} : vector<8x128xbf16> to vector<8x32xbf16>
    %cst_34 = arith.constant dense<0.000000e+00> : vector<8x8xf32>
    %79 = tpu.matmul %77, %78, %cst_34 {dimension_numbers = #tpu.dot_dimension_numbers<[1], [1], [0], [0], [0, 0, 1, 0], [], []>} : vector<8x32xbf16>, vector<8x32xbf16>, vector<8x8xf32> -> vector<8x8xf32>
    %80 = arith.addf %79, %33 : vector<8x8xf32>
    %cst_35 = arith.constant dense<0xFF800000> : vector<8xf32>
    %81 = vector.multi_reduction <maximumf>, %80, %cst_35 [1] : vector<8x8xf32> to vector<8xf32>
    %82 = vector.shape_cast %81 : vector<8xf32> to vector<8x1xf32>
    %83 = vector.broadcast %82 : vector<8x1xf32> to vector<8x8xf32>
    %84 = arith.subf %80, %83 : vector<8x8xf32>
    %85 = math.exp %84 : vector<8x8xf32>
    %cst_36 = arith.constant dense<0.000000e+00> : vector<8xf32>
    %86 = vector.multi_reduction <add>, %85, %cst_36 [1] : vector<8x8xf32> to vector<8xf32>
    %87 = vector.shape_cast %86 : vector<8xf32> to vector<8x1xf32>
    %88 = tpu.reciprocal %87 {approx = true} : vector<8x1xf32> -> vector<8x1xf32>
    %89 = vector.broadcast %88 : vector<8x1xf32> to vector<8x8xf32>
    %90 = arith.mulf %85, %89 : vector<8x8xf32>
    %91 = arith.truncf %90 : vector<8x8xf32> to vector<8x8xbf16>
    %92 = vector.extract_strided_slice %26 {offsets = [0, 64], sizes = [8, 32], strides = [1, 1]} : vector<8x128xbf16> to vector<8x32xbf16>
    %cst_37 = arith.constant dense<0.000000e+00> : vector<8x32xf32>
    %93 = tpu.matmul %91, %92, %cst_37 {dimension_numbers = #tpu.dot_dimension_numbers<[1], [0], [0], [1], [0, 0, 1, 1], [], []>} : vector<8x8xbf16>, vector<8x32xbf16>, vector<8x32xf32> -> vector<8x32xf32>
    %94 = arith.truncf %93 : vector<8x32xf32> to vector<8x32xbf16>
    %95 = vector.extract_strided_slice %20 {offsets = [64, 0], sizes = [32, 128], strides = [1, 1]} : vector<128x128xbf16> to vector<32x128xbf16>
    %cst_38 = arith.constant dense<0.000000e+00> : vector<8x128xf32>
    %96 = tpu.matmul %94, %95, %cst_38 {dimension_numbers = #tpu.dot_dimension_numbers<[1], [0], [0], [1], [0, 0, 1, 1], [], []>} : vector<8x32xbf16>, vector<32x128xbf16>, vector<8x128xf32> -> vector<8x128xf32>
    %97 = arith.addf %76, %96 : vector<8x128xf32>
    %98 = vector.extract_strided_slice %22 {offsets = [0, 96], sizes = [8, 32], strides = [1, 1]} : vector<8x128xbf16> to vector<8x32xbf16>
    %99 = vector.extract_strided_slice %24 {offsets = [0, 96], sizes = [8, 32], strides = [1, 1]} : vector<8x128xbf16> to vector<8x32xbf16>
    %cst_39 = arith.constant dense<0.000000e+00> : vector<8x8xf32>
    %100 = tpu.matmul %98, %99, %cst_39 {dimension_numbers = #tpu.dot_dimension_numbers<[1], [1], [0], [0], [0, 0, 1, 0], [], []>} : vector<8x32xbf16>, vector<8x32xbf16>, vector<8x8xf32> -> vector<8x8xf32>
    %101 = arith.addf %100, %33 : vector<8x8xf32>
    %cst_40 = arith.constant dense<0xFF800000> : vector<8xf32>
    %102 = vector.multi_reduction <maximumf>, %101, %cst_40 [1] : vector<8x8xf32> to vector<8xf32>
    %103 = vector.shape_cast %102 : vector<8xf32> to vector<8x1xf32>
    %104 = vector.broadcast %103 : vector<8x1xf32> to vector<8x8xf32>
    %105 = arith.subf %101, %104 : vector<8x8xf32>
    %106 = math.exp %105 : vector<8x8xf32>
    %cst_41 = arith.constant dense<0.000000e+00> : vector<8xf32>
    %107 = vector.multi_reduction <add>, %106, %cst_41 [1] : vector<8x8xf32> to vector<8xf32>
    %108 = vector.shape_cast %107 : vector<8xf32> to vector<8x1xf32>
    %109 = tpu.reciprocal %108 {approx = true} : vector<8x1xf32> -> vector<8x1xf32>
    %110 = vector.broadcast %109 : vector<8x1xf32> to vector<8x8xf32>
    %111 = arith.mulf %106, %110 : vector<8x8xf32>
    %112 = arith.truncf %111 : vector<8x8xf32> to vector<8x8xbf16>
    %113 = vector.extract_strided_slice %26 {offsets = [0, 96], sizes = [8, 32], strides = [1, 1]} : vector<8x128xbf16> to vector<8x32xbf16>
    %cst_42 = arith.constant dense<0.000000e+00> : vector<8x32xf32>
    %114 = tpu.matmul %112, %113, %cst_42 {dimension_numbers = #tpu.dot_dimension_numbers<[1], [0], [0], [1], [0, 0, 1, 1], [], []>} : vector<8x8xbf16>, vector<8x32xbf16>, vector<8x32xf32> -> vector<8x32xf32>
    %115 = arith.truncf %114 : vector<8x32xf32> to vector<8x32xbf16>
    %116 = vector.extract_strided_slice %20 {offsets = [96, 0], sizes = [32, 128], strides = [1, 1]} : vector<128x128xbf16> to vector<32x128xbf16>
    %cst_43 = arith.constant dense<0.000000e+00> : vector<8x128xf32>
    %117 = tpu.matmul %115, %116, %cst_43 {dimension_numbers = #tpu.dot_dimension_numbers<[1], [0], [0], [1], [0, 0, 1, 1], [], []>} : vector<8x32xbf16>, vector<32x128xbf16>, vector<8x128xf32> -> vector<8x128xf32>
    %118 = arith.addf %97, %117 : vector<8x128xf32>
    %119 = vector.extract_strided_slice %16 {offsets = [8, 0], sizes = [8, 128], strides = [1, 1]} : vector<16x128xf32> to vector<8x128xf32>
    %120 = arith.truncf %119 : vector<8x128xf32> to vector<8x128xbf16>
    %121 = vector.extract_strided_slice %17 {offsets = [8, 0], sizes = [8, 128], strides = [1, 1]} : vector<16x128xf32> to vector<8x128xf32>
    %122 = arith.truncf %121 : vector<8x128xf32> to vector<8x128xbf16>
    %123 = vector.extract_strided_slice %18 {offsets = [8, 0], sizes = [8, 128], strides = [1, 1]} : vector<16x128xf32> to vector<8x128xf32>
    %124 = arith.truncf %123 : vector<8x128xf32> to vector<8x128xbf16>
    %125 = vector.extract_strided_slice %6 {offsets = [1, 0, 0], sizes = [1, 8, 8], strides = [1, 1, 1]} : vector<2x8x8xf32> to vector<1x8x8xf32>
    %126 = vector.shape_cast %125 : vector<1x8x8xf32> to vector<8x8xf32>
    %cst_44 = arith.constant 0.000000e+00 : f32
    %127 = vector.broadcast %cst_44 : f32 to vector<8x8xf32>
    %128 = arith.cmpf ogt, %126, %127 : vector<8x8xf32>
    %cst_45 = arith.constant 0.000000e+00 : f32
    %cst_46 = arith.constant -1.000000e+09 : f32
    %129 = vector.broadcast %cst_45 : f32 to vector<8x8xf32>
    %130 = vector.broadcast %cst_46 : f32 to vector<8x8xf32>
    %131 = arith.select %128, %129, %130 : vector<8x8xi1>, vector<8x8xf32>
    %cst_47 = arith.constant 0.000000e+00 : f32
    %132 = vector.broadcast %cst_47 : f32 to vector<8x128xf32>
    %133 = vector.extract_strided_slice %120 {offsets = [0, 0], sizes = [8, 32], strides = [1, 1]} : vector<8x128xbf16> to vector<8x32xbf16>
    %134 = vector.extract_strided_slice %122 {offsets = [0, 0], sizes = [8, 32], strides = [1, 1]} : vector<8x128xbf16> to vector<8x32xbf16>
    %cst_48 = arith.constant dense<0.000000e+00> : vector<8x8xf32>
    %135 = tpu.matmul %133, %134, %cst_48 {dimension_numbers = #tpu.dot_dimension_numbers<[1], [1], [0], [0], [0, 0, 1, 0], [], []>} : vector<8x32xbf16>, vector<8x32xbf16>, vector<8x8xf32> -> vector<8x8xf32>
    %136 = arith.addf %135, %131 : vector<8x8xf32>
    %cst_49 = arith.constant dense<0xFF800000> : vector<8xf32>
    %137 = vector.multi_reduction <maximumf>, %136, %cst_49 [1] : vector<8x8xf32> to vector<8xf32>
    %138 = vector.shape_cast %137 : vector<8xf32> to vector<8x1xf32>
    %139 = vector.broadcast %138 : vector<8x1xf32> to vector<8x8xf32>
    %140 = arith.subf %136, %139 : vector<8x8xf32>
    %141 = math.exp %140 : vector<8x8xf32>
    %cst_50 = arith.constant dense<0.000000e+00> : vector<8xf32>
    %142 = vector.multi_reduction <add>, %141, %cst_50 [1] : vector<8x8xf32> to vector<8xf32>
    %143 = vector.shape_cast %142 : vector<8xf32> to vector<8x1xf32>
    %144 = tpu.reciprocal %143 {approx = true} : vector<8x1xf32> -> vector<8x1xf32>
    %145 = vector.broadcast %144 : vector<8x1xf32> to vector<8x8xf32>
    %146 = arith.mulf %141, %145 : vector<8x8xf32>
    %147 = arith.truncf %146 : vector<8x8xf32> to vector<8x8xbf16>
    %148 = vector.extract_strided_slice %124 {offsets = [0, 0], sizes = [8, 32], strides = [1, 1]} : vector<8x128xbf16> to vector<8x32xbf16>
    %cst_51 = arith.constant dense<0.000000e+00> : vector<8x32xf32>
    %149 = tpu.matmul %147, %148, %cst_51 {dimension_numbers = #tpu.dot_dimension_numbers<[1], [0], [0], [1], [0, 0, 1, 1], [], []>} : vector<8x8xbf16>, vector<8x32xbf16>, vector<8x32xf32> -> vector<8x32xf32>
    %150 = arith.truncf %149 : vector<8x32xf32> to vector<8x32xbf16>
    %151 = vector.extract_strided_slice %20 {offsets = [0, 0], sizes = [32, 128], strides = [1, 1]} : vector<128x128xbf16> to vector<32x128xbf16>
    %cst_52 = arith.constant dense<0.000000e+00> : vector<8x128xf32>
    %152 = tpu.matmul %150, %151, %cst_52 {dimension_numbers = #tpu.dot_dimension_numbers<[1], [0], [0], [1], [0, 0, 1, 1], [], []>} : vector<8x32xbf16>, vector<32x128xbf16>, vector<8x128xf32> -> vector<8x128xf32>
    %153 = arith.addf %132, %152 : vector<8x128xf32>
    %154 = vector.extract_strided_slice %120 {offsets = [0, 32], sizes = [8, 32], strides = [1, 1]} : vector<8x128xbf16> to vector<8x32xbf16>
    %155 = vector.extract_strided_slice %122 {offsets = [0, 32], sizes = [8, 32], strides = [1, 1]} : vector<8x128xbf16> to vector<8x32xbf16>
    %cst_53 = arith.constant dense<0.000000e+00> : vector<8x8xf32>
    %156 = tpu.matmul %154, %155, %cst_53 {dimension_numbers = #tpu.dot_dimension_numbers<[1], [1], [0], [0], [0, 0, 1, 0], [], []>} : vector<8x32xbf16>, vector<8x32xbf16>, vector<8x8xf32> -> vector<8x8xf32>
    %157 = arith.addf %156, %131 : vector<8x8xf32>
    %cst_54 = arith.constant dense<0xFF800000> : vector<8xf32>
    %158 = vector.multi_reduction <maximumf>, %157, %cst_54 [1] : vector<8x8xf32> to vector<8xf32>
    %159 = vector.shape_cast %158 : vector<8xf32> to vector<8x1xf32>
    %160 = vector.broadcast %159 : vector<8x1xf32> to vector<8x8xf32>
    %161 = arith.subf %157, %160 : vector<8x8xf32>
    %162 = math.exp %161 : vector<8x8xf32>
    %cst_55 = arith.constant dense<0.000000e+00> : vector<8xf32>
    %163 = vector.multi_reduction <add>, %162, %cst_55 [1] : vector<8x8xf32> to vector<8xf32>
    %164 = vector.shape_cast %163 : vector<8xf32> to vector<8x1xf32>
    %165 = tpu.reciprocal %164 {approx = true} : vector<8x1xf32> -> vector<8x1xf32>
    %166 = vector.broadcast %165 : vector<8x1xf32> to vector<8x8xf32>
    %167 = arith.mulf %162, %166 : vector<8x8xf32>
    %168 = arith.truncf %167 : vector<8x8xf32> to vector<8x8xbf16>
    %169 = vector.extract_strided_slice %124 {offsets = [0, 32], sizes = [8, 32], strides = [1, 1]} : vector<8x128xbf16> to vector<8x32xbf16>
    %cst_56 = arith.constant dense<0.000000e+00> : vector<8x32xf32>
    %170 = tpu.matmul %168, %169, %cst_56 {dimension_numbers = #tpu.dot_dimension_numbers<[1], [0], [0], [1], [0, 0, 1, 1], [], []>} : vector<8x8xbf16>, vector<8x32xbf16>, vector<8x32xf32> -> vector<8x32xf32>
    %171 = arith.truncf %170 : vector<8x32xf32> to vector<8x32xbf16>
    %172 = vector.extract_strided_slice %20 {offsets = [32, 0], sizes = [32, 128], strides = [1, 1]} : vector<128x128xbf16> to vector<32x128xbf16>
    %cst_57 = arith.constant dense<0.000000e+00> : vector<8x128xf32>
    %173 = tpu.matmul %171, %172, %cst_57 {dimension_numbers = #tpu.dot_dimension_numbers<[1], [0], [0], [1], [0, 0, 1, 1], [], []>} : vector<8x32xbf16>, vector<32x128xbf16>, vector<8x128xf32> -> vector<8x128xf32>
    %174 = arith.addf %153, %173 : vector<8x128xf32>
    %175 = vector.extract_strided_slice %120 {offsets = [0, 64], sizes = [8, 32], strides = [1, 1]} : vector<8x128xbf16> to vector<8x32xbf16>
    %176 = vector.extract_strided_slice %122 {offsets = [0, 64], sizes = [8, 32], strides = [1, 1]} : vector<8x128xbf16> to vector<8x32xbf16>
    %cst_58 = arith.constant dense<0.000000e+00> : vector<8x8xf32>
    %177 = tpu.matmul %175, %176, %cst_58 {dimension_numbers = #tpu.dot_dimension_numbers<[1], [1], [0], [0], [0, 0, 1, 0], [], []>} : vector<8x32xbf16>, vector<8x32xbf16>, vector<8x8xf32> -> vector<8x8xf32>
    %178 = arith.addf %177, %131 : vector<8x8xf32>
    %cst_59 = arith.constant dense<0xFF800000> : vector<8xf32>
    %179 = vector.multi_reduction <maximumf>, %178, %cst_59 [1] : vector<8x8xf32> to vector<8xf32>
    %180 = vector.shape_cast %179 : vector<8xf32> to vector<8x1xf32>
    %181 = vector.broadcast %180 : vector<8x1xf32> to vector<8x8xf32>
    %182 = arith.subf %178, %181 : vector<8x8xf32>
    %183 = math.exp %182 : vector<8x8xf32>
    %cst_60 = arith.constant dense<0.000000e+00> : vector<8xf32>
    %184 = vector.multi_reduction <add>, %183, %cst_60 [1] : vector<8x8xf32> to vector<8xf32>
    %185 = vector.shape_cast %184 : vector<8xf32> to vector<8x1xf32>
    %186 = tpu.reciprocal %185 {approx = true} : vector<8x1xf32> -> vector<8x1xf32>
    %187 = vector.broadcast %186 : vector<8x1xf32> to vector<8x8xf32>
    %188 = arith.mulf %183, %187 : vector<8x8xf32>
    %189 = arith.truncf %188 : vector<8x8xf32> to vector<8x8xbf16>
    %190 = vector.extract_strided_slice %124 {offsets = [0, 64], sizes = [8, 32], strides = [1, 1]} : vector<8x128xbf16> to vector<8x32xbf16>
    %cst_61 = arith.constant dense<0.000000e+00> : vector<8x32xf32>
    %191 = tpu.matmul %189, %190, %cst_61 {dimension_numbers = #tpu.dot_dimension_numbers<[1], [0], [0], [1], [0, 0, 1, 1], [], []>} : vector<8x8xbf16>, vector<8x32xbf16>, vector<8x32xf32> -> vector<8x32xf32>
    %192 = arith.truncf %191 : vector<8x32xf32> to vector<8x32xbf16>
    %193 = vector.extract_strided_slice %20 {offsets = [64, 0], sizes = [32, 128], strides = [1, 1]} : vector<128x128xbf16> to vector<32x128xbf16>
    %cst_62 = arith.constant dense<0.000000e+00> : vector<8x128xf32>
    %194 = tpu.matmul %192, %193, %cst_62 {dimension_numbers = #tpu.dot_dimension_numbers<[1], [0], [0], [1], [0, 0, 1, 1], [], []>} : vector<8x32xbf16>, vector<32x128xbf16>, vector<8x128xf32> -> vector<8x128xf32>
    %195 = arith.addf %174, %194 : vector<8x128xf32>
    %196 = vector.extract_strided_slice %120 {offsets = [0, 96], sizes = [8, 32], strides = [1, 1]} : vector<8x128xbf16> to vector<8x32xbf16>
    %197 = vector.extract_strided_slice %122 {offsets = [0, 96], sizes = [8, 32], strides = [1, 1]} : vector<8x128xbf16> to vector<8x32xbf16>
    %cst_63 = arith.constant dense<0.000000e+00> : vector<8x8xf32>
    %198 = tpu.matmul %196, %197, %cst_63 {dimension_numbers = #tpu.dot_dimension_numbers<[1], [1], [0], [0], [0, 0, 1, 0], [], []>} : vector<8x32xbf16>, vector<8x32xbf16>, vector<8x8xf32> -> vector<8x8xf32>
    %199 = arith.addf %198, %131 : vector<8x8xf32>
    %cst_64 = arith.constant dense<0xFF800000> : vector<8xf32>
    %200 = vector.multi_reduction <maximumf>, %199, %cst_64 [1] : vector<8x8xf32> to vector<8xf32>
    %201 = vector.shape_cast %200 : vector<8xf32> to vector<8x1xf32>
    %202 = vector.broadcast %201 : vector<8x1xf32> to vector<8x8xf32>
    %203 = arith.subf %199, %202 : vector<8x8xf32>
    %204 = math.exp %203 : vector<8x8xf32>
    %cst_65 = arith.constant dense<0.000000e+00> : vector<8xf32>
    %205 = vector.multi_reduction <add>, %204, %cst_65 [1] : vector<8x8xf32> to vector<8xf32>
    %206 = vector.shape_cast %205 : vector<8xf32> to vector<8x1xf32>
    %207 = tpu.reciprocal %206 {approx = true} : vector<8x1xf32> -> vector<8x1xf32>
    %208 = vector.broadcast %207 : vector<8x1xf32> to vector<8x8xf32>
    %209 = arith.mulf %204, %208 : vector<8x8xf32>
    %210 = arith.truncf %209 : vector<8x8xf32> to vector<8x8xbf16>
    %211 = vector.extract_strided_slice %124 {offsets = [0, 96], sizes = [8, 32], strides = [1, 1]} : vector<8x128xbf16> to vector<8x32xbf16>
    %cst_66 = arith.constant dense<0.000000e+00> : vector<8x32xf32>
    %212 = tpu.matmul %210, %211, %cst_66 {dimension_numbers = #tpu.dot_dimension_numbers<[1], [0], [0], [1], [0, 0, 1, 1], [], []>} : vector<8x8xbf16>, vector<8x32xbf16>, vector<8x32xf32> -> vector<8x32xf32>
    %213 = arith.truncf %212 : vector<8x32xf32> to vector<8x32xbf16>
    %214 = vector.extract_strided_slice %20 {offsets = [96, 0], sizes = [32, 128], strides = [1, 1]} : vector<128x128xbf16> to vector<32x128xbf16>
    %cst_67 = arith.constant dense<0.000000e+00> : vector<8x128xf32>
    %215 = tpu.matmul %213, %214, %cst_67 {dimension_numbers = #tpu.dot_dimension_numbers<[1], [0], [0], [1], [0, 0, 1, 1], [], []>} : vector<8x32xbf16>, vector<32x128xbf16>, vector<8x128xf32> -> vector<8x128xf32>
    %216 = arith.addf %195, %215 : vector<8x128xf32>
    %217 = tpu.concatenate %118, %216 in 0 : vector<8x128xf32>, vector<8x128xf32> -> vector<16x128xf32>
    %c0_68 = arith.constant 0 : index
    %c0_69 = arith.constant 0 : index
    %c0_70 = arith.constant 0 : index
    %218 = vector.load %arg9[%c0_68, %c0_69, %c0_70] : memref<1x1x128xf32, #tpu.memory_space<vmem>>, vector<1x1x128xf32>
    %219 = vector.shape_cast %218 : vector<1x1x128xf32> to vector<1x128xf32>
    %220 = vector.broadcast %219 : vector<1x128xf32> to vector<16x128xf32>
    %221 = arith.addf %217, %220 : vector<16x128xf32>
    %222 = arith.addf %3, %221 : vector<16x128xf32>
    %c0_71 = arith.constant 0 : index
    %c0_72 = arith.constant 0 : index
    %c0_73 = arith.constant 0 : index
    %223 = vector.load %arg20[%c0_71, %c0_72, %c0_73] : memref<1x1x128xf32, #tpu.memory_space<vmem>>, vector<1x1x128xf32>
    %224 = vector.shape_cast %223 : vector<1x1x128xf32> to vector<1x128xf32>
    %c0_74 = arith.constant 0 : index
    %c0_75 = arith.constant 0 : index
    %c0_76 = arith.constant 0 : index
    %225 = vector.load %arg21[%c0_74, %c0_75, %c0_76] : memref<1x1x128xf32, #tpu.memory_space<vmem>>, vector<1x1x128xf32>
    %226 = vector.shape_cast %225 : vector<1x1x128xf32> to vector<1x128xf32>
    %cst_77 = arith.constant dense<0.000000e+00> : vector<16xf32>
    %227 = vector.multi_reduction <add>, %222, %cst_77 [1] : vector<16x128xf32> to vector<16xf32>
    %228 = vector.shape_cast %227 : vector<16xf32> to vector<16x1xf32>
    %cst_78 = arith.constant 1.280000e+02 : f32
    %229 = vector.broadcast %cst_78 : f32 to vector<16x1xf32>
    %230 = arith.divf %228, %229 : vector<16x1xf32>
    %231 = vector.broadcast %230 : vector<16x1xf32> to vector<16x128xf32>
    %232 = arith.subf %222, %231 : vector<16x128xf32>
    %233 = vector.broadcast %230 : vector<16x1xf32> to vector<16x128xf32>
    %234 = arith.subf %222, %233 : vector<16x128xf32>
    %235 = arith.mulf %232, %234 : vector<16x128xf32>
    %cst_79 = arith.constant dense<0.000000e+00> : vector<16xf32>
    %236 = vector.multi_reduction <add>, %235, %cst_79 [1] : vector<16x128xf32> to vector<16xf32>
    %237 = vector.shape_cast %236 : vector<16xf32> to vector<16x1xf32>
    %cst_80 = arith.constant 1.280000e+02 : f32
    %238 = vector.broadcast %cst_80 : f32 to vector<16x1xf32>
    %239 = arith.divf %237, %238 : vector<16x1xf32>
    %240 = vector.broadcast %230 : vector<16x1xf32> to vector<16x128xf32>
    %241 = arith.subf %222, %240 : vector<16x128xf32>
    %cst_81 = arith.constant 9.99999974E-6 : f32
    %242 = vector.broadcast %cst_81 : f32 to vector<16x1xf32>
    %243 = arith.addf %239, %242 : vector<16x1xf32>
    %244 = math.rsqrt %243 : vector<16x1xf32>
    %245 = vector.broadcast %244 : vector<16x1xf32> to vector<16x128xf32>
    %246 = arith.mulf %241, %245 : vector<16x128xf32>
    %247 = vector.broadcast %224 : vector<1x128xf32> to vector<16x128xf32>
    %248 = arith.mulf %246, %247 : vector<16x128xf32>
    %249 = vector.broadcast %226 : vector<1x128xf32> to vector<16x128xf32>
    %250 = arith.addf %248, %249 : vector<16x128xf32>
    %251 = arith.truncf %250 : vector<16x128xf32> to vector<16x128xbf16>
    %c0_82 = arith.constant 0 : index
    %c0_83 = arith.constant 0 : index
    %c0_84 = arith.constant 0 : index
    %252 = vector.load %arg10[%c0_82, %c0_83, %c0_84] : memref<1x128x128xbf16, #tpu.memory_space<vmem>>, vector<1x128x128xbf16>
    %253 = vector.shape_cast %252 : vector<1x128x128xbf16> to vector<128x128xbf16>
    %cst_85 = arith.constant dense<0.000000e+00> : vector<16x128xf32>
    %254 = tpu.matmul %251, %253, %cst_85 {dimension_numbers = #tpu.dot_dimension_numbers<[1], [0], [0], [1], [0, 0, 1, 1], [], []>} : vector<16x128xbf16>, vector<128x128xbf16>, vector<16x128xf32> -> vector<16x128xf32>
    %c0_86 = arith.constant 0 : index
    %c0_87 = arith.constant 0 : index
    %c0_88 = arith.constant 0 : index
    %255 = vector.load %arg11[%c0_86, %c0_87, %c0_88] : memref<1x1x128xf32, #tpu.memory_space<vmem>>, vector<1x1x128xf32>
    %256 = vector.shape_cast %255 : vector<1x1x128xf32> to vector<1x128xf32>
    %257 = vector.broadcast %256 : vector<1x128xf32> to vector<16x128xf32>
    %258 = arith.addf %254, %257 : vector<16x128xf32>
    %259 = arith.truncf %5 : vector<16x128xf32> to vector<16x128xbf16>
    %c0_89 = arith.constant 0 : index
    %c0_90 = arith.constant 0 : index
    %c0_91 = arith.constant 0 : index
    %260 = vector.load %arg12[%c0_89, %c0_90, %c0_91] : memref<1x128x256xbf16, #tpu.memory_space<vmem>>, vector<1x128x256xbf16>
    %261 = vector.shape_cast %260 : vector<1x128x256xbf16> to vector<128x256xbf16>
    %cst_92 = arith.constant dense<0.000000e+00> : vector<16x256xf32>
    %262 = tpu.matmul %259, %261, %cst_92 {dimension_numbers = #tpu.dot_dimension_numbers<[1], [0], [0], [1], [0, 0, 1, 1], [], []>} : vector<16x128xbf16>, vector<128x256xbf16>, vector<16x256xf32> -> vector<16x256xf32>
    %c0_93 = arith.constant 0 : index
    %c0_94 = arith.constant 0 : index
    %c0_95 = arith.constant 0 : index
    %263 = vector.load %arg13[%c0_93, %c0_94, %c0_95] : memref<1x1x256xf32, #tpu.memory_space<vmem>>, vector<1x1x256xf32>
    %264 = vector.shape_cast %263 : vector<1x1x256xf32> to vector<1x256xf32>
    %265 = vector.broadcast %264 : vector<1x256xf32> to vector<16x256xf32>
    %266 = arith.addf %262, %265 : vector<16x256xf32>
    %267 = vector.extract_strided_slice %266 {offsets = [0, 0], sizes = [16, 128], strides = [1, 1]} : vector<16x256xf32> to vector<16x128xf32>
    %268 = vector.extract_strided_slice %266 {offsets = [0, 128], sizes = [16, 128], strides = [1, 1]} : vector<16x256xf32> to vector<16x128xf32>
    %c0_96 = arith.constant 0 : index
    %c0_97 = arith.constant 0 : index
    %c0_98 = arith.constant 0 : index
    %269 = vector.load %arg14[%c0_96, %c0_97, %c0_98] : memref<1x128x128xbf16, #tpu.memory_space<vmem>>, vector<1x128x128xbf16>
    %270 = vector.shape_cast %269 : vector<1x128x128xbf16> to vector<128x128xbf16>
    %271 = vector.extract_strided_slice %258 {offsets = [0, 0], sizes = [8, 128], strides = [1, 1]} : vector<16x128xf32> to vector<8x128xf32>
    %272 = arith.truncf %271 : vector<8x128xf32> to vector<8x128xbf16>
    %273 = vector.extract_strided_slice %267 {offsets = [0, 0], sizes = [8, 128], strides = [1, 1]} : vector<16x128xf32> to vector<8x128xf32>
    %274 = arith.truncf %273 : vector<8x128xf32> to vector<8x128xbf16>
    %275 = vector.extract_strided_slice %268 {offsets = [0, 0], sizes = [8, 128], strides = [1, 1]} : vector<16x128xf32> to vector<8x128xf32>
    %276 = arith.truncf %275 : vector<8x128xf32> to vector<8x128xbf16>
    %277 = vector.extract_strided_slice %7 {offsets = [0, 0, 0], sizes = [1, 8, 8], strides = [1, 1, 1]} : vector<2x8x8xf32> to vector<1x8x8xf32>
    %278 = vector.shape_cast %277 : vector<1x8x8xf32> to vector<8x8xf32>
    %cst_99 = arith.constant 0.000000e+00 : f32
    %279 = vector.broadcast %cst_99 : f32 to vector<8x8xf32>
    %280 = arith.cmpf ogt, %278, %279 : vector<8x8xf32>
    %cst_100 = arith.constant 0.000000e+00 : f32
    %cst_101 = arith.constant -1.000000e+09 : f32
    %281 = vector.broadcast %cst_100 : f32 to vector<8x8xf32>
    %282 = vector.broadcast %cst_101 : f32 to vector<8x8xf32>
    %283 = arith.select %280, %281, %282 : vector<8x8xi1>, vector<8x8xf32>
    %cst_102 = arith.constant 0.000000e+00 : f32
    %284 = vector.broadcast %cst_102 : f32 to vector<8x128xf32>
    %285 = vector.extract_strided_slice %272 {offsets = [0, 0], sizes = [8, 32], strides = [1, 1]} : vector<8x128xbf16> to vector<8x32xbf16>
    %286 = vector.extract_strided_slice %274 {offsets = [0, 0], sizes = [8, 32], strides = [1, 1]} : vector<8x128xbf16> to vector<8x32xbf16>
    %cst_103 = arith.constant dense<0.000000e+00> : vector<8x8xf32>
    %287 = tpu.matmul %285, %286, %cst_103 {dimension_numbers = #tpu.dot_dimension_numbers<[1], [1], [0], [0], [0, 0, 1, 0], [], []>} : vector<8x32xbf16>, vector<8x32xbf16>, vector<8x8xf32> -> vector<8x8xf32>
    %288 = arith.addf %287, %283 : vector<8x8xf32>
    %cst_104 = arith.constant dense<0xFF800000> : vector<8xf32>
    %289 = vector.multi_reduction <maximumf>, %288, %cst_104 [1] : vector<8x8xf32> to vector<8xf32>
    %290 = vector.shape_cast %289 : vector<8xf32> to vector<8x1xf32>
    %291 = vector.broadcast %290 : vector<8x1xf32> to vector<8x8xf32>
    %292 = arith.subf %288, %291 : vector<8x8xf32>
    %293 = math.exp %292 : vector<8x8xf32>
    %cst_105 = arith.constant dense<0.000000e+00> : vector<8xf32>
    %294 = vector.multi_reduction <add>, %293, %cst_105 [1] : vector<8x8xf32> to vector<8xf32>
    %295 = vector.shape_cast %294 : vector<8xf32> to vector<8x1xf32>
    %296 = tpu.reciprocal %295 {approx = true} : vector<8x1xf32> -> vector<8x1xf32>
    %297 = vector.broadcast %296 : vector<8x1xf32> to vector<8x8xf32>
    %298 = arith.mulf %293, %297 : vector<8x8xf32>
    %299 = arith.truncf %298 : vector<8x8xf32> to vector<8x8xbf16>
    %300 = vector.extract_strided_slice %276 {offsets = [0, 0], sizes = [8, 32], strides = [1, 1]} : vector<8x128xbf16> to vector<8x32xbf16>
    %cst_106 = arith.constant dense<0.000000e+00> : vector<8x32xf32>
    %301 = tpu.matmul %299, %300, %cst_106 {dimension_numbers = #tpu.dot_dimension_numbers<[1], [0], [0], [1], [0, 0, 1, 1], [], []>} : vector<8x8xbf16>, vector<8x32xbf16>, vector<8x32xf32> -> vector<8x32xf32>
    %302 = arith.truncf %301 : vector<8x32xf32> to vector<8x32xbf16>
    %303 = vector.extract_strided_slice %270 {offsets = [0, 0], sizes = [32, 128], strides = [1, 1]} : vector<128x128xbf16> to vector<32x128xbf16>
    %cst_107 = arith.constant dense<0.000000e+00> : vector<8x128xf32>
    %304 = tpu.matmul %302, %303, %cst_107 {dimension_numbers = #tpu.dot_dimension_numbers<[1], [0], [0], [1], [0, 0, 1, 1], [], []>} : vector<8x32xbf16>, vector<32x128xbf16>, vector<8x128xf32> -> vector<8x128xf32>
    %305 = arith.addf %284, %304 : vector<8x128xf32>
    %306 = vector.extract_strided_slice %272 {offsets = [0, 32], sizes = [8, 32], strides = [1, 1]} : vector<8x128xbf16> to vector<8x32xbf16>
    %307 = vector.extract_strided_slice %274 {offsets = [0, 32], sizes = [8, 32], strides = [1, 1]} : vector<8x128xbf16> to vector<8x32xbf16>
    %cst_108 = arith.constant dense<0.000000e+00> : vector<8x8xf32>
    %308 = tpu.matmul %306, %307, %cst_108 {dimension_numbers = #tpu.dot_dimension_numbers<[1], [1], [0], [0], [0, 0, 1, 0], [], []>} : vector<8x32xbf16>, vector<8x32xbf16>, vector<8x8xf32> -> vector<8x8xf32>
    %309 = arith.addf %308, %283 : vector<8x8xf32>
    %cst_109 = arith.constant dense<0xFF800000> : vector<8xf32>
    %310 = vector.multi_reduction <maximumf>, %309, %cst_109 [1] : vector<8x8xf32> to vector<8xf32>
    %311 = vector.shape_cast %310 : vector<8xf32> to vector<8x1xf32>
    %312 = vector.broadcast %311 : vector<8x1xf32> to vector<8x8xf32>
    %313 = arith.subf %309, %312 : vector<8x8xf32>
    %314 = math.exp %313 : vector<8x8xf32>
    %cst_110 = arith.constant dense<0.000000e+00> : vector<8xf32>
    %315 = vector.multi_reduction <add>, %314, %cst_110 [1] : vector<8x8xf32> to vector<8xf32>
    %316 = vector.shape_cast %315 : vector<8xf32> to vector<8x1xf32>
    %317 = tpu.reciprocal %316 {approx = true} : vector<8x1xf32> -> vector<8x1xf32>
    %318 = vector.broadcast %317 : vector<8x1xf32> to vector<8x8xf32>
    %319 = arith.mulf %314, %318 : vector<8x8xf32>
    %320 = arith.truncf %319 : vector<8x8xf32> to vector<8x8xbf16>
    %321 = vector.extract_strided_slice %276 {offsets = [0, 32], sizes = [8, 32], strides = [1, 1]} : vector<8x128xbf16> to vector<8x32xbf16>
    %cst_111 = arith.constant dense<0.000000e+00> : vector<8x32xf32>
    %322 = tpu.matmul %320, %321, %cst_111 {dimension_numbers = #tpu.dot_dimension_numbers<[1], [0], [0], [1], [0, 0, 1, 1], [], []>} : vector<8x8xbf16>, vector<8x32xbf16>, vector<8x32xf32> -> vector<8x32xf32>
    %323 = arith.truncf %322 : vector<8x32xf32> to vector<8x32xbf16>
    %324 = vector.extract_strided_slice %270 {offsets = [32, 0], sizes = [32, 128], strides = [1, 1]} : vector<128x128xbf16> to vector<32x128xbf16>
    %cst_112 = arith.constant dense<0.000000e+00> : vector<8x128xf32>
    %325 = tpu.matmul %323, %324, %cst_112 {dimension_numbers = #tpu.dot_dimension_numbers<[1], [0], [0], [1], [0, 0, 1, 1], [], []>} : vector<8x32xbf16>, vector<32x128xbf16>, vector<8x128xf32> -> vector<8x128xf32>
    %326 = arith.addf %305, %325 : vector<8x128xf32>
    %327 = vector.extract_strided_slice %272 {offsets = [0, 64], sizes = [8, 32], strides = [1, 1]} : vector<8x128xbf16> to vector<8x32xbf16>
    %328 = vector.extract_strided_slice %274 {offsets = [0, 64], sizes = [8, 32], strides = [1, 1]} : vector<8x128xbf16> to vector<8x32xbf16>
    %cst_113 = arith.constant dense<0.000000e+00> : vector<8x8xf32>
    %329 = tpu.matmul %327, %328, %cst_113 {dimension_numbers = #tpu.dot_dimension_numbers<[1], [1], [0], [0], [0, 0, 1, 0], [], []>} : vector<8x32xbf16>, vector<8x32xbf16>, vector<8x8xf32> -> vector<8x8xf32>
    %330 = arith.addf %329, %283 : vector<8x8xf32>
    %cst_114 = arith.constant dense<0xFF800000> : vector<8xf32>
    %331 = vector.multi_reduction <maximumf>, %330, %cst_114 [1] : vector<8x8xf32> to vector<8xf32>
    %332 = vector.shape_cast %331 : vector<8xf32> to vector<8x1xf32>
    %333 = vector.broadcast %332 : vector<8x1xf32> to vector<8x8xf32>
    %334 = arith.subf %330, %333 : vector<8x8xf32>
    %335 = math.exp %334 : vector<8x8xf32>
    %cst_115 = arith.constant dense<0.000000e+00> : vector<8xf32>
    %336 = vector.multi_reduction <add>, %335, %cst_115 [1] : vector<8x8xf32> to vector<8xf32>
    %337 = vector.shape_cast %336 : vector<8xf32> to vector<8x1xf32>
    %338 = tpu.reciprocal %337 {approx = true} : vector<8x1xf32> -> vector<8x1xf32>
    %339 = vector.broadcast %338 : vector<8x1xf32> to vector<8x8xf32>
    %340 = arith.mulf %335, %339 : vector<8x8xf32>
    %341 = arith.truncf %340 : vector<8x8xf32> to vector<8x8xbf16>
    %342 = vector.extract_strided_slice %276 {offsets = [0, 64], sizes = [8, 32], strides = [1, 1]} : vector<8x128xbf16> to vector<8x32xbf16>
    %cst_116 = arith.constant dense<0.000000e+00> : vector<8x32xf32>
    %343 = tpu.matmul %341, %342, %cst_116 {dimension_numbers = #tpu.dot_dimension_numbers<[1], [0], [0], [1], [0, 0, 1, 1], [], []>} : vector<8x8xbf16>, vector<8x32xbf16>, vector<8x32xf32> -> vector<8x32xf32>
    %344 = arith.truncf %343 : vector<8x32xf32> to vector<8x32xbf16>
    %345 = vector.extract_strided_slice %270 {offsets = [64, 0], sizes = [32, 128], strides = [1, 1]} : vector<128x128xbf16> to vector<32x128xbf16>
    %cst_117 = arith.constant dense<0.000000e+00> : vector<8x128xf32>
    %346 = tpu.matmul %344, %345, %cst_117 {dimension_numbers = #tpu.dot_dimension_numbers<[1], [0], [0], [1], [0, 0, 1, 1], [], []>} : vector<8x32xbf16>, vector<32x128xbf16>, vector<8x128xf32> -> vector<8x128xf32>
    %347 = arith.addf %326, %346 : vector<8x128xf32>
    %348 = vector.extract_strided_slice %272 {offsets = [0, 96], sizes = [8, 32], strides = [1, 1]} : vector<8x128xbf16> to vector<8x32xbf16>
    %349 = vector.extract_strided_slice %274 {offsets = [0, 96], sizes = [8, 32], strides = [1, 1]} : vector<8x128xbf16> to vector<8x32xbf16>
    %cst_118 = arith.constant dense<0.000000e+00> : vector<8x8xf32>
    %350 = tpu.matmul %348, %349, %cst_118 {dimension_numbers = #tpu.dot_dimension_numbers<[1], [1], [0], [0], [0, 0, 1, 0], [], []>} : vector<8x32xbf16>, vector<8x32xbf16>, vector<8x8xf32> -> vector<8x8xf32>
    %351 = arith.addf %350, %283 : vector<8x8xf32>
    %cst_119 = arith.constant dense<0xFF800000> : vector<8xf32>
    %352 = vector.multi_reduction <maximumf>, %351, %cst_119 [1] : vector<8x8xf32> to vector<8xf32>
    %353 = vector.shape_cast %352 : vector<8xf32> to vector<8x1xf32>
    %354 = vector.broadcast %353 : vector<8x1xf32> to vector<8x8xf32>
    %355 = arith.subf %351, %354 : vector<8x8xf32>
    %356 = math.exp %355 : vector<8x8xf32>
    %cst_120 = arith.constant dense<0.000000e+00> : vector<8xf32>
    %357 = vector.multi_reduction <add>, %356, %cst_120 [1] : vector<8x8xf32> to vector<8xf32>
    %358 = vector.shape_cast %357 : vector<8xf32> to vector<8x1xf32>
    %359 = tpu.reciprocal %358 {approx = true} : vector<8x1xf32> -> vector<8x1xf32>
    %360 = vector.broadcast %359 : vector<8x1xf32> to vector<8x8xf32>
    %361 = arith.mulf %356, %360 : vector<8x8xf32>
    %362 = arith.truncf %361 : vector<8x8xf32> to vector<8x8xbf16>
    %363 = vector.extract_strided_slice %276 {offsets = [0, 96], sizes = [8, 32], strides = [1, 1]} : vector<8x128xbf16> to vector<8x32xbf16>
    %cst_121 = arith.constant dense<0.000000e+00> : vector<8x32xf32>
    %364 = tpu.matmul %362, %363, %cst_121 {dimension_numbers = #tpu.dot_dimension_numbers<[1], [0], [0], [1], [0, 0, 1, 1], [], []>} : vector<8x8xbf16>, vector<8x32xbf16>, vector<8x32xf32> -> vector<8x32xf32>
    %365 = arith.truncf %364 : vector<8x32xf32> to vector<8x32xbf16>
    %366 = vector.extract_strided_slice %270 {offsets = [96, 0], sizes = [32, 128], strides = [1, 1]} : vector<128x128xbf16> to vector<32x128xbf16>
    %cst_122 = arith.constant dense<0.000000e+00> : vector<8x128xf32>
    %367 = tpu.matmul %365, %366, %cst_122 {dimension_numbers = #tpu.dot_dimension_numbers<[1], [0], [0], [1], [0, 0, 1, 1], [], []>} : vector<8x32xbf16>, vector<32x128xbf16>, vector<8x128xf32> -> vector<8x128xf32>
    %368 = arith.addf %347, %367 : vector<8x128xf32>
    %369 = vector.extract_strided_slice %258 {offsets = [8, 0], sizes = [8, 128], strides = [1, 1]} : vector<16x128xf32> to vector<8x128xf32>
    %370 = arith.truncf %369 : vector<8x128xf32> to vector<8x128xbf16>
    %371 = vector.extract_strided_slice %267 {offsets = [8, 0], sizes = [8, 128], strides = [1, 1]} : vector<16x128xf32> to vector<8x128xf32>
    %372 = arith.truncf %371 : vector<8x128xf32> to vector<8x128xbf16>
    %373 = vector.extract_strided_slice %268 {offsets = [8, 0], sizes = [8, 128], strides = [1, 1]} : vector<16x128xf32> to vector<8x128xf32>
    %374 = arith.truncf %373 : vector<8x128xf32> to vector<8x128xbf16>
    %375 = vector.extract_strided_slice %7 {offsets = [1, 0, 0], sizes = [1, 8, 8], strides = [1, 1, 1]} : vector<2x8x8xf32> to vector<1x8x8xf32>
    %376 = vector.shape_cast %375 : vector<1x8x8xf32> to vector<8x8xf32>
    %cst_123 = arith.constant 0.000000e+00 : f32
    %377 = vector.broadcast %cst_123 : f32 to vector<8x8xf32>
    %378 = arith.cmpf ogt, %376, %377 : vector<8x8xf32>
    %cst_124 = arith.constant 0.000000e+00 : f32
    %cst_125 = arith.constant -1.000000e+09 : f32
    %379 = vector.broadcast %cst_124 : f32 to vector<8x8xf32>
    %380 = vector.broadcast %cst_125 : f32 to vector<8x8xf32>
    %381 = arith.select %378, %379, %380 : vector<8x8xi1>, vector<8x8xf32>
    %cst_126 = arith.constant 0.000000e+00 : f32
    %382 = vector.broadcast %cst_126 : f32 to vector<8x128xf32>
    %383 = vector.extract_strided_slice %370 {offsets = [0, 0], sizes = [8, 32], strides = [1, 1]} : vector<8x128xbf16> to vector<8x32xbf16>
    %384 = vector.extract_strided_slice %372 {offsets = [0, 0], sizes = [8, 32], strides = [1, 1]} : vector<8x128xbf16> to vector<8x32xbf16>
    %cst_127 = arith.constant dense<0.000000e+00> : vector<8x8xf32>
    %385 = tpu.matmul %383, %384, %cst_127 {dimension_numbers = #tpu.dot_dimension_numbers<[1], [1], [0], [0], [0, 0, 1, 0], [], []>} : vector<8x32xbf16>, vector<8x32xbf16>, vector<8x8xf32> -> vector<8x8xf32>
    %386 = arith.addf %385, %381 : vector<8x8xf32>
    %cst_128 = arith.constant dense<0xFF800000> : vector<8xf32>
    %387 = vector.multi_reduction <maximumf>, %386, %cst_128 [1] : vector<8x8xf32> to vector<8xf32>
    %388 = vector.shape_cast %387 : vector<8xf32> to vector<8x1xf32>
    %389 = vector.broadcast %388 : vector<8x1xf32> to vector<8x8xf32>
    %390 = arith.subf %386, %389 : vector<8x8xf32>
    %391 = math.exp %390 : vector<8x8xf32>
    %cst_129 = arith.constant dense<0.000000e+00> : vector<8xf32>
    %392 = vector.multi_reduction <add>, %391, %cst_129 [1] : vector<8x8xf32> to vector<8xf32>
    %393 = vector.shape_cast %392 : vector<8xf32> to vector<8x1xf32>
    %394 = tpu.reciprocal %393 {approx = true} : vector<8x1xf32> -> vector<8x1xf32>
    %395 = vector.broadcast %394 : vector<8x1xf32> to vector<8x8xf32>
    %396 = arith.mulf %391, %395 : vector<8x8xf32>
    %397 = arith.truncf %396 : vector<8x8xf32> to vector<8x8xbf16>
    %398 = vector.extract_strided_slice %374 {offsets = [0, 0], sizes = [8, 32], strides = [1, 1]} : vector<8x128xbf16> to vector<8x32xbf16>
    %cst_130 = arith.constant dense<0.000000e+00> : vector<8x32xf32>
    %399 = tpu.matmul %397, %398, %cst_130 {dimension_numbers = #tpu.dot_dimension_numbers<[1], [0], [0], [1], [0, 0, 1, 1], [], []>} : vector<8x8xbf16>, vector<8x32xbf16>, vector<8x32xf32> -> vector<8x32xf32>
    %400 = arith.truncf %399 : vector<8x32xf32> to vector<8x32xbf16>
    %401 = vector.extract_strided_slice %270 {offsets = [0, 0], sizes = [32, 128], strides = [1, 1]} : vector<128x128xbf16> to vector<32x128xbf16>
    %cst_131 = arith.constant dense<0.000000e+00> : vector<8x128xf32>
    %402 = tpu.matmul %400, %401, %cst_131 {dimension_numbers = #tpu.dot_dimension_numbers<[1], [0], [0], [1], [0, 0, 1, 1], [], []>} : vector<8x32xbf16>, vector<32x128xbf16>, vector<8x128xf32> -> vector<8x128xf32>
    %403 = arith.addf %382, %402 : vector<8x128xf32>
    %404 = vector.extract_strided_slice %370 {offsets = [0, 32], sizes = [8, 32], strides = [1, 1]} : vector<8x128xbf16> to vector<8x32xbf16>
    %405 = vector.extract_strided_slice %372 {offsets = [0, 32], sizes = [8, 32], strides = [1, 1]} : vector<8x128xbf16> to vector<8x32xbf16>
    %cst_132 = arith.constant dense<0.000000e+00> : vector<8x8xf32>
    %406 = tpu.matmul %404, %405, %cst_132 {dimension_numbers = #tpu.dot_dimension_numbers<[1], [1], [0], [0], [0, 0, 1, 0], [], []>} : vector<8x32xbf16>, vector<8x32xbf16>, vector<8x8xf32> -> vector<8x8xf32>
    %407 = arith.addf %406, %381 : vector<8x8xf32>
    %cst_133 = arith.constant dense<0xFF800000> : vector<8xf32>
    %408 = vector.multi_reduction <maximumf>, %407, %cst_133 [1] : vector<8x8xf32> to vector<8xf32>
    %409 = vector.shape_cast %408 : vector<8xf32> to vector<8x1xf32>
    %410 = vector.broadcast %409 : vector<8x1xf32> to vector<8x8xf32>
    %411 = arith.subf %407, %410 : vector<8x8xf32>
    %412 = math.exp %411 : vector<8x8xf32>
    %cst_134 = arith.constant dense<0.000000e+00> : vector<8xf32>
    %413 = vector.multi_reduction <add>, %412, %cst_134 [1] : vector<8x8xf32> to vector<8xf32>
    %414 = vector.shape_cast %413 : vector<8xf32> to vector<8x1xf32>
    %415 = tpu.reciprocal %414 {approx = true} : vector<8x1xf32> -> vector<8x1xf32>
    %416 = vector.broadcast %415 : vector<8x1xf32> to vector<8x8xf32>
    %417 = arith.mulf %412, %416 : vector<8x8xf32>
    %418 = arith.truncf %417 : vector<8x8xf32> to vector<8x8xbf16>
    %419 = vector.extract_strided_slice %374 {offsets = [0, 32], sizes = [8, 32], strides = [1, 1]} : vector<8x128xbf16> to vector<8x32xbf16>
    %cst_135 = arith.constant dense<0.000000e+00> : vector<8x32xf32>
    %420 = tpu.matmul %418, %419, %cst_135 {dimension_numbers = #tpu.dot_dimension_numbers<[1], [0], [0], [1], [0, 0, 1, 1], [], []>} : vector<8x8xbf16>, vector<8x32xbf16>, vector<8x32xf32> -> vector<8x32xf32>
    %421 = arith.truncf %420 : vector<8x32xf32> to vector<8x32xbf16>
    %422 = vector.extract_strided_slice %270 {offsets = [32, 0], sizes = [32, 128], strides = [1, 1]} : vector<128x128xbf16> to vector<32x128xbf16>
    %cst_136 = arith.constant dense<0.000000e+00> : vector<8x128xf32>
    %423 = tpu.matmul %421, %422, %cst_136 {dimension_numbers = #tpu.dot_dimension_numbers<[1], [0], [0], [1], [0, 0, 1, 1], [], []>} : vector<8x32xbf16>, vector<32x128xbf16>, vector<8x128xf32> -> vector<8x128xf32>
    %424 = arith.addf %403, %423 : vector<8x128xf32>
    %425 = vector.extract_strided_slice %370 {offsets = [0, 64], sizes = [8, 32], strides = [1, 1]} : vector<8x128xbf16> to vector<8x32xbf16>
    %426 = vector.extract_strided_slice %372 {offsets = [0, 64], sizes = [8, 32], strides = [1, 1]} : vector<8x128xbf16> to vector<8x32xbf16>
    %cst_137 = arith.constant dense<0.000000e+00> : vector<8x8xf32>
    %427 = tpu.matmul %425, %426, %cst_137 {dimension_numbers = #tpu.dot_dimension_numbers<[1], [1], [0], [0], [0, 0, 1, 0], [], []>} : vector<8x32xbf16>, vector<8x32xbf16>, vector<8x8xf32> -> vector<8x8xf32>
    %428 = arith.addf %427, %381 : vector<8x8xf32>
    %cst_138 = arith.constant dense<0xFF800000> : vector<8xf32>
    %429 = vector.multi_reduction <maximumf>, %428, %cst_138 [1] : vector<8x8xf32> to vector<8xf32>
    %430 = vector.shape_cast %429 : vector<8xf32> to vector<8x1xf32>
    %431 = vector.broadcast %430 : vector<8x1xf32> to vector<8x8xf32>
    %432 = arith.subf %428, %431 : vector<8x8xf32>
    %433 = math.exp %432 : vector<8x8xf32>
    %cst_139 = arith.constant dense<0.000000e+00> : vector<8xf32>
    %434 = vector.multi_reduction <add>, %433, %cst_139 [1] : vector<8x8xf32> to vector<8xf32>
    %435 = vector.shape_cast %434 : vector<8xf32> to vector<8x1xf32>
    %436 = tpu.reciprocal %435 {approx = true} : vector<8x1xf32> -> vector<8x1xf32>
    %437 = vector.broadcast %436 : vector<8x1xf32> to vector<8x8xf32>
    %438 = arith.mulf %433, %437 : vector<8x8xf32>
    %439 = arith.truncf %438 : vector<8x8xf32> to vector<8x8xbf16>
    %440 = vector.extract_strided_slice %374 {offsets = [0, 64], sizes = [8, 32], strides = [1, 1]} : vector<8x128xbf16> to vector<8x32xbf16>
    %cst_140 = arith.constant dense<0.000000e+00> : vector<8x32xf32>
    %441 = tpu.matmul %439, %440, %cst_140 {dimension_numbers = #tpu.dot_dimension_numbers<[1], [0], [0], [1], [0, 0, 1, 1], [], []>} : vector<8x8xbf16>, vector<8x32xbf16>, vector<8x32xf32> -> vector<8x32xf32>
    %442 = arith.truncf %441 : vector<8x32xf32> to vector<8x32xbf16>
    %443 = vector.extract_strided_slice %270 {offsets = [64, 0], sizes = [32, 128], strides = [1, 1]} : vector<128x128xbf16> to vector<32x128xbf16>
    %cst_141 = arith.constant dense<0.000000e+00> : vector<8x128xf32>
    %444 = tpu.matmul %442, %443, %cst_141 {dimension_numbers = #tpu.dot_dimension_numbers<[1], [0], [0], [1], [0, 0, 1, 1], [], []>} : vector<8x32xbf16>, vector<32x128xbf16>, vector<8x128xf32> -> vector<8x128xf32>
    %445 = arith.addf %424, %444 : vector<8x128xf32>
    %446 = vector.extract_strided_slice %370 {offsets = [0, 96], sizes = [8, 32], strides = [1, 1]} : vector<8x128xbf16> to vector<8x32xbf16>
    %447 = vector.extract_strided_slice %372 {offsets = [0, 96], sizes = [8, 32], strides = [1, 1]} : vector<8x128xbf16> to vector<8x32xbf16>
    %cst_142 = arith.constant dense<0.000000e+00> : vector<8x8xf32>
    %448 = tpu.matmul %446, %447, %cst_142 {dimension_numbers = #tpu.dot_dimension_numbers<[1], [1], [0], [0], [0, 0, 1, 0], [], []>} : vector<8x32xbf16>, vector<8x32xbf16>, vector<8x8xf32> -> vector<8x8xf32>
    %449 = arith.addf %448, %381 : vector<8x8xf32>
    %cst_143 = arith.constant dense<0xFF800000> : vector<8xf32>
    %450 = vector.multi_reduction <maximumf>, %449, %cst_143 [1] : vector<8x8xf32> to vector<8xf32>
    %451 = vector.shape_cast %450 : vector<8xf32> to vector<8x1xf32>
    %452 = vector.broadcast %451 : vector<8x1xf32> to vector<8x8xf32>
    %453 = arith.subf %449, %452 : vector<8x8xf32>
    %454 = math.exp %453 : vector<8x8xf32>
    %cst_144 = arith.constant dense<0.000000e+00> : vector<8xf32>
    %455 = vector.multi_reduction <add>, %454, %cst_144 [1] : vector<8x8xf32> to vector<8xf32>
    %456 = vector.shape_cast %455 : vector<8xf32> to vector<8x1xf32>
    %457 = tpu.reciprocal %456 {approx = true} : vector<8x1xf32> -> vector<8x1xf32>
    %458 = vector.broadcast %457 : vector<8x1xf32> to vector<8x8xf32>
    %459 = arith.mulf %454, %458 : vector<8x8xf32>
    %460 = arith.truncf %459 : vector<8x8xf32> to vector<8x8xbf16>
    %461 = vector.extract_strided_slice %374 {offsets = [0, 96], sizes = [8, 32], strides = [1, 1]} : vector<8x128xbf16> to vector<8x32xbf16>
    %cst_145 = arith.constant dense<0.000000e+00> : vector<8x32xf32>
    %462 = tpu.matmul %460, %461, %cst_145 {dimension_numbers = #tpu.dot_dimension_numbers<[1], [0], [0], [1], [0, 0, 1, 1], [], []>} : vector<8x8xbf16>, vector<8x32xbf16>, vector<8x32xf32> -> vector<8x32xf32>
    %463 = arith.truncf %462 : vector<8x32xf32> to vector<8x32xbf16>
    %464 = vector.extract_strided_slice %270 {offsets = [96, 0], sizes = [32, 128], strides = [1, 1]} : vector<128x128xbf16> to vector<32x128xbf16>
    %cst_146 = arith.constant dense<0.000000e+00> : vector<8x128xf32>
    %465 = tpu.matmul %463, %464, %cst_146 {dimension_numbers = #tpu.dot_dimension_numbers<[1], [0], [0], [1], [0, 0, 1, 1], [], []>} : vector<8x32xbf16>, vector<32x128xbf16>, vector<8x128xf32> -> vector<8x128xf32>
    %466 = arith.addf %445, %465 : vector<8x128xf32>
    %467 = tpu.concatenate %368, %466 in 0 : vector<8x128xf32>, vector<8x128xf32> -> vector<16x128xf32>
    %c0_147 = arith.constant 0 : index
    %c0_148 = arith.constant 0 : index
    %c0_149 = arith.constant 0 : index
    %468 = vector.load %arg15[%c0_147, %c0_148, %c0_149] : memref<1x1x128xf32, #tpu.memory_space<vmem>>, vector<1x1x128xf32>
    %469 = vector.shape_cast %468 : vector<1x1x128xf32> to vector<1x128xf32>
    %470 = vector.broadcast %469 : vector<1x128xf32> to vector<16x128xf32>
    %471 = arith.addf %467, %470 : vector<16x128xf32>
    %472 = arith.addf %250, %471 : vector<16x128xf32>
    %c0_150 = arith.constant 0 : index
    %c0_151 = arith.constant 0 : index
    %c0_152 = arith.constant 0 : index
    %473 = vector.load %arg22[%c0_150, %c0_151, %c0_152] : memref<1x1x128xf32, #tpu.memory_space<vmem>>, vector<1x1x128xf32>
    %474 = vector.shape_cast %473 : vector<1x1x128xf32> to vector<1x128xf32>
    %c0_153 = arith.constant 0 : index
    %c0_154 = arith.constant 0 : index
    %c0_155 = arith.constant 0 : index
    %475 = vector.load %arg23[%c0_153, %c0_154, %c0_155] : memref<1x1x128xf32, #tpu.memory_space<vmem>>, vector<1x1x128xf32>
    %476 = vector.shape_cast %475 : vector<1x1x128xf32> to vector<1x128xf32>
    %cst_156 = arith.constant dense<0.000000e+00> : vector<16xf32>
    %477 = vector.multi_reduction <add>, %472, %cst_156 [1] : vector<16x128xf32> to vector<16xf32>
    %478 = vector.shape_cast %477 : vector<16xf32> to vector<16x1xf32>
    %cst_157 = arith.constant 1.280000e+02 : f32
    %479 = vector.broadcast %cst_157 : f32 to vector<16x1xf32>
    %480 = arith.divf %478, %479 : vector<16x1xf32>
    %481 = vector.broadcast %480 : vector<16x1xf32> to vector<16x128xf32>
    %482 = arith.subf %472, %481 : vector<16x128xf32>
    %483 = vector.broadcast %480 : vector<16x1xf32> to vector<16x128xf32>
    %484 = arith.subf %472, %483 : vector<16x128xf32>
    %485 = arith.mulf %482, %484 : vector<16x128xf32>
    %cst_158 = arith.constant dense<0.000000e+00> : vector<16xf32>
    %486 = vector.multi_reduction <add>, %485, %cst_158 [1] : vector<16x128xf32> to vector<16xf32>
    %487 = vector.shape_cast %486 : vector<16xf32> to vector<16x1xf32>
    %cst_159 = arith.constant 1.280000e+02 : f32
    %488 = vector.broadcast %cst_159 : f32 to vector<16x1xf32>
    %489 = arith.divf %487, %488 : vector<16x1xf32>
    %490 = vector.broadcast %480 : vector<16x1xf32> to vector<16x128xf32>
    %491 = arith.subf %472, %490 : vector<16x128xf32>
    %cst_160 = arith.constant 9.99999974E-6 : f32
    %492 = vector.broadcast %cst_160 : f32 to vector<16x1xf32>
    %493 = arith.addf %489, %492 : vector<16x1xf32>
    %494 = math.rsqrt %493 : vector<16x1xf32>
    %495 = vector.broadcast %494 : vector<16x1xf32> to vector<16x128xf32>
    %496 = arith.mulf %491, %495 : vector<16x128xf32>
    %497 = vector.broadcast %474 : vector<1x128xf32> to vector<16x128xf32>
    %498 = arith.mulf %496, %497 : vector<16x128xf32>
    %499 = vector.broadcast %476 : vector<1x128xf32> to vector<16x128xf32>
    %500 = arith.addf %498, %499 : vector<16x128xf32>
    %501 = arith.truncf %500 : vector<16x128xf32> to vector<16x128xbf16>
    %c0_161 = arith.constant 0 : index
    %c0_162 = arith.constant 0 : index
    %c0_163 = arith.constant 0 : index
    %502 = vector.load %arg16[%c0_161, %c0_162, %c0_163] : memref<1x128x256xbf16, #tpu.memory_space<vmem>>, vector<1x128x256xbf16>
    %503 = vector.shape_cast %502 : vector<1x128x256xbf16> to vector<128x256xbf16>
    %cst_164 = arith.constant dense<0.000000e+00> : vector<16x256xf32>
    %504 = tpu.matmul %501, %503, %cst_164 {dimension_numbers = #tpu.dot_dimension_numbers<[1], [0], [0], [1], [0, 0, 1, 1], [], []>} : vector<16x128xbf16>, vector<128x256xbf16>, vector<16x256xf32> -> vector<16x256xf32>
    %c0_165 = arith.constant 0 : index
    %c0_166 = arith.constant 0 : index
    %c0_167 = arith.constant 0 : index
    %505 = vector.load %arg17[%c0_165, %c0_166, %c0_167] : memref<1x1x256xf32, #tpu.memory_space<vmem>>, vector<1x1x256xf32>
    %506 = vector.shape_cast %505 : vector<1x1x256xf32> to vector<1x256xf32>
    %507 = vector.broadcast %506 : vector<1x256xf32> to vector<16x256xf32>
    %508 = arith.addf %504, %507 : vector<16x256xf32>
    %cst_168 = arith.constant 0.000000e+00 : f32
    %509 = vector.broadcast %cst_168 : f32 to vector<16x256xf32>
    %510 = arith.maximumf %508, %509 : vector<16x256xf32>
    %511 = arith.truncf %510 : vector<16x256xf32> to vector<16x256xbf16>
    %c0_169 = arith.constant 0 : index
    %c0_170 = arith.constant 0 : index
    %c0_171 = arith.constant 0 : index
    %512 = vector.load %arg18[%c0_169, %c0_170, %c0_171] : memref<1x256x128xbf16, #tpu.memory_space<vmem>>, vector<1x256x128xbf16>
    %513 = vector.shape_cast %512 : vector<1x256x128xbf16> to vector<256x128xbf16>
    %cst_172 = arith.constant dense<0.000000e+00> : vector<16x128xf32>
    %514 = tpu.matmul %511, %513, %cst_172 {dimension_numbers = #tpu.dot_dimension_numbers<[1], [0], [0], [1], [0, 0, 1, 1], [], []>} : vector<16x256xbf16>, vector<256x128xbf16>, vector<16x128xf32> -> vector<16x128xf32>
    %c0_173 = arith.constant 0 : index
    %c0_174 = arith.constant 0 : index
    %c0_175 = arith.constant 0 : index
    %515 = vector.load %arg19[%c0_173, %c0_174, %c0_175] : memref<1x1x128xf32, #tpu.memory_space<vmem>>, vector<1x1x128xf32>
    %516 = vector.shape_cast %515 : vector<1x1x128xf32> to vector<1x128xf32>
    %517 = vector.broadcast %516 : vector<1x128xf32> to vector<16x128xf32>
    %518 = arith.addf %514, %517 : vector<16x128xf32>
    %519 = arith.addf %500, %518 : vector<16x128xf32>
    %c0_176 = arith.constant 0 : index
    %c0_177 = arith.constant 0 : index
    %c0_178 = arith.constant 0 : index
    %520 = vector.load %arg24[%c0_176, %c0_177, %c0_178] : memref<1x1x128xf32, #tpu.memory_space<vmem>>, vector<1x1x128xf32>
    %521 = vector.shape_cast %520 : vector<1x1x128xf32> to vector<1x128xf32>
    %c0_179 = arith.constant 0 : index
    %c0_180 = arith.constant 0 : index
    %c0_181 = arith.constant 0 : index
    %522 = vector.load %arg25[%c0_179, %c0_180, %c0_181] : memref<1x1x128xf32, #tpu.memory_space<vmem>>, vector<1x1x128xf32>
    %523 = vector.shape_cast %522 : vector<1x1x128xf32> to vector<1x128xf32>
    %cst_182 = arith.constant dense<0.000000e+00> : vector<16xf32>
    %524 = vector.multi_reduction <add>, %519, %cst_182 [1] : vector<16x128xf32> to vector<16xf32>
    %525 = vector.shape_cast %524 : vector<16xf32> to vector<16x1xf32>
    %cst_183 = arith.constant 1.280000e+02 : f32
    %526 = vector.broadcast %cst_183 : f32 to vector<16x1xf32>
    %527 = arith.divf %525, %526 : vector<16x1xf32>
    %528 = vector.broadcast %527 : vector<16x1xf32> to vector<16x128xf32>
    %529 = arith.subf %519, %528 : vector<16x128xf32>
    %530 = vector.broadcast %527 : vector<16x1xf32> to vector<16x128xf32>
    %531 = arith.subf %519, %530 : vector<16x128xf32>
    %532 = arith.mulf %529, %531 : vector<16x128xf32>
    %cst_184 = arith.constant dense<0.000000e+00> : vector<16xf32>
    %533 = vector.multi_reduction <add>, %532, %cst_184 [1] : vector<16x128xf32> to vector<16xf32>
    %534 = vector.shape_cast %533 : vector<16xf32> to vector<16x1xf32>
    %cst_185 = arith.constant 1.280000e+02 : f32
    %535 = vector.broadcast %cst_185 : f32 to vector<16x1xf32>
    %536 = arith.divf %534, %535 : vector<16x1xf32>
    %537 = vector.broadcast %527 : vector<16x1xf32> to vector<16x128xf32>
    %538 = arith.subf %519, %537 : vector<16x128xf32>
    %cst_186 = arith.constant 9.99999974E-6 : f32
    %539 = vector.broadcast %cst_186 : f32 to vector<16x1xf32>
    %540 = arith.addf %536, %539 : vector<16x1xf32>
    %541 = math.rsqrt %540 : vector<16x1xf32>
    %542 = vector.broadcast %541 : vector<16x1xf32> to vector<16x128xf32>
    %543 = arith.mulf %538, %542 : vector<16x128xf32>
    %544 = vector.broadcast %521 : vector<1x128xf32> to vector<16x128xf32>
    %545 = arith.mulf %543, %544 : vector<16x128xf32>
    %546 = vector.broadcast %523 : vector<1x128xf32> to vector<16x128xf32>
    %547 = arith.addf %545, %546 : vector<16x128xf32>
    %c0_187 = arith.constant 0 : index
    %c0_188 = arith.constant 0 : index
    %548 = vector.load %arg29[%c0_187, %c0_188] : memref<16x128xf32, #tpu.memory_space<vmem>>, vector<16x128xf32>
    tpu.vector_store %arg29[%c0_187, %c0_188], %547 {strides = array<i32>} : memref<16x128xf32, #tpu.memory_space<vmem>>, vector<16x128xf32>,
    %c1_i32 = arith.constant 1 : i32
    %549 = arith.cmpi eq, %arg1, %c1_i32 : i32
    %550 = arith.extui %549 : i1 to i32
    %c0_i32_189 = arith.constant 0 : i32
    %551 = arith.cmpi ne, %550, %c0_i32_189 : i32
    scf.if %551 {
      %c0_190 = arith.constant 0 : index
      %c0_191 = arith.constant 0 : index
      %552 = vector.load %arg26[%c0_190, %c0_191] : memref<1x128xf32, #tpu.memory_space<vmem>>, vector<1x128xf32>
      %c0_192 = arith.constant 0 : index
      %c0_193 = arith.constant 0 : index
      %553 = vector.load %arg27[%c0_192, %c0_193] : memref<1x128xf32, #tpu.memory_space<vmem>>, vector<1x128xf32>
      %cst_194 = arith.constant dense<0.000000e+00> : vector<16xf32>
      %554 = vector.multi_reduction <add>, %547, %cst_194 [1] : vector<16x128xf32> to vector<16xf32>
      %555 = vector.shape_cast %554 : vector<16xf32> to vector<16x1xf32>
      %cst_195 = arith.constant 1.280000e+02 : f32
      %556 = vector.broadcast %cst_195 : f32 to vector<16x1xf32>
      %557 = arith.divf %555, %556 : vector<16x1xf32>
      %558 = vector.broadcast %557 : vector<16x1xf32> to vector<16x128xf32>
      %559 = arith.subf %547, %558 : vector<16x128xf32>
      %560 = vector.broadcast %557 : vector<16x1xf32> to vector<16x128xf32>
      %561 = arith.subf %547, %560 : vector<16x128xf32>
      %562 = arith.mulf %559, %561 : vector<16x128xf32>
      %cst_196 = arith.constant dense<0.000000e+00> : vector<16xf32>
      %563 = vector.multi_reduction <add>, %562, %cst_196 [1] : vector<16x128xf32> to vector<16xf32>
      %564 = vector.shape_cast %563 : vector<16xf32> to vector<16x1xf32>
      %cst_197 = arith.constant 1.280000e+02 : f32
      %565 = vector.broadcast %cst_197 : f32 to vector<16x1xf32>
      %566 = arith.divf %564, %565 : vector<16x1xf32>
      %567 = vector.broadcast %557 : vector<16x1xf32> to vector<16x128xf32>
      %568 = arith.subf %547, %567 : vector<16x128xf32>
      %cst_198 = arith.constant 9.99999974E-6 : f32
      %569 = vector.broadcast %cst_198 : f32 to vector<16x1xf32>
      %570 = arith.addf %566, %569 : vector<16x1xf32>
      %571 = math.rsqrt %570 : vector<16x1xf32>
      %572 = vector.broadcast %571 : vector<16x1xf32> to vector<16x128xf32>
      %573 = arith.mulf %568, %572 : vector<16x128xf32>
      %574 = vector.broadcast %552 : vector<1x128xf32> to vector<16x128xf32>
      %575 = arith.mulf %573, %574 : vector<16x128xf32>
      %576 = vector.broadcast %553 : vector<1x128xf32> to vector<16x128xf32>
      %577 = arith.addf %575, %576 : vector<16x128xf32>
      %578 = vector.shape_cast %577 : vector<16x128xf32> to vector<2x8x128xf32>
      %c0_199 = arith.constant 0 : index
      %c0_200 = arith.constant 0 : index
      %c0_201 = arith.constant 0 : index
      %579 = vector.load %arg28[%c0_199, %c0_200, %c0_201] : memref<2x8x128xf32, #tpu.memory_space<vmem>>, vector<2x8x128xf32>
      tpu.vector_store %arg28[%c0_199, %c0_200, %c0_201], %578 {strides = array<i32>} : memref<2x8x128xf32, #tpu.memory_space<vmem>>, vector<2x8x128xf32>,
    } else {
    }
    return
  }
  func.func @transform_0(%arg0: i32, %arg1: i32) -> (i32, i32, i32) {
    %c0_i32 = arith.constant 0 : i32
    %c0_i32_0 = arith.constant 0 : i32
    %c0_i32_1 = arith.constant 0 : i32
    return %arg0, %c0_i32, %c0_i32_0 : i32, i32, i32
  }
  func.func @transform_1(%arg0: i32, %arg1: i32) -> (i32, i32, i32) {
    %c0_i32 = arith.constant 0 : i32
    %c0_i32_0 = arith.constant 0 : i32
    %c0_i32_1 = arith.constant 0 : i32
    return %arg0, %c0_i32, %c0_i32_0 : i32, i32, i32
  }
  func.func @transform_2(%arg0: i32, %arg1: i32) -> (i32, i32, i32) {
    %c0_i32 = arith.constant 0 : i32
    %c0_i32_0 = arith.constant 0 : i32
    %c0_i32_1 = arith.constant 0 : i32
    return %arg0, %c0_i32, %c0_i32_0 : i32, i32, i32
  }
  func.func @transform_3(%arg0: i32, %arg1: i32) -> (i32, i32, i32) {
    %c0_i32 = arith.constant 0 : i32
    %c0_i32_0 = arith.constant 0 : i32
    %c0_i32_1 = arith.constant 0 : i32
    return %arg0, %c0_i32, %c0_i32_0 : i32, i32, i32
  }
  func.func @transform_4(%arg0: i32, %arg1: i32) -> (i32, i32, i32) {
    %c0_i32 = arith.constant 0 : i32
    %c0_i32_0 = arith.constant 0 : i32
    %c0_i32_1 = arith.constant 0 : i32
    return %arg1, %c0_i32, %c0_i32_0 : i32, i32, i32
  }
  func.func @transform_5(%arg0: i32, %arg1: i32) -> (i32, i32, i32) {
    %c0_i32 = arith.constant 0 : i32
    %c0_i32_0 = arith.constant 0 : i32
    %c0_i32_1 = arith.constant 0 : i32
    return %arg1, %c0_i32, %c0_i32_0 : i32, i32, i32
  }
  func.func @transform_6(%arg0: i32, %arg1: i32) -> (i32, i32, i32) {
    %c0_i32 = arith.constant 0 : i32
    %c0_i32_0 = arith.constant 0 : i32
    %c0_i32_1 = arith.constant 0 : i32
    return %arg1, %c0_i32, %c0_i32_0 : i32, i32, i32
  }
  func.func @transform_7(%arg0: i32, %arg1: i32) -> (i32, i32, i32) {
    %c0_i32 = arith.constant 0 : i32
    %c0_i32_0 = arith.constant 0 : i32
    %c0_i32_1 = arith.constant 0 : i32
    return %arg1, %c0_i32, %c0_i32_0 : i32, i32, i32
  }
  func.func @transform_8(%arg0: i32, %arg1: i32) -> (i32, i32, i32) {
    %c0_i32 = arith.constant 0 : i32
    %c0_i32_0 = arith.constant 0 : i32
    %c0_i32_1 = arith.constant 0 : i32
    return %arg1, %c0_i32, %c0_i32_0 : i32, i32, i32
  }
  func.func @transform_9(%arg0: i32, %arg1: i32) -> (i32, i32, i32) {
    %c0_i32 = arith.constant 0 : i32
    %c0_i32_0 = arith.constant 0 : i32
    %c0_i32_1 = arith.constant 0 : i32
    return %arg1, %c0_i32, %c0_i32_0 : i32, i32, i32
  }
  func.func @transform_10(%arg0: i32, %arg1: i32) -> (i32, i32, i32) {
    %c0_i32 = arith.constant 0 : i32
    %c0_i32_0 = arith.constant 0 : i32
    %c0_i32_1 = arith.constant 0 : i32
    return %arg1, %c0_i32, %c0_i32_0 : i32, i32, i32
  }
  func.func @transform_11(%arg0: i32, %arg1: i32) -> (i32, i32, i32) {
    %c0_i32 = arith.constant 0 : i32
    %c0_i32_0 = arith.constant 0 : i32
    %c0_i32_1 = arith.constant 0 : i32
    return %arg1, %c0_i32, %c0_i32_0 : i32, i32, i32
  }
  func.func @transform_12(%arg0: i32, %arg1: i32) -> (i32, i32, i32) {
    %c0_i32 = arith.constant 0 : i32
    %c0_i32_0 = arith.constant 0 : i32
    %c0_i32_1 = arith.constant 0 : i32
    return %arg1, %c0_i32, %c0_i32_0 : i32, i32, i32
  }
  func.func @transform_13(%arg0: i32, %arg1: i32) -> (i32, i32, i32) {
    %c0_i32 = arith.constant 0 : i32
    %c0_i32_0 = arith.constant 0 : i32
    %c0_i32_1 = arith.constant 0 : i32
    return %arg1, %c0_i32, %c0_i32_0 : i32, i32, i32
  }
  func.func @transform_14(%arg0: i32, %arg1: i32) -> (i32, i32, i32) {
    %c0_i32 = arith.constant 0 : i32
    %c0_i32_0 = arith.constant 0 : i32
    %c0_i32_1 = arith.constant 0 : i32
    return %arg1, %c0_i32, %c0_i32_0 : i32, i32, i32
  }
  func.func @transform_15(%arg0: i32, %arg1: i32) -> (i32, i32, i32) {
    %c0_i32 = arith.constant 0 : i32
    %c0_i32_0 = arith.constant 0 : i32
    %c0_i32_1 = arith.constant 0 : i32
    return %arg1, %c0_i32, %c0_i32_0 : i32, i32, i32
  }
  func.func @transform_16(%arg0: i32, %arg1: i32) -> (i32, i32, i32) {
    %c0_i32 = arith.constant 0 : i32
    %c0_i32_0 = arith.constant 0 : i32
    %c0_i32_1 = arith.constant 0 : i32
    return %arg1, %c0_i32, %c0_i32_0 : i32, i32, i32
  }
  func.func @transform_17(%arg0: i32, %arg1: i32) -> (i32, i32, i32) {
    %c0_i32 = arith.constant 0 : i32
    %c0_i32_0 = arith.constant 0 : i32
    %c0_i32_1 = arith.constant 0 : i32
    return %arg1, %c0_i32, %c0_i32_0 : i32, i32, i32
  }
  func.func @transform_18(%arg0: i32, %arg1: i32) -> (i32, i32, i32) {
    %c0_i32 = arith.constant 0 : i32
    %c0_i32_0 = arith.constant 0 : i32
    %c0_i32_1 = arith.constant 0 : i32
    return %arg1, %c0_i32, %c0_i32_0 : i32, i32, i32
  }
  func.func @transform_19(%arg0: i32, %arg1: i32) -> (i32, i32, i32) {
    %c0_i32 = arith.constant 0 : i32
    %c0_i32_0 = arith.constant 0 : i32
    %c0_i32_1 = arith.constant 0 : i32
    return %arg1, %c0_i32, %c0_i32_0 : i32, i32, i32
  }
  func.func @transform_20(%arg0: i32, %arg1: i32) -> (i32, i32, i32) {
    %c0_i32 = arith.constant 0 : i32
    %c0_i32_0 = arith.constant 0 : i32
    %c0_i32_1 = arith.constant 0 : i32
    return %arg1, %c0_i32, %c0_i32_0 : i32, i32, i32
  }
  func.func @transform_21(%arg0: i32, %arg1: i32) -> (i32, i32, i32) {
    %c0_i32 = arith.constant 0 : i32
    %c0_i32_0 = arith.constant 0 : i32
    %c0_i32_1 = arith.constant 0 : i32
    return %arg1, %c0_i32, %c0_i32_0 : i32, i32, i32
  }
  func.func @transform_22(%arg0: i32, %arg1: i32) -> (i32, i32, i32) {
    %c0_i32 = arith.constant 0 : i32
    %c0_i32_0 = arith.constant 0 : i32
    %c0_i32_1 = arith.constant 0 : i32
    return %arg1, %c0_i32, %c0_i32_0 : i32, i32, i32
  }
  func.func @transform_23(%arg0: i32, %arg1: i32) -> (i32, i32, i32) {
    %c0_i32 = arith.constant 0 : i32
    %c0_i32_0 = arith.constant 0 : i32
    %c0_i32_1 = arith.constant 0 : i32
    return %arg1, %c0_i32, %c0_i32_0 : i32, i32, i32
  }
  func.func @transform_24(%arg0: i32, %arg1: i32) -> (i32, i32) {
    %c0_i32 = arith.constant 0 : i32
    %c0_i32_0 = arith.constant 0 : i32
    %c0_i32_1 = arith.constant 0 : i32
    return %c0_i32, %c0_i32_0 : i32, i32
  }
  func.func @transform_25(%arg0: i32, %arg1: i32) -> (i32, i32) {
    %c0_i32 = arith.constant 0 : i32
    %c0_i32_0 = arith.constant 0 : i32
    %c0_i32_1 = arith.constant 0 : i32
    return %c0_i32, %c0_i32_0 : i32, i32
  }
  func.func @transform_26(%arg0: i32, %arg1: i32) -> (i32, i32, i32) {
    %c0_i32 = arith.constant 0 : i32
    %c0_i32_0 = arith.constant 0 : i32
    %c0_i32_1 = arith.constant 0 : i32
    return %arg0, %c0_i32, %c0_i32_0 : i32, i32, i32
  }
}

</mosaic_0001>

<llo_original>
// kernel: decoder_forward.1
$region0: #{decoder_forward.1}
  #allocation0 [shape = 'u32[]', space=smem, size = 0x4, offset = 0x4, fixed_abs, tag = 'smem constant byte address 0x4 - core index']
  #allocation1 [shape = 'u32[72,128]{1,0:T(1,128)}', space=vmem, size = 0x9000, scoped, tag = 'internal scratch']
  #allocation2 [shape = 'f32[16,128]{1,0:T(8,128)}', space=vmem, size = 0x2000, scoped, tag = 'scratch operand']
  %s0 = inlined_call_operand.vmem [shape: f32[2,8,128], index: 0, kind: input, shape index: {}]
  %s1 = inlined_call_operand.hbm [shape: f32[2,8,128], index: 1, kind: input, shape index: {}]
  %s2 = inlined_call_operand.hbm [shape: f32[2,8,8], index: 2, kind: input, shape index: {}]
  %s3 = inlined_call_operand.hbm [shape: f32[2,8,8], index: 3, kind: input, shape index: {}]
  %s4 = inlined_call_operand.hbm [shape: bf16[2,128,384], index: 4, kind: input, shape index: {}]
  %s5 = inlined_call_operand.hbm [shape: f32[2,1,384], index: 5, kind: input, shape index: {}]
  %s6 = inlined_call_operand.hbm [shape: bf16[2,128,128], index: 6, kind: input, shape index: {}]
  %s7 = inlined_call_operand.hbm [shape: f32[2,1,128], index: 7, kind: input, shape index: {}]
  %s8 = inlined_call_operand.hbm [shape: bf16[2,128,128], index: 8, kind: input, shape index: {}]
  %s9 = inlined_call_operand.hbm [shape: f32[2,1,128], index: 9, kind: input, shape index: {}]
  %s10 = inlined_call_operand.hbm [shape: bf16[2,128,256], index: 10, kind: input, shape index: {}]
  %s11 = inlined_call_operand.hbm [shape: f32[2,1,256], index: 11, kind: input, shape index: {}]
  %s12 = inlined_call_operand.hbm [shape: bf16[2,128,128], index: 12, kind: input, shape index: {}]
  %s13 = inlined_call_operand.hbm [shape: f32[2,1,128], index: 13, kind: input, shape index: {}]
  %s14 = inlined_call_operand.hbm [shape: bf16[2,128,256], index: 14, kind: input, shape index: {}]
  %s15 = inlined_call_operand.vmem [shape: f32[2,1,256], index: 15, kind: input, shape index: {}]
  %s16 = inlined_call_operand.hbm [shape: bf16[2,256,128], index: 16, kind: input, shape index: {}]
  %s17 = inlined_call_operand.hbm [shape: f32[2,1,128], index: 17, kind: input, shape index: {}]
  %s18 = inlined_call_operand.hbm [shape: f32[2,1,128], index: 18, kind: input, shape index: {}]
  %s19 = inlined_call_operand.hbm [shape: f32[2,1,128], index: 19, kind: input, shape index: {}]
  %s20 = inlined_call_operand.hbm [shape: f32[2,1,128], index: 20, kind: input, shape index: {}]
  %s21 = inlined_call_operand.hbm [shape: f32[2,1,128], index: 21, kind: input, shape index: {}]
  %s22 = inlined_call_operand.hbm [shape: f32[2,1,128], index: 22, kind: input, shape index: {}]
  %s23 = inlined_call_operand.hbm [shape: f32[2,1,128], index: 23, kind: input, shape index: {}]
  %s24 = inlined_call_operand.vmem [shape: f32[1,128], index: 24, kind: input, shape index: {}]
  %s25 = inlined_call_operand.hbm [shape: f32[1,128], index: 25, kind: input, shape index: {}]
  %s26 = inlined_call_operand.hbm [shape: f32[2,8,128], index: 26, kind: output, shape index: {}]
  %s27 = sld [smem:[#allocation0]]
  $region237: #{decoder_forward.1} parent=0
    _
  %s29 = ssub.s32 1, %s27
  %s30 = scalar_select 0, %s29, %s27
  $region1: #{decoder_forward.1} parent=0
    #allocation3 [shape = 'u8[8192]{0}', space=vmem, size = 0x2000, scoped, tag = 'input window, operand 1, single buffered']
    #allocation4 [shape = 's32[2]{0}', space=sflag, size = 0x8, scoped, tag = 'scoped memory for decoder_forward.1']
    #allocation5 [shape = 's32[2]{0}', space=sflag, size = 0x8, scoped, tag = 'scoped memory for decoder_forward.1']
    #allocation6 [shape = 'u8[8192]{0}', space=vmem, size = 0x2000, scoped, tag = 'input window, operand 2, single buffered']
    #allocation7 [shape = 's32[1]{0}', space=sflag, size = 0x4, scoped, tag = 'scoped memory for decoder_forward.1']
    #allocation8 [shape = 'u8[8192]{0}', space=vmem, size = 0x2000, scoped, tag = 'input window, operand 3, single buffered']
    #allocation9 [shape = 'u8[196608]{0}', space=vmem, size = 0x30000, scoped, tag = 'input window, operand 4']
    #allocation10 [shape = 's32[2]{0}', space=sflag, size = 0x8, scoped, tag = 'scoped memory for decoder_forward.1']
    #allocation11 [shape = 'u8[3072]{0}', space=vmem, size = 0xc00, scoped, tag = 'input window, operand 5']
    #allocation12 [shape = 'u8[65536]{0}', space=vmem, size = 0x10000, scoped, tag = 'input window, operand 6']
    #allocation13 [shape = 's32[2]{0}', space=sflag, size = 0x8, scoped, tag = 'scoped memory for decoder_forward.1']
    #allocation14 [shape = 'u8[1024]{0}', space=vmem, size = 0x400, scoped, tag = 'input window, operand 7']
    #allocation15 [shape = 'u8[65536]{0}', space=vmem, size = 0x10000, scoped, tag = 'input window, operand 8']
    #allocation16 [shape = 's32[2]{0}', space=sflag, size = 0x8, scoped, tag = 'scoped memory for decoder_forward.1']
    #allocation17 [shape = 'u8[1024]{0}', space=vmem, size = 0x400, scoped, tag = 'input window, operand 9']
    #allocation18 [shape = 'u8[131072]{0}', space=vmem, size = 0x20000, scoped, tag = 'input window, operand 10']
    #allocation19 [shape = 's32[2]{0}', space=sflag, size = 0x8, scoped, tag = 'scoped memory for decoder_forward.1']
    #allocation20 [shape = 'u8[2048]{0}', space=vmem, size = 0x800, scoped, tag = 'input window, operand 11']
    #allocation21 [shape = 'u8[65536]{0}', space=vmem, size = 0x10000, scoped, tag = 'input window, operand 12']
    #allocation22 [shape = 's32[2]{0}', space=sflag, size = 0x8, scoped, tag = 'scoped memory for decoder_forward.1']
    #allocation23 [shape = 'u8[1024]{0}', space=vmem, size = 0x400, scoped, tag = 'input window, operand 13']
    #allocation24 [shape = 'u8[131072]{0}', space=vmem, size = 0x20000, scoped, tag = 'input window, operand 14']
    #allocation25 [shape = 's32[2]{0}', space=sflag, size = 0x8, scoped, tag = 'scoped memory for decoder_forward.1']
    #allocation26 [shape = 'u8[131072]{0}', space=vmem, size = 0x20000, scoped, tag = 'input window, operand 16']
    #allocation27 [shape = 'u8[1024]{0}', space=vmem, size = 0x400, scoped, tag = 'input window, operand 17']
    #allocation28 [shape = 's32[2]{0}', space=sflag, size = 0x8, scoped, tag = 'scoped memory for decoder_forward.1']
    #allocation29 [shape = 'u8[1024]{0}', space=vmem, size = 0x400, scoped, tag = 'input window, operand 18']
    #allocation30 [shape = 'u8[1024]{0}', space=vmem, size = 0x400, scoped, tag = 'input window, operand 19']
    #allocation31 [shape = 's32[2]{0}', space=sflag, size = 0x8, scoped, tag = 'scoped memory for decoder_forward.1']
    #allocation32 [shape = 'u8[1024]{0}', space=vmem, size = 0x400, scoped, tag = 'input window, operand 20']
    #allocation33 [shape = 'u8[1024]{0}', space=vmem, size = 0x400, scoped, tag = 'input window, operand 21']
    #allocation34 [shape = 's32[2]{0}', space=sflag, size = 0x8, scoped, tag = 'scoped memory for decoder_forward.1']
    #allocation35 [shape = 'u8[1024]{0}', space=vmem, size = 0x400, scoped, tag = 'input window, operand 22']
    #allocation36 [shape = 'u8[1024]{0}', space=vmem, size = 0x400, scoped, tag = 'input window, operand 23']
    #allocation37 [shape = 's32[2]{0}', space=sflag, size = 0x8, scoped, tag = 'scoped memory for decoder_forward.1']
    #allocation38 [shape = 'u8[512]{0}', space=vmem, size = 0x400, scoped, tag = 'input window, operand 25, single buffered']
    #allocation39 [shape = 'u8[8192]{0}', space=vmem, size = 0x2000, scoped, tag = 'output window, operand 0, single buffered']
    %31 = vsyncpa [#allocation4], 0
    %32 = vsyncpa [#allocation7], 0
    %33 = vsyncpa [#allocation10], 0
    %s34 = scalar_lea.sflag [#allocation10], 1
    %35 = vsyncpa %s34, 0
    %36 = vsyncpa [#allocation13], 0
    %s37 = scalar_lea.sflag [#allocation13], 1
    %38 = vsyncpa %s37, 0
    %39 = vsyncpa [#allocation16], 0
    %s40 = scalar_lea.sflag [#allocation16], 1
    %41 = vsyncpa %s40, 0
    %42 = vsyncpa [#allocation19], 0
    %s43 = scalar_lea.sflag [#allocation19], 1
    %44 = vsyncpa %s43, 0
    %45 = vsyncpa [#allocation22], 0
    %s46 = scalar_lea.sflag [#allocation22], 1
    %47 = vsyncpa %s46, 0
    %48 = vsyncpa [#allocation25], 0
    %s49 = scalar_lea.sflag [#allocation25], 1
    %50 = vsyncpa %s49, 0
    %51 = vsyncpa [#allocation28], 0
    %s52 = scalar_lea.sflag [#allocation28], 1
    %53 = vsyncpa %s52, 0
    %54 = vsyncpa [#allocation31], 0
    %s55 = scalar_lea.sflag [#allocation31], 1
    %56 = vsyncpa %s55, 0
    %57 = vsyncpa [#allocation34], 0
    %s58 = scalar_lea.sflag [#allocation34], 1
    %59 = vsyncpa %s58, 0
    %60 = vsyncpa [#allocation37], 0
    %s61 = scalar_lea.sflag [#allocation37], 1
    %62 = vsyncpa %s61, 0
    %63 = vsyncpa [#allocation5], 0
    loop: start=0, step=1, limit=4
    $region2: #{decoder_forward.1} parent=1 // loop_pre_header
      _
    $region3: #{decoder_forward.1} parent=1 // loop_header
      %s65 = sphi 0, %s69
      %p66 = scmp.ge.s32.totalorder %s65, 4
      %s72 = sphi 0, %s84
      %s73 = sphi 0, %s80
      %s74 = sphi 0, %s72
      %s75 = sphi 0, %s73
      %s76 = sphi 0, %s74
      %s77 = sphi 0, %s75
      %s87 = sphi 0, %s89
      %s90 = sphi 0, %s87
      %s91 = sphi 0, %s90
      %s107 = sphi 0, %s91
      %s113 = sphi 0, %s115
      %s116 = sphi 0, %s113
      %s117 = sphi 0, %s116
      %s133 = sphi 0, %s117
      %s139 = sphi 0, %s141
      %s142 = sphi 0, %s139
      %s143 = sphi 0, %s142
      %s159 = sphi 0, %s143
      %s165 = sphi 0, %s167
      %s168 = sphi 0, %s165
      %s169 = sphi 0, %s168
      %s185 = sphi 0, %s169
      %s191 = sphi 0, %s193
      %s194 = sphi 0, %s191
      %s195 = sphi 0, %s194
      %s211 = sphi 0, %s195
      %s217 = sphi 0, %s219
      %s220 = sphi 0, %s217
      %s221 = sphi 0, %s220
      %s237 = sphi 0, %s221
      %s243 = sphi 0, %s245
      %s246 = sphi 0, %s243
      %s247 = sphi 0, %s246
      %s263 = sphi 0, %s247
      %s269 = sphi 0, %s271
      %s272 = sphi 0, %s269
      %s273 = sphi 0, %s272
      %s289 = sphi 0, %s273
      %s295 = sphi 0, %s297
      %s298 = sphi 0, %s295
      %s299 = sphi 0, %s298
      %s315 = sphi 0, %s299
      %s321 = sphi 0, %s323
      %s324 = sphi 0, %s321
      %s325 = sphi 0, %s324
      %s341 = sphi 0, %s325
      %s347 = sphi 0, %s349
      %s350 = sphi 0, %s347
      %s351 = sphi 0, %s350
      %s367 = sphi 0, %s351
      %s373 = sphi 0, %s375
      %s376 = sphi 0, %s373
      %s377 = sphi 0, %s376
      %s393 = sphi 0, %s377
      %s399 = sphi 0, %s401
      %s402 = sphi 0, %s399
      %s403 = sphi 0, %s402
      %s419 = sphi 0, %s403
      %s425 = sphi 0, %s427
      %s428 = sphi 0, %s425
      %s429 = sphi 0, %s428
      %s445 = sphi 0, %s429
      %s451 = sphi 0, %s453
      %s454 = sphi 0, %s451
      %s455 = sphi 0, %s454
      %s471 = sphi 0, %s455
      %s477 = sphi 0, %s479
      %s480 = sphi 0, %s477
      %s481 = sphi 0, %s480
      %s497 = sphi 0, %s481
      %s503 = sphi 0, %s505
      %s506 = sphi 0, %s503
      %s507 = sphi 0, %s506
      %s523 = sphi 0, %s507
      %s529 = sphi 0, %s531
      %s532 = sphi 0, %s529
      %s533 = sphi 0, %s532
      %s549 = sphi 0, %s533
      %s555 = sphi 0, %s557
      %s558 = sphi 0, %s555
      %s559 = sphi 0, %s558
      %s575 = sphi 0, %s559
      %s581 = sphi 0, %s583
      %s584 = sphi 0, %s581
      %s585 = sphi 0, %s584
      %s601 = sphi 0, %s585
      %s607 = sphi 0, %s609
      %s610 = sphi 0, %s607
      %s611 = sphi 0, %s610
      %s627 = sphi 0, %s611
      %s633 = sphi 0, %s635
      %s636 = sphi 0, %s633
      %s637 = sphi 0, %s636
      %s653 = sphi 0, %s637
      %s659 = sphi 0, %s661
      %s662 = sphi 0, %s659
      %s663 = sphi 0, %s662
      %s679 = sphi 0, %s663
      %s685 = sphi 0, %s687
      %s688 = sphi 0, %s685
      %s689 = sphi 0, %s688
      %s705 = sphi 0, %s689
      %s709 = sphi 0, %s709
      %s711 = sphi 0, %s709
      %s712 = sphi 0, %s711
      %s726 = sphi 0, %s712
      %s730 = sphi 0, %s730
      %s732 = sphi 0, %s730
      %s733 = sphi 0, %s732
      %s747 = sphi 0, %s733
      %s753 = sphi 0, %s755
      %s756 = sphi 0, %s753
      %s757 = sphi 0, %s756
      %s773 = sphi 0, %s757
    $region4: #{decoder_forward.1} parent=1 // loop_header_branch
      %68 = sbr.rel (%p66) target = $region8
    $region5: #{decoder_forward.1} parent=1 // loop_body
      %s70 = ssub.s32 %s65, 1
      %s71 = ssub.s32 %s65, 2
      %s78 = sadd.s32 1, %s73
      %p79 = scmp.ge.s32.totalorder %s78, 2
      %s80 = scalar_select %p79, 0, %s78
      %s81 = sadd.s32 1, %s72
      %s82 = scalar_select %p79, %s81, %s72
      %p83 = scmp.ge.s32.totalorder %s82, 1
      %s84 = scalar_select %p83, 0, %s82
      %s85 = ssub.s32 %s72, %s84
      %p86 = scmp.eq.s32.totalorder %s85, 0
      %s88 = sadd.s32 %s87, 1
      %s89 = scalar_select %p86, %s87, %s88
      %p92 = pneg %p86
      %p93 = scmp.eq.s32.totalorder %s65, 1
      %p94 = por %p92, %p93
      %p95 = scmp.ne.s32.totalorder %s87, %s90
      %p96 = scmp.eq.s32.totalorder %s65, 0
      %p97 = por %p95, %p96
      %p98 = scmp.ne.s32.totalorder %s87, %s90
      %p99 = scmp.eq.s32.totalorder %s70, 1
      %p100 = por %p98, %p99
      %p101 = scmp.ne.s32.totalorder %s90, %s91
      %p102 = scmp.eq.s32.totalorder %s70, 0
      %p103 = por %p101, %p102
      %p104 = scmp.ne.s32.totalorder %s90, %s91
      %p105 = scmp.eq.s32.totalorder %s71, 1
      %p106 = por %p104, %p105
      %p108 = scmp.ne.s32.totalorder %s91, %s107
      %p109 = scmp.eq.s32.totalorder %s71, 0
      %p110 = por %p108, %p109
      %s111 = ssub.s32 %s72, %s84
      %p112 = scmp.eq.s32.totalorder %s111, 0
      %s114 = sadd.s32 %s113, 1
      %s115 = scalar_select %p112, %s113, %s114
      %p118 = pneg %p112
      %p119 = scmp.eq.s32.totalorder %s65, 1
      %p120 = por %p118, %p119
      %p121 = scmp.ne.s32.totalorder %s113, %s116
      %p122 = scmp.eq.s32.totalorder %s65, 0
      %p123 = por %p121, %p122
      %p124 = scmp.ne.s32.totalorder %s113, %s116
      %p125 = scmp.eq.s32.totalorder %s70, 1
      %p126 = por %p124, %p125
      %p127 = scmp.ne.s32.totalorder %s116, %s117
      %p128 = scmp.eq.s32.totalorder %s70, 0
      %p129 = por %p127, %p128
      %p130 = scmp.ne.s32.totalorder %s116, %s117
      %p131 = scmp.eq.s32.totalorder %s71, 1
      %p132 = por %p130, %p131
      %p134 = scmp.ne.s32.totalorder %s117, %s133
      %p135 = scmp.eq.s32.totalorder %s71, 0
      %p136 = por %p134, %p135
      %s137 = ssub.s32 %s72, %s84
      %p138 = scmp.eq.s32.totalorder %s137, 0
      %s140 = sadd.s32 %s139, 1
      %s141 = scalar_select %p138, %s139, %s140
      %p144 = pneg %p138
      %p145 = scmp.eq.s32.totalorder %s65, 1
      %p146 = por %p144, %p145
      %p147 = scmp.ne.s32.totalorder %s139, %s142
      %p148 = scmp.eq.s32.totalorder %s65, 0
      %p149 = por %p147, %p148
      %p150 = scmp.ne.s32.totalorder %s139, %s142
      %p151 = scmp.eq.s32.totalorder %s70, 1
      %p152 = por %p150, %p151
      %p153 = scmp.ne.s32.totalorder %s142, %s143
      %p154 = scmp.eq.s32.totalorder %s70, 0
      %p155 = por %p153, %p154
      %p156 = scmp.ne.s32.totalorder %s142, %s143
      %p157 = scmp.eq.s32.totalorder %s71, 1
      %p158 = por %p156, %p157
      %p160 = scmp.ne.s32.totalorder %s143, %s159
      %p161 = scmp.eq.s32.totalorder %s71, 0
      %p162 = por %p160, %p161
      %s163 = ssub.s32 %s72, %s84
      %p164 = scmp.eq.s32.totalorder %s163, 0
      %s166 = sadd.s32 %s165, 1
      %s167 = scalar_select %p164, %s165, %s166
      %p170 = pneg %p164
      %p171 = scmp.eq.s32.totalorder %s65, 1
      %p172 = por %p170, %p171
      %p173 = scmp.ne.s32.totalorder %s165, %s168
      %p174 = scmp.eq.s32.totalorder %s65, 0
      %p175 = por %p173, %p174
      %p176 = scmp.ne.s32.totalorder %s165, %s168
      %p177 = scmp.eq.s32.totalorder %s70, 1
      %p178 = por %p176, %p177
      %p179 = scmp.ne.s32.totalorder %s168, %s169
      %p180 = scmp.eq.s32.totalorder %s70, 0
      %p181 = por %p179, %p180
      %p182 = scmp.ne.s32.totalorder %s168, %s169
      %p183 = scmp.eq.s32.totalorder %s71, 1
      %p184 = por %p182, %p183
      %p186 = scmp.ne.s32.totalorder %s169, %s185
      %p187 = scmp.eq.s32.totalorder %s71, 0
      %p188 = por %p186, %p187
      %s189 = ssub.s32 %s73, %s80
      %p190 = scmp.eq.s32.totalorder %s189, 0
      %s192 = sadd.s32 %s191, 1
      %s193 = scalar_select %p190, %s191, %s192
      %p196 = pneg %p190
      %p197 = scmp.eq.s32.totalorder %s65, 1
      %p198 = por %p196, %p197
      %p199 = scmp.ne.s32.totalorder %s191, %s194
      %p200 = scmp.eq.s32.totalorder %s65, 0
      %p201 = por %p199, %p200
      %p202 = scmp.ne.s32.totalorder %s191, %s194
      %p203 = scmp.eq.s32.totalorder %s70, 1
      %p204 = por %p202, %p203
      %p205 = scmp.ne.s32.totalorder %s194, %s195
      %p206 = scmp.eq.s32.totalorder %s70, 0
      %p207 = por %p205, %p206
      %p208 = scmp.ne.s32.totalorder %s194, %s195
      %p209 = scmp.eq.s32.totalorder %s71, 1
      %p210 = por %p208, %p209
      %p212 = scmp.ne.s32.totalorder %s195, %s211
      %p213 = scmp.eq.s32.totalorder %s71, 0
      %p214 = por %p212, %p213
      %s215 = ssub.s32 %s73, %s80
      %p216 = scmp.eq.s32.totalorder %s215, 0
      %s218 = sadd.s32 %s217, 1
      %s219 = scalar_select %p216, %s217, %s218
      %p222 = pneg %p216
      %p223 = scmp.eq.s32.totalorder %s65, 1
      %p224 = por %p222, %p223
      %p225 = scmp.ne.s32.totalorder %s217, %s220
      %p226 = scmp.eq.s32.totalorder %s65, 0
      %p227 = por %p225, %p226
      %p228 = scmp.ne.s32.totalorder %s217, %s220
      %p229 = scmp.eq.s32.totalorder %s70, 1
      %p230 = por %p228, %p229
      %p231 = scmp.ne.s32.totalorder %s220, %s221
      %p232 = scmp.eq.s32.totalorder %s70, 0
      %p233 = por %p231, %p232
      %p234 = scmp.ne.s32.totalorder %s220, %s221
      %p235 = scmp.eq.s32.totalorder %s71, 1
      %p236 = por %p234, %p235
      %p238 = scmp.ne.s32.totalorder %s221, %s237
      %p239 = scmp.eq.s32.totalorder %s71, 0
      %p240 = por %p238, %p239
      %s241 = ssub.s32 %s73, %s80
      %p242 = scmp.eq.s32.totalorder %s241, 0
      %s244 = sadd.s32 %s243, 1
      %s245 = scalar_select %p242, %s243, %s244
      %p248 = pneg %p242
      %p249 = scmp.eq.s32.totalorder %s65, 1
      %p250 = por %p248, %p249
      %p251 = scmp.ne.s32.totalorder %s243, %s246
      %p252 = scmp.eq.s32.totalorder %s65, 0
      %p253 = por %p251, %p252
      %p254 = scmp.ne.s32.totalorder %s243, %s246
      %p255 = scmp.eq.s32.totalorder %s70, 1
      %p256 = por %p254, %p255
      %p257 = scmp.ne.s32.totalorder %s246, %s247
      %p258 = scmp.eq.s32.totalorder %s70, 0
      %p259 = por %p257, %p258
      %p260 = scmp.ne.s32.totalorder %s246, %s247
      %p261 = scmp.eq.s32.totalorder %s71, 1
      %p262 = por %p260, %p261
      %p264 = scmp.ne.s32.totalorder %s247, %s263
      %p265 = scmp.eq.s32.totalorder %s71, 0
      %p266 = por %p264, %p265
      %s267 = ssub.s32 %s73, %s80
      %p268 = scmp.eq.s32.totalorder %s267, 0
      %s270 = sadd.s32 %s269, 1
      %s271 = scalar_select %p268, %s269, %s270
      %p274 = pneg %p268
      %p275 = scmp.eq.s32.totalorder %s65, 1
      %p276 = por %p274, %p275
      %p277 = scmp.ne.s32.totalorder %s269, %s272
      %p278 = scmp.eq.s32.totalorder %s65, 0
      %p279 = por %p277, %p278
      %p280 = scmp.ne.s32.totalorder %s269, %s272
      %p281 = scmp.eq.s32.totalorder %s70, 1
      %p282 = por %p280, %p281
      %p283 = scmp.ne.s32.totalorder %s272, %s273
      %p284 = scmp.eq.s32.totalorder %s70, 0
      %p285 = por %p283, %p284
      %p286 = scmp.ne.s32.totalorder %s272, %s273
      %p287 = scmp.eq.s32.totalorder %s71, 1
      %p288 = por %p286, %p287
      %p290 = scmp.ne.s32.totalorder %s273, %s289
      %p291 = scmp.eq.s32.totalorder %s71, 0
      %p292 = por %p290, %p291
      %s293 = ssub.s32 %s73, %s80
      %p294 = scmp.eq.s32.totalorder %s293, 0
      %s296 = sadd.s32 %s295, 1
      %s297 = scalar_select %p294, %s295, %s296
      %p300 = pneg %p294
      %p301 = scmp.eq.s32.totalorder %s65, 1
      %p302 = por %p300, %p301
      %p303 = scmp.ne.s32.totalorder %s295, %s298
      %p304 = scmp.eq.s32.totalorder %s65, 0
      %p305 = por %p303, %p304
      %p306 = scmp.ne.s32.totalorder %s295, %s298
      %p307 = scmp.eq.s32.totalorder %s70, 1
      %p308 = por %p306, %p307
      %p309 = scmp.ne.s32.totalorder %s298, %s299
      %p310 = scmp.eq.s32.totalorder %s70, 0
      %p311 = por %p309, %p310
      %p312 = scmp.ne.s32.totalorder %s298, %s299
      %p313 = scmp.eq.s32.totalorder %s71, 1
      %p314 = por %p312, %p313
      %p316 = scmp.ne.s32.totalorder %s299, %s315
      %p317 = scmp.eq.s32.totalorder %s71, 0
      %p318 = por %p316, %p317
      %s319 = ssub.s32 %s73, %s80
      %p320 = scmp.eq.s32.totalorder %s319, 0
      %s322 = sadd.s32 %s321, 1
      %s323 = scalar_select %p320, %s321, %s322
      %p326 = pneg %p320
      %p327 = scmp.eq.s32.totalorder %s65, 1
      %p328 = por %p326, %p327
      %p329 = scmp.ne.s32.totalorder %s321, %s324
      %p330 = scmp.eq.s32.totalorder %s65, 0
      %p331 = por %p329, %p330
      %p332 = scmp.ne.s32.totalorder %s321, %s324
      %p333 = scmp.eq.s32.totalorder %s70, 1
      %p334 = por %p332, %p333
      %p335 = scmp.ne.s32.totalorder %s324, %s325
      %p336 = scmp.eq.s32.totalorder %s70, 0
      %p337 = por %p335, %p336
      %p338 = scmp.ne.s32.totalorder %s324, %s325
      %p339 = scmp.eq.s32.totalorder %s71, 1
      %p340 = por %p338, %p339
      %p342 = scmp.ne.s32.totalorder %s325, %s341
      %p343 = scmp.eq.s32.totalorder %s71, 0
      %p344 = por %p342, %p343
      %s345 = ssub.s32 %s73, %s80
      %p346 = scmp.eq.s32.totalorder %s345, 0
      %s348 = sadd.s32 %s347, 1
      %s349 = scalar_select %p346, %s347, %s348
      %p352 = pneg %p346
      %p353 = scmp.eq.s32.totalorder %s65, 1
      %p354 = por %p352, %p353
      %p355 = scmp.ne.s32.totalorder %s347, %s350
      %p356 = scmp.eq.s32.totalorder %s65, 0
      %p357 = por %p355, %p356
      %p358 = scmp.ne.s32.totalorder %s347, %s350
      %p359 = scmp.eq.s32.totalorder %s70, 1
      %p360 = por %p358, %p359
      %p361 = scmp.ne.s32.totalorder %s350, %s351
      %p362 = scmp.eq.s32.totalorder %s70, 0
      %p363 = por %p361, %p362
      %p364 = scmp.ne.s32.totalorder %s350, %s351
      %p365 = scmp.eq.s32.totalorder %s71, 1
      %p366 = por %p364, %p365
      %p368 = scmp.ne.s32.totalorder %s351, %s367
      %p369 = scmp.eq.s32.totalorder %s71, 0
      %p370 = por %p368, %p369
      %s371 = ssub.s32 %s73, %s80
      %p372 = scmp.eq.s32.totalorder %s371, 0
      %s374 = sadd.s32 %s373, 1
      %s375 = scalar_select %p372, %s373, %s374
      %p378 = pneg %p372
      %p379 = scmp.eq.s32.totalorder %s65, 1
      %p380 = por %p378, %p379
      %p381 = scmp.ne.s32.totalorder %s373, %s376
      %p382 = scmp.eq.s32.totalorder %s65, 0
      %p383 = por %p381, %p382
      %p384 = scmp.ne.s32.totalorder %s373, %s376
      %p385 = scmp.eq.s32.totalorder %s70, 1
      %p386 = por %p384, %p385
      %p387 = scmp.ne.s32.totalorder %s376, %s377
      %p388 = scmp.eq.s32.totalorder %s70, 0
      %p389 = por %p387, %p388
      %p390 = scmp.ne.s32.totalorder %s376, %s377
      %p391 = scmp.eq.s32.totalorder %s71, 1
      %p392 = por %p390, %p391
      %p394 = scmp.ne.s32.totalorder %s377, %s393
      %p395 = scmp.eq.s32.totalorder %s71, 0
      %p396 = por %p394, %p395
      %s397 = ssub.s32 %s73, %s80
      %p398 = scmp.eq.s32.totalorder %s397, 0
      %s400 = sadd.s32 %s399, 1
      %s401 = scalar_select %p398, %s399, %s400
      %p404 = pneg %p398
      %p405 = scmp.eq.s32.totalorder %s65, 1
      %p406 = por %p404, %p405
      %p407 = scmp.ne.s32.totalorder %s399, %s402
      %p408 = scmp.eq.s32.totalorder %s65, 0
      %p409 = por %p407, %p408
      %p410 = scmp.ne.s32.totalorder %s399, %s402
      %p411 = scmp.eq.s32.totalorder %s70, 1
      %p412 = por %p410, %p411
      %p413 = scmp.ne.s32.totalorder %s402, %s403
      %p414 = scmp.eq.s32.totalorder %s70, 0
      %p415 = por %p413, %p414
      %p416 = scmp.ne.s32.totalorder %s402, %s403
      %p417 = scmp.eq.s32.totalorder %s71, 1
      %p418 = por %p416, %p417
      %p420 = scmp.ne.s32.totalorder %s403, %s419
      %p421 = scmp.eq.s32.totalorder %s71, 0
      %p422 = por %p420, %p421
      %s423 = ssub.s32 %s73, %s80
      %p424 = scmp.eq.s32.totalorder %s423, 0
      %s426 = sadd.s32 %s425, 1
      %s427 = scalar_select %p424, %s425, %s426
      %p430 = pneg %p424
      %p431 = scmp.eq.s32.totalorder %s65, 1
      %p432 = por %p430, %p431
      %p433 = scmp.ne.s32.totalorder %s425, %s428
      %p434 = scmp.eq.s32.totalorder %s65, 0
      %p435 = por %p433, %p434
      %p436 = scmp.ne.s32.totalorder %s425, %s428
      %p437 = scmp.eq.s32.totalorder %s70, 1
      %p438 = por %p436, %p437
      %p439 = scmp.ne.s32.totalorder %s428, %s429
      %p440 = scmp.eq.s32.totalorder %s70, 0
      %p441 = por %p439, %p440
      %p442 = scmp.ne.s32.totalorder %s428, %s429
      %p443 = scmp.eq.s32.totalorder %s71, 1
      %p444 = por %p442, %p443
      %p446 = scmp.ne.s32.totalorder %s429, %s445
      %p447 = scmp.eq.s32.totalorder %s71, 0
      %p448 = por %p446, %p447
      %s449 = ssub.s32 %s73, %s80
      %p450 = scmp.eq.s32.totalorder %s449, 0
      %s452 = sadd.s32 %s451, 1
      %s453 = scalar_select %p450, %s451, %s452
      %p456 = pneg %p450
      %p457 = scmp.eq.s32.totalorder %s65, 1
      %p458 = por %p456, %p457
      %p459 = scmp.ne.s32.totalorder %s451, %s454
      %p460 = scmp.eq.s32.totalorder %s65, 0
      %p461 = por %p459, %p460
      %p462 = scmp.ne.s32.totalorder %s451, %s454
      %p463 = scmp.eq.s32.totalorder %s70, 1
      %p464 = por %p462, %p463
      %p465 = scmp.ne.s32.totalorder %s454, %s455
      %p466 = scmp.eq.s32.totalorder %s70, 0
      %p467 = por %p465, %p466
      %p468 = scmp.ne.s32.totalorder %s454, %s455
      %p469 = scmp.eq.s32.totalorder %s71, 1
      %p470 = por %p468, %p469
      %p472 = scmp.ne.s32.totalorder %s455, %s471
      %p473 = scmp.eq.s32.totalorder %s71, 0
      %p474 = por %p472, %p473
      %s475 = ssub.s32 %s73, %s80
      %p476 = scmp.eq.s32.totalorder %s475, 0
      %s478 = sadd.s32 %s477, 1
      %s479 = scalar_select %p476, %s477, %s478
      %p482 = pneg %p476
      %p483 = scmp.eq.s32.totalorder %s65, 1
      %p484 = por %p482, %p483
      %p485 = scmp.ne.s32.totalorder %s477, %s480
      %p486 = scmp.eq.s32.totalorder %s65, 0
      %p487 = por %p485, %p486
      %p488 = scmp.ne.s32.totalorder %s477, %s480
      %p489 = scmp.eq.s32.totalorder %s70, 1
      %p490 = por %p488, %p489
      %p491 = scmp.ne.s32.totalorder %s480, %s481
      %p492 = scmp.eq.s32.totalorder %s70, 0
      %p493 = por %p491, %p492
      %p494 = scmp.ne.s32.totalorder %s480, %s481
      %p495 = scmp.eq.s32.totalorder %s71, 1
      %p496 = por %p494, %p495
      %p498 = scmp.ne.s32.totalorder %s481, %s497
      %p499 = scmp.eq.s32.totalorder %s71, 0
      %p500 = por %p498, %p499
      %s501 = ssub.s32 %s73, %s80
      %p502 = scmp.eq.s32.totalorder %s501, 0
      %s504 = sadd.s32 %s503, 1
      %s505 = scalar_select %p502, %s503, %s504
      %p508 = pneg %p502
      %p509 = scmp.eq.s32.totalorder %s65, 1
      %p510 = por %p508, %p509
      %p511 = scmp.ne.s32.totalorder %s503, %s506
      %p512 = scmp.eq.s32.totalorder %s65, 0
      %p513 = por %p511, %p512
      %p514 = scmp.ne.s32.totalorder %s503, %s506
      %p515 = scmp.eq.s32.totalorder %s70, 1
      %p516 = por %p514, %p515
      %p517 = scmp.ne.s32.totalorder %s506, %s507
      %p518 = scmp.eq.s32.totalorder %s70, 0
      %p519 = por %p517, %p518
      %p520 = scmp.ne.s32.totalorder %s506, %s507
      %p521 = scmp.eq.s32.totalorder %s71, 1
      %p522 = por %p520, %p521
      %p524 = scmp.ne.s32.totalorder %s507, %s523
      %p525 = scmp.eq.s32.totalorder %s71, 0
      %p526 = por %p524, %p525
      %s527 = ssub.s32 %s73, %s80
      %p528 = scmp.eq.s32.totalorder %s527, 0
      %s530 = sadd.s32 %s529, 1
      %s531 = scalar_select %p528, %s529, %s530
      %p534 = pneg %p528
      %p535 = scmp.eq.s32.totalorder %s65, 1
      %p536 = por %p534, %p535
      %p537 = scmp.ne.s32.totalorder %s529, %s532
      %p538 = scmp.eq.s32.totalorder %s65, 0
      %p539 = por %p537, %p538
      %p540 = scmp.ne.s32.totalorder %s529, %s532
      %p541 = scmp.eq.s32.totalorder %s70, 1
      %p542 = por %p540, %p541
      %p543 = scmp.ne.s32.totalorder %s532, %s533
      %p544 = scmp.eq.s32.totalorder %s70, 0
      %p545 = por %p543, %p544
      %p546 = scmp.ne.s32.totalorder %s532, %s533
      %p547 = scmp.eq.s32.totalorder %s71, 1
      %p548 = por %p546, %p547
      %p550 = scmp.ne.s32.totalorder %s533, %s549
      %p551 = scmp.eq.s32.totalorder %s71, 0
      %p552 = por %p550, %p551
      %s553 = ssub.s32 %s73, %s80
      %p554 = scmp.eq.s32.totalorder %s553, 0
      %s556 = sadd.s32 %s555, 1
      %s557 = scalar_select %p554, %s555, %s556
      %p560 = pneg %p554
      %p561 = scmp.eq.s32.totalorder %s65, 1
      %p562 = por %p560, %p561
      %p563 = scmp.ne.s32.totalorder %s555, %s558
      %p564 = scmp.eq.s32.totalorder %s65, 0
      %p565 = por %p563, %p564
      %p566 = scmp.ne.s32.totalorder %s555, %s558
      %p567 = scmp.eq.s32.totalorder %s70, 1
      %p568 = por %p566, %p567
      %p569 = scmp.ne.s32.totalorder %s558, %s559
      %p570 = scmp.eq.s32.totalorder %s70, 0
      %p571 = por %p569, %p570
      %p572 = scmp.ne.s32.totalorder %s558, %s559
      %p573 = scmp.eq.s32.totalorder %s71, 1
      %p574 = por %p572, %p573
      %p576 = scmp.ne.s32.totalorder %s559, %s575
      %p577 = scmp.eq.s32.totalorder %s71, 0
      %p578 = por %p576, %p577
      %s579 = ssub.s32 %s73, %s80
      %p580 = scmp.eq.s32.totalorder %s579, 0
      %s582 = sadd.s32 %s581, 1
      %s583 = scalar_select %p580, %s581, %s582
      %p586 = pneg %p580
      %p587 = scmp.eq.s32.totalorder %s65, 1
      %p588 = por %p586, %p587
      %p589 = scmp.ne.s32.totalorder %s581, %s584
      %p590 = scmp.eq.s32.totalorder %s65, 0
      %p591 = por %p589, %p590
      %p592 = scmp.ne.s32.totalorder %s581, %s584
      %p593 = scmp.eq.s32.totalorder %s70, 1
      %p594 = por %p592, %p593
      %p595 = scmp.ne.s32.totalorder %s584, %s585
      %p596 = scmp.eq.s32.totalorder %s70, 0
      %p597 = por %p595, %p596
      %p598 = scmp.ne.s32.totalorder %s584, %s585
      %p599 = scmp.eq.s32.totalorder %s71, 1
      %p600 = por %p598, %p599
      %p602 = scmp.ne.s32.totalorder %s585, %s601
      %p603 = scmp.eq.s32.totalorder %s71, 0
      %p604 = por %p602, %p603
      %s605 = ssub.s32 %s73, %s80
      %p606 = scmp.eq.s32.totalorder %s605, 0
      %s608 = sadd.s32 %s607, 1
      %s609 = scalar_select %p606, %s607, %s608
      %p612 = pneg %p606
      %p613 = scmp.eq.s32.totalorder %s65, 1
      %p614 = por %p612, %p613
      %p615 = scmp.ne.s32.totalorder %s607, %s610
      %p616 = scmp.eq.s32.totalorder %s65, 0
      %p617 = por %p615, %p616
      %p618 = scmp.ne.s32.totalorder %s607, %s610
      %p619 = scmp.eq.s32.totalorder %s70, 1
      %p620 = por %p618, %p619
      %p621 = scmp.ne.s32.totalorder %s610, %s611
      %p622 = scmp.eq.s32.totalorder %s70, 0
      %p623 = por %p621, %p622
      %p624 = scmp.ne.s32.totalorder %s610, %s611
      %p625 = scmp.eq.s32.totalorder %s71, 1
      %p626 = por %p624, %p625
      %p628 = scmp.ne.s32.totalorder %s611, %s627
      %p629 = scmp.eq.s32.totalorder %s71, 0
      %p630 = por %p628, %p629
      %s631 = ssub.s32 %s73, %s80
      %p632 = scmp.eq.s32.totalorder %s631, 0
      %s634 = sadd.s32 %s633, 1
      %s635 = scalar_select %p632, %s633, %s634
      %p638 = pneg %p632
      %p639 = scmp.eq.s32.totalorder %s65, 1
      %p640 = por %p638, %p639
      %p641 = scmp.ne.s32.totalorder %s633, %s636
      %p642 = scmp.eq.s32.totalorder %s65, 0
      %p643 = por %p641, %p642
      %p644 = scmp.ne.s32.totalorder %s633, %s636
      %p645 = scmp.eq.s32.totalorder %s70, 1
      %p646 = por %p644, %p645
      %p647 = scmp.ne.s32.totalorder %s636, %s637
      %p648 = scmp.eq.s32.totalorder %s70, 0
      %p649 = por %p647, %p648
      %p650 = scmp.ne.s32.totalorder %s636, %s637
      %p651 = scmp.eq.s32.totalorder %s71, 1
      %p652 = por %p650, %p651
      %p654 = scmp.ne.s32.totalorder %s637, %s653
      %p655 = scmp.eq.s32.totalorder %s71, 0
      %p656 = por %p654, %p655
      %s657 = ssub.s32 %s73, %s80
      %p658 = scmp.eq.s32.totalorder %s657, 0
      %s660 = sadd.s32 %s659, 1
      %s661 = scalar_select %p658, %s659, %s660
      %p664 = pneg %p658
      %p665 = scmp.eq.s32.totalorder %s65, 1
      %p666 = por %p664, %p665
      %p667 = scmp.ne.s32.totalorder %s659, %s662
      %p668 = scmp.eq.s32.totalorder %s65, 0
      %p669 = por %p667, %p668
      %p670 = scmp.ne.s32.totalorder %s659, %s662
      %p671 = scmp.eq.s32.totalorder %s70, 1
      %p672 = por %p670, %p671
      %p673 = scmp.ne.s32.totalorder %s662, %s663
      %p674 = scmp.eq.s32.totalorder %s70, 0
      %p675 = por %p673, %p674
      %p676 = scmp.ne.s32.totalorder %s662, %s663
      %p677 = scmp.eq.s32.totalorder %s71, 1
      %p678 = por %p676, %p677
      %p680 = scmp.ne.s32.totalorder %s663, %s679
      %p681 = scmp.eq.s32.totalorder %s71, 0
      %p682 = por %p680, %p681
      %s683 = ssub.s32 %s73, %s80
      %p684 = scmp.eq.s32.totalorder %s683, 0
      %s686 = sadd.s32 %s685, 1
      %s687 = scalar_select %p684, %s685, %s686
      %p690 = pneg %p684
      %p691 = scmp.eq.s32.totalorder %s65, 1
      %p692 = por %p690, %p691
      %p693 = scmp.ne.s32.totalorder %s685, %s688
      %p694 = scmp.eq.s32.totalorder %s65, 0
      %p695 = por %p693, %p694
      %p696 = scmp.ne.s32.totalorder %s685, %s688
      %p697 = scmp.eq.s32.totalorder %s70, 1
      %p698 = por %p696, %p697
      %p699 = scmp.ne.s32.totalorder %s688, %s689
      %p700 = scmp.eq.s32.totalorder %s70, 0
      %p701 = por %p699, %p700
      %p702 = scmp.ne.s32.totalorder %s688, %s689
      %p703 = scmp.eq.s32.totalorder %s71, 1
      %p704 = por %p702, %p703
      %p706 = scmp.ne.s32.totalorder %s689, %s705
      %p707 = scmp.eq.s32.totalorder %s71, 0
      %p708 = por %p706, %p707
      %s710 = sadd.s32 %s709, 1
      %p713 = scmp.eq.s32.totalorder %s65, 1
      %p714 = scmp.ne.s32.totalorder %s709, %s711
      %p715 = scmp.eq.s32.totalorder %s65, 0
      %p716 = por %p714, %p715
      %p717 = scmp.ne.s32.totalorder %s709, %s711
      %p718 = scmp.eq.s32.totalorder %s70, 1
      %p719 = por %p717, %p718
      %p720 = scmp.ne.s32.totalorder %s711, %s712
      %p721 = scmp.eq.s32.totalorder %s70, 0
      %p722 = por %p720, %p721
      %p723 = scmp.ne.s32.totalorder %s711, %s712
      %p724 = scmp.eq.s32.totalorder %s71, 1
      %p725 = por %p723, %p724
      %p727 = scmp.ne.s32.totalorder %s712, %s726
      %p728 = scmp.eq.s32.totalorder %s71, 0
      %p729 = por %p727, %p728
      %s731 = sadd.s32 %s730, 1
      %p734 = scmp.eq.s32.totalorder %s65, 1
      %p735 = scmp.ne.s32.totalorder %s730, %s732
      %p736 = scmp.eq.s32.totalorder %s65, 0
      %p737 = por %p735, %p736
      %p738 = scmp.ne.s32.totalorder %s730, %s732
      %p739 = scmp.eq.s32.totalorder %s70, 1
      %p740 = por %p738, %p739
      %p741 = scmp.ne.s32.totalorder %s732, %s733
      %p742 = scmp.eq.s32.totalorder %s70, 0
      %p743 = por %p741, %p742
      %p744 = scmp.ne.s32.totalorder %s732, %s733
      %p745 = scmp.eq.s32.totalorder %s71, 1
      %p746 = por %p744, %p745
      %p748 = scmp.ne.s32.totalorder %s733, %s747
      %p749 = scmp.eq.s32.totalorder %s71, 0
      %p750 = por %p748, %p749
      %s751 = ssub.s32 %s72, %s84
      %p752 = scmp.eq.s32.totalorder %s751, 0
      %s754 = sadd.s32 %s753, 1
      %s755 = scalar_select %p752, %s753, %s754
      %p758 = pneg %p752
      %p759 = scmp.eq.s32.totalorder %s65, 1
      %p760 = por %p758, %p759
      %p761 = scmp.ne.s32.totalorder %s753, %s756
      %p762 = scmp.eq.s32.totalorder %s65, 0
      %p763 = por %p761, %p762
      %p764 = scmp.ne.s32.totalorder %s753, %s756
      %p765 = scmp.eq.s32.totalorder %s70, 1
      %p766 = por %p764, %p765
      %p767 = scmp.ne.s32.totalorder %s756, %s757
      %p768 = scmp.eq.s32.totalorder %s70, 0
      %p769 = por %p767, %p768
      %p770 = scmp.ne.s32.totalorder %s756, %s757
      %p771 = scmp.eq.s32.totalorder %s71, 1
      %p772 = por %p770, %p771
      %p774 = scmp.ne.s32.totalorder %s757, %s773
      %p775 = scmp.eq.s32.totalorder %s71, 0
      %p776 = por %p774, %p775
      %p777 = scmp.le.s32.totalorder 1, %s65
      %p778 = scmp.lt.s32.totalorder %s65, 3
      %p779 = pnand %p777, %p778
      %p780 = pneg %p779
      // Predicated region
      $region9: #{decoder_forward.1} parent=5 // pred_check
        _
      $region10: #{decoder_forward.1} parent=5 // pred_check_branch
        %782 = sbr.rel (%p779) target = $region12
      $region11: #{decoder_forward.1} parent=5 // pred_region
        %s783 = ssub.s32 %s65, 1
        // Predicated region
        $region13: #{decoder_forward.1} parent=11 // pred_check
          %p784 = pneg %p103
        $region14: #{decoder_forward.1} parent=11 // pred_check_branch
          %786 = sbr.rel (%p784) target = $region16
        $region15: #{decoder_forward.1} parent=11 // pred_region
          %s787 = smul.u32 2, %s74
          %p788 = scmp.lt.s32.totalorder %s787, 1
          %s789 = scalar_select %p788, %s787, 1
          %s790 = smul.addr %s789, 8
          %s791 = scalar_lea.vmem %s0, %s790
          %s792 = smul.u32 2, %s74
        $region16: #{decoder_forward.1} parent=11 // pred_fallthru
          _
        // Predicated region
        $region17: #{decoder_forward.1} parent=11 // pred_check
          %p793 = pneg %p129
        $region18: #{decoder_forward.1} parent=11 // pred_check_branch
          %795 = sbr.rel (%p793) target = $region20
        $region19: #{decoder_forward.1} parent=11 // pred_region
          %s796 = smul.u32 2, %s74
          %798 = vsyncadd [#allocation4], 0
          %s799 = smul.addr %s796, 8
          %s800 = scalar_lea.hbm %s1, %s799
          %s801 = sshll.u32 %s800, 4
          %s802 = int_to_ptr.hbm [resolvable:$true] %s801
          %s803 = sshll.u32 [#allocation3], 4
          %s804 = int_to_ptr.vmem [resolvable:$true] %s803
          %809 = dma.hbm_to_vmem [thread:$0]  %s802, 256, %s804, [#allocation4], 128, 128, 8
        $region20: #{decoder_forward.1} parent=11 // pred_fallthru
          _
        // Predicated region
        $region21: #{decoder_forward.1} parent=11 // pred_check
          %p810 = pneg %p155
        $region22: #{decoder_forward.1} parent=11 // pred_check_branch
          %812 = sbr.rel (%p810) target = $region24
        $region23: #{decoder_forward.1} parent=11 // pred_region
          %s813 = smul.u32 2, %s74
          %815 = vsyncadd [#allocation7], 0
          %s816 = smul.addr %s813, 8
          %s817 = scalar_lea.hbm %s2, %s816
          %s818 = sshll.u32 %s817, 4
          %s819 = int_to_ptr.hbm [resolvable:$true] %s818
          %s820 = sshll.u32 [#allocation6], 4
          %s821 = int_to_ptr.vmem [resolvable:$true] %s820
          %826 = dma.hbm_to_vmem [thread:$0]  %s819, 256, %s821, [#allocation7], 128, 128, 8
        $region24: #{decoder_forward.1} parent=11 // pred_fallthru
          _
        // Predicated region
        $region25: #{decoder_forward.1} parent=11 // pred_check
          %p827 = pneg %p181
        $region26: #{decoder_forward.1} parent=11 // pred_check_branch
          %829 = sbr.rel (%p827) target = $region28
        $region27: #{decoder_forward.1} parent=11 // pred_region
          %s830 = smul.u32 2, %s74
          %832 = vsyncadd [#allocation7], 0
          %s833 = smul.addr %s830, 8
          %s834 = scalar_lea.hbm %s3, %s833
          %s835 = sshll.u32 %s834, 4
          %s836 = int_to_ptr.hbm [resolvable:$true] %s835
          %s837 = sshll.u32 [#allocation8], 4
          %s838 = int_to_ptr.vmem [resolvable:$true] %s837
          %843 = dma.hbm_to_vmem [thread:$0]  %s836, 256, %s838, [#allocation7], 128, 128, 8
        $region28: #{decoder_forward.1} parent=11 // pred_fallthru
          _
        // Predicated region
        $region29: #{decoder_forward.1} parent=11 // pred_check
          %p844 = pneg %p722
        $region30: #{decoder_forward.1} parent=11 // pred_check_branch
          %846 = sbr.rel (%p844) target = $region32
        $region31: #{decoder_forward.1} parent=11 // pred_region
          _
        $region32: #{decoder_forward.1} parent=11 // pred_fallthru
          _
        // Predicated region
        $region33: #{decoder_forward.1} parent=11 // pred_check
          %p847 = pneg %p743
        $region34: #{decoder_forward.1} parent=11 // pred_check_branch
          %849 = sbr.rel (%p847) target = $region36
        $region35: #{decoder_forward.1} parent=11 // pred_region
          %851 = vsyncadd [#allocation37], 0
          %s853 = sshll.u32 %s25, 4
          %s854 = int_to_ptr.hbm [resolvable:$true] %s853
          %s855 = sshll.u32 [#allocation38], 4
          %s856 = int_to_ptr.vmem [resolvable:$true] %s855
          %858 = dma.hbm_to_vmem [thread:$0]  %s854, 16, %s856, [#allocation37]
        $region36: #{decoder_forward.1} parent=11 // pred_fallthru
          _
      $region12: #{decoder_forward.1} parent=5 // pred_fallthru
        _
      %p859 = scmp.lt.s32.totalorder %s65, 2
      // Predicated region
      $region37: #{decoder_forward.1} parent=5 // pred_check
        %p860 = pneg %p859
      $region38: #{decoder_forward.1} parent=5 // pred_check_branch
        %862 = sbr.rel (%p860) target = $region40
      $region39: #{decoder_forward.1} parent=5 // pred_region
        // Predicated region
        $region41: #{decoder_forward.1} parent=39 // pred_check
          %p863 = pneg %p201
        $region42: #{decoder_forward.1} parent=39 // pred_check_branch
          %865 = sbr.rel (%p863) target = $region44
        $region43: #{decoder_forward.1} parent=39 // pred_region
          %s866 = sand.u32 %s65, 1
          %s867 = scalar_lea.sflag [#allocation10], %s866
          %s868 = sand.u32 %s191, 1
          %s869 = smul.addr %s868, 192
          %s870 = scalar_lea.vmem [#allocation9], %s869
          %872 = vsyncadd %s867, 0
          %s873 = smul.addr %s73, 48
          %s874 = smul.addr %s873, 4
          %s875 = scalar_lea.hbm %s4, %s874
          %s876 = sshll.u32 %s875, 4
          %s877 = int_to_ptr.hbm [resolvable:$true] %s876
          %s878 = sshll.u32 %s870, 4
          %s879 = int_to_ptr.vmem [resolvable:$true] %s878
          %884 = dma.hbm_to_vmem [thread:$0]  %s877, 3072, %s879, %s867, 192, 192, 12
        $region44: #{decoder_forward.1} parent=39 // pred_fallthru
          _
        // Predicated region
        $region45: #{decoder_forward.1} parent=39 // pred_check
          %p885 = pneg %p227
        $region46: #{decoder_forward.1} parent=39 // pred_check_branch
          %887 = sbr.rel (%p885) target = $region48
        $region47: #{decoder_forward.1} parent=39 // pred_region
          %s888 = sand.u32 %s65, 1
          %s889 = scalar_lea.sflag [#allocation10], %s888
          %s890 = sand.u32 %s217, 1
          %s891 = smul.addr %s890, 3
          %s892 = scalar_lea.vmem [#allocation11], %s891
          %894 = vsyncadd %s889, 0
          %s895 = smul.addr %s73, 3
          %s896 = scalar_lea.hbm %s5, %s895
          %s898 = sshll.u32 %s896, 4
          %s899 = int_to_ptr.hbm [resolvable:$true] %s898
          %s900 = sshll.u32 %s892, 4
          %s901 = int_to_ptr.vmem [resolvable:$true] %s900
          %903 = dma.hbm_to_vmem [thread:$0]  %s899, 48, %s901, %s889
        $region48: #{decoder_forward.1} parent=39 // pred_fallthru
          _
        // Predicated region
        $region49: #{decoder_forward.1} parent=39 // pred_check
          %p904 = pneg %p253
        $region50: #{decoder_forward.1} parent=39 // pred_check_branch
          %906 = sbr.rel (%p904) target = $region52
        $region51: #{decoder_forward.1} parent=39 // pred_region
          %s907 = sand.u32 %s65, 1
          %s908 = scalar_lea.sflag [#allocation13], %s907
          %s909 = sand.u32 %s243, 1
          %s910 = smul.addr %s909, 64
          %s911 = scalar_lea.vmem [#allocation12], %s910
          %913 = vsyncadd %s908, 0
          %s914 = smul.addr %s73, 16
          %s915 = smul.addr %s914, 4
          %s916 = scalar_lea.hbm %s6, %s915
          %s917 = sshll.u32 %s916, 4
          %s918 = int_to_ptr.hbm [resolvable:$true] %s917
          %s919 = sshll.u32 %s911, 4
          %s920 = int_to_ptr.vmem [resolvable:$true] %s919
          %925 = dma.hbm_to_vmem [thread:$0]  %s918, 1024, %s920, %s908, 64, 64, 4
        $region52: #{decoder_forward.1} parent=39 // pred_fallthru
          _
        // Predicated region
        $region53: #{decoder_forward.1} parent=39 // pred_check
          %p926 = pneg %p279
        $region54: #{decoder_forward.1} parent=39 // pred_check_branch
          %928 = sbr.rel (%p926) target = $region56
        $region55: #{decoder_forward.1} parent=39 // pred_region
          %s929 = sand.u32 %s65, 1
          %s930 = scalar_lea.sflag [#allocation13], %s929
          %s931 = sand.u32 %s269, 1
          %s932 = scalar_lea.vmem [#allocation14], %s931
          %934 = vsyncadd %s930, 0
          %s935 = scalar_lea.hbm %s7, %s73
          %s937 = sshll.u32 %s935, 4
          %s938 = int_to_ptr.hbm [resolvable:$true] %s937
          %s939 = sshll.u32 %s932, 4
          %s940 = int_to_ptr.vmem [resolvable:$true] %s939
          %942 = dma.hbm_to_vmem [thread:$0]  %s938, 16, %s940, %s930
        $region56: #{decoder_forward.1} parent=39 // pred_fallthru
          _
        // Predicated region
        $region57: #{decoder_forward.1} parent=39 // pred_check
          %p943 = pneg %p305
        $region58: #{decoder_forward.1} parent=39 // pred_check_branch
          %945 = sbr.rel (%p943) target = $region60
        $region59: #{decoder_forward.1} parent=39 // pred_region
          %s946 = sand.u32 %s65, 1
          %s947 = scalar_lea.sflag [#allocation16], %s946
          %s948 = sand.u32 %s295, 1
          %s949 = smul.addr %s948, 64
          %s950 = scalar_lea.vmem [#allocation15], %s949
          %952 = vsyncadd %s947, 0
          %s953 = smul.addr %s73, 16
          %s954 = smul.addr %s953, 4
          %s955 = scalar_lea.hbm %s8, %s954
          %s956 = sshll.u32 %s955, 4
          %s957 = int_to_ptr.hbm [resolvable:$true] %s956
          %s958 = sshll.u32 %s950, 4
          %s959 = int_to_ptr.vmem [resolvable:$true] %s958
          %964 = dma.hbm_to_vmem [thread:$0]  %s957, 1024, %s959, %s947, 64, 64, 4
        $region60: #{decoder_forward.1} parent=39 // pred_fallthru
          _
        // Predicated region
        $region61: #{decoder_forward.1} parent=39 // pred_check
          %p965 = pneg %p331
        $region62: #{decoder_forward.1} parent=39 // pred_check_branch
          %967 = sbr.rel (%p965) target = $region64
        $region63: #{decoder_forward.1} parent=39 // pred_region
          %s968 = sand.u32 %s65, 1
          %s969 = scalar_lea.sflag [#allocation16], %s968
          %s970 = sand.u32 %s321, 1
          %s971 = scalar_lea.vmem [#allocation17], %s970
          %973 = vsyncadd %s969, 0
          %s974 = scalar_lea.hbm %s9, %s73
          %s976 = sshll.u32 %s974, 4
          %s977 = int_to_ptr.hbm [resolvable:$true] %s976
          %s978 = sshll.u32 %s971, 4
          %s979 = int_to_ptr.vmem [resolvable:$true] %s978
          %981 = dma.hbm_to_vmem [thread:$0]  %s977, 16, %s979, %s969
        $region64: #{decoder_forward.1} parent=39 // pred_fallthru
          _
        // Predicated region
        $region65: #{decoder_forward.1} parent=39 // pred_check
          %p982 = pneg %p357
        $region66: #{decoder_forward.1} parent=39 // pred_check_branch
          %984 = sbr.rel (%p982) target = $region68
        $region67: #{decoder_forward.1} parent=39 // pred_region
          %s985 = sand.u32 %s65, 1
          %s986 = scalar_lea.sflag [#allocation19], %s985
          %s987 = sand.u32 %s347, 1
          %s988 = smul.addr %s987, 128
          %s989 = scalar_lea.vmem [#allocation18], %s988
          %991 = vsyncadd %s986, 0
          %s992 = smul.addr %s73, 32
          %s993 = smul.addr %s992, 4
          %s994 = scalar_lea.hbm %s10, %s993
          %s995 = sshll.u32 %s994, 4
          %s996 = int_to_ptr.hbm [resolvable:$true] %s995
          %s997 = sshll.u32 %s989, 4
          %s998 = int_to_ptr.vmem [resolvable:$true] %s997
          %1003 = dma.hbm_to_vmem [thread:$0]  %s996, 2048, %s998, %s986, 128, 128, 8
        $region68: #{decoder_forward.1} parent=39 // pred_fallthru
          _
        // Predicated region
        $region69: #{decoder_forward.1} parent=39 // pred_check
          %p1004 = pneg %p383
        $region70: #{decoder_forward.1} parent=39 // pred_check_branch
          %1006 = sbr.rel (%p1004) target = $region72
        $region71: #{decoder_forward.1} parent=39 // pred_region
          %s1007 = sand.u32 %s65, 1
          %s1008 = scalar_lea.sflag [#allocation19], %s1007
          %s1009 = sand.u32 %s373, 1
          %s1010 = smul.addr %s1009, 2
          %s1011 = scalar_lea.vmem [#allocation20], %s1010
          %1013 = vsyncadd %s1008, 0
          %s1014 = smul.addr %s73, 2
          %s1015 = scalar_lea.hbm %s11, %s1014
          %s1017 = sshll.u32 %s1015, 4
          %s1018 = int_to_ptr.hbm [resolvable:$true] %s1017
          %s1019 = sshll.u32 %s1011, 4
          %s1020 = int_to_ptr.vmem [resolvable:$true] %s1019
          %1022 = dma.hbm_to_vmem [thread:$0]  %s1018, 32, %s1020, %s1008
        $region72: #{decoder_forward.1} parent=39 // pred_fallthru
          _
        // Predicated region
        $region73: #{decoder_forward.1} parent=39 // pred_check
          %p1023 = pneg %p409
        $region74: #{decoder_forward.1} parent=39 // pred_check_branch
          %1025 = sbr.rel (%p1023) target = $region76
        $region75: #{decoder_forward.1} parent=39 // pred_region
          %s1026 = sand.u32 %s65, 1
          %s1027 = scalar_lea.sflag [#allocation22], %s1026
          %s1028 = sand.u32 %s399, 1
          %s1029 = smul.addr %s1028, 64
          %s1030 = scalar_lea.vmem [#allocation21], %s1029
          %1032 = vsyncadd %s1027, 0
          %s1033 = smul.addr %s73, 16
          %s1034 = smul.addr %s1033, 4
          %s1035 = scalar_lea.hbm %s12, %s1034
          %s1036 = sshll.u32 %s1035, 4
          %s1037 = int_to_ptr.hbm [resolvable:$true] %s1036
          %s1038 = sshll.u32 %s1030, 4
          %s1039 = int_to_ptr.vmem [resolvable:$true] %s1038
          %1044 = dma.hbm_to_vmem [thread:$0]  %s1037, 1024, %s1039, %s1027, 64, 64, 4
        $region76: #{decoder_forward.1} parent=39 // pred_fallthru
          _
        // Predicated region
        $region77: #{decoder_forward.1} parent=39 // pred_check
          %p1045 = pneg %p435
        $region78: #{decoder_forward.1} parent=39 // pred_check_branch
          %1047 = sbr.rel (%p1045) target = $region80
        $region79: #{decoder_forward.1} parent=39 // pred_region
          %s1048 = sand.u32 %s65, 1
          %s1049 = scalar_lea.sflag [#allocation22], %s1048
          %s1050 = sand.u32 %s425, 1
          %s1051 = scalar_lea.vmem [#allocation23], %s1050
          %1053 = vsyncadd %s1049, 0
          %s1054 = scalar_lea.hbm %s13, %s73
          %s1056 = sshll.u32 %s1054, 4
          %s1057 = int_to_ptr.hbm [resolvable:$true] %s1056
          %s1058 = sshll.u32 %s1051, 4
          %s1059 = int_to_ptr.vmem [resolvable:$true] %s1058
          %1061 = dma.hbm_to_vmem [thread:$0]  %s1057, 16, %s1059, %s1049
        $region80: #{decoder_forward.1} parent=39 // pred_fallthru
          _
        // Predicated region
        $region81: #{decoder_forward.1} parent=39 // pred_check
          %p1062 = pneg %p461
        $region82: #{decoder_forward.1} parent=39 // pred_check_branch
          %1064 = sbr.rel (%p1062) target = $region84
        $region83: #{decoder_forward.1} parent=39 // pred_region
          %s1065 = sand.u32 %s65, 1
          %s1066 = scalar_lea.sflag [#allocation25], %s1065
          %s1067 = sand.u32 %s451, 1
          %s1068 = smul.addr %s1067, 128
          %s1069 = scalar_lea.vmem [#allocation24], %s1068
          %1071 = vsyncadd %s1066, 0
          %s1072 = smul.addr %s73, 32
          %s1073 = smul.addr %s1072, 4
          %s1074 = scalar_lea.hbm %s14, %s1073
          %s1075 = sshll.u32 %s1074, 4
          %s1076 = int_to_ptr.hbm [resolvable:$true] %s1075
          %s1077 = sshll.u32 %s1069, 4
          %s1078 = int_to_ptr.vmem [resolvable:$true] %s1077
          %1083 = dma.hbm_to_vmem [thread:$0]  %s1076, 2048, %s1078, %s1066, 128, 128, 8
        $region84: #{decoder_forward.1} parent=39 // pred_fallthru
          _
        // Predicated region
        $region85: #{decoder_forward.1} parent=39 // pred_check
          %p1084 = pneg %p487
        $region86: #{decoder_forward.1} parent=39 // pred_check_branch
          %1086 = sbr.rel (%p1084) target = $region88
        $region87: #{decoder_forward.1} parent=39 // pred_region
          %p1087 = scmp.lt.s32.totalorder %s73, 1
          %s1088 = scalar_select %p1087, %s73, 1
          %s1089 = smul.addr %s1088, 2
          %s1090 = scalar_lea.vmem %s15, %s1089
        $region88: #{decoder_forward.1} parent=39 // pred_fallthru
          _
        // Predicated region
        $region89: #{decoder_forward.1} parent=39 // pred_check
          %p1091 = pneg %p513
        $region90: #{decoder_forward.1} parent=39 // pred_check_branch
          %1093 = sbr.rel (%p1091) target = $region92
        $region91: #{decoder_forward.1} parent=39 // pred_region
          %s1094 = sand.u32 %s65, 1
          %s1095 = scalar_lea.sflag [#allocation25], %s1094
          %s1096 = sand.u32 %s503, 1
          %s1097 = smul.addr %s1096, 128
          %s1098 = scalar_lea.vmem [#allocation26], %s1097
          %1100 = vsyncadd %s1095, 0
          %s1101 = smul.addr %s73, 32
          %s1102 = smul.addr %s1101, 4
          %s1103 = scalar_lea.hbm %s16, %s1102
          %s1104 = sshll.u32 %s1103, 4
          %s1105 = int_to_ptr.hbm [resolvable:$true] %s1104
          %s1106 = sshll.u32 %s1098, 4
          %s1107 = int_to_ptr.vmem [resolvable:$true] %s1106
          %1112 = dma.hbm_to_vmem [thread:$0]  %s1105, 2048, %s1107, %s1095, 64, 64, 4
        $region92: #{decoder_forward.1} parent=39 // pred_fallthru
          _
        // Predicated region
        $region93: #{decoder_forward.1} parent=39 // pred_check
          %p1113 = pneg %p539
        $region94: #{decoder_forward.1} parent=39 // pred_check_branch
          %1115 = sbr.rel (%p1113) target = $region96
        $region95: #{decoder_forward.1} parent=39 // pred_region
          %s1116 = sand.u32 %s65, 1
          %s1117 = scalar_lea.sflag [#allocation28], %s1116
          %s1118 = sand.u32 %s529, 1
          %s1119 = scalar_lea.vmem [#allocation27], %s1118
          %1121 = vsyncadd %s1117, 0
          %s1122 = scalar_lea.hbm %s17, %s73
          %s1124 = sshll.u32 %s1122, 4
          %s1125 = int_to_ptr.hbm [resolvable:$true] %s1124
          %s1126 = sshll.u32 %s1119, 4
          %s1127 = int_to_ptr.vmem [resolvable:$true] %s1126
          %1129 = dma.hbm_to_vmem [thread:$0]  %s1125, 16, %s1127, %s1117
        $region96: #{decoder_forward.1} parent=39 // pred_fallthru
          _
        // Predicated region
        $region97: #{decoder_forward.1} parent=39 // pred_check
          %p1130 = pneg %p565
        $region98: #{decoder_forward.1} parent=39 // pred_check_branch
          %1132 = sbr.rel (%p1130) target = $region100
        $region99: #{decoder_forward.1} parent=39 // pred_region
          %s1133 = sand.u32 %s65, 1
          %s1134 = scalar_lea.sflag [#allocation28], %s1133
          %s1135 = sand.u32 %s555, 1
          %s1136 = scalar_lea.vmem [#allocation29], %s1135
          %1138 = vsyncadd %s1134, 0
          %s1139 = scalar_lea.hbm %s18, %s73
          %s1141 = sshll.u32 %s1139, 4
          %s1142 = int_to_ptr.hbm [resolvable:$true] %s1141
          %s1143 = sshll.u32 %s1136, 4
          %s1144 = int_to_ptr.vmem [resolvable:$true] %s1143
          %1146 = dma.hbm_to_vmem [thread:$0]  %s1142, 16, %s1144, %s1134
        $region100: #{decoder_forward.1} parent=39 // pred_fallthru
          _
        // Predicated region
        $region101: #{decoder_forward.1} parent=39 // pred_check
          %p1147 = pneg %p591
        $region102: #{decoder_forward.1} parent=39 // pred_check_branch
          %1149 = sbr.rel (%p1147) target = $region104
        $region103: #{decoder_forward.1} parent=39 // pred_region
          %s1150 = sand.u32 %s65, 1
          %s1151 = scalar_lea.sflag [#allocation31], %s1150
          %s1152 = sand.u32 %s581, 1
          %s1153 = scalar_lea.vmem [#allocation30], %s1152
          %1155 = vsyncadd %s1151, 0
          %s1156 = scalar_lea.hbm %s19, %s73
          %s1158 = sshll.u32 %s1156, 4
          %s1159 = int_to_ptr.hbm [resolvable:$true] %s1158
          %s1160 = sshll.u32 %s1153, 4
          %s1161 = int_to_ptr.vmem [resolvable:$true] %s1160
          %1163 = dma.hbm_to_vmem [thread:$0]  %s1159, 16, %s1161, %s1151
        $region104: #{decoder_forward.1} parent=39 // pred_fallthru
          _
        // Predicated region
        $region105: #{decoder_forward.1} parent=39 // pred_check
          %p1164 = pneg %p617
        $region106: #{decoder_forward.1} parent=39 // pred_check_branch
          %1166 = sbr.rel (%p1164) target = $region108
        $region107: #{decoder_forward.1} parent=39 // pred_region
          %s1167 = sand.u32 %s65, 1
          %s1168 = scalar_lea.sflag [#allocation31], %s1167
          %s1169 = sand.u32 %s607, 1
          %s1170 = scalar_lea.vmem [#allocation32], %s1169
          %1172 = vsyncadd %s1168, 0
          %s1173 = scalar_lea.hbm %s20, %s73
          %s1175 = sshll.u32 %s1173, 4
          %s1176 = int_to_ptr.hbm [resolvable:$true] %s1175
          %s1177 = sshll.u32 %s1170, 4
          %s1178 = int_to_ptr.vmem [resolvable:$true] %s1177
          %1180 = dma.hbm_to_vmem [thread:$0]  %s1176, 16, %s1178, %s1168
        $region108: #{decoder_forward.1} parent=39 // pred_fallthru
          _
        // Predicated region
        $region109: #{decoder_forward.1} parent=39 // pred_check
          %p1181 = pneg %p643
        $region110: #{decoder_forward.1} parent=39 // pred_check_branch
          %1183 = sbr.rel (%p1181) target = $region112
        $region111: #{decoder_forward.1} parent=39 // pred_region
          %s1184 = sand.u32 %s65, 1
          %s1185 = scalar_lea.sflag [#allocation34], %s1184
          %s1186 = sand.u32 %s633, 1
          %s1187 = scalar_lea.vmem [#allocation33], %s1186
          %1189 = vsyncadd %s1185, 0
          %s1190 = scalar_lea.hbm %s21, %s73
          %s1192 = sshll.u32 %s1190, 4
          %s1193 = int_to_ptr.hbm [resolvable:$true] %s1192
          %s1194 = sshll.u32 %s1187, 4
          %s1195 = int_to_ptr.vmem [resolvable:$true] %s1194
          %1197 = dma.hbm_to_vmem [thread:$0]  %s1193, 16, %s1195, %s1185
        $region112: #{decoder_forward.1} parent=39 // pred_fallthru
          _
        // Predicated region
        $region113: #{decoder_forward.1} parent=39 // pred_check
          %p1198 = pneg %p669
        $region114: #{decoder_forward.1} parent=39 // pred_check_branch
          %1200 = sbr.rel (%p1198) target = $region116
        $region115: #{decoder_forward.1} parent=39 // pred_region
          %s1201 = sand.u32 %s65, 1
          %s1202 = scalar_lea.sflag [#allocation34], %s1201
          %s1203 = sand.u32 %s659, 1
          %s1204 = scalar_lea.vmem [#allocation35], %s1203
          %1206 = vsyncadd %s1202, 0
          %s1207 = scalar_lea.hbm %s22, %s73
          %s1209 = sshll.u32 %s1207, 4
          %s1210 = int_to_ptr.hbm [resolvable:$true] %s1209
          %s1211 = sshll.u32 %s1204, 4
          %s1212 = int_to_ptr.vmem [resolvable:$true] %s1211
          %1214 = dma.hbm_to_vmem [thread:$0]  %s1210, 16, %s1212, %s1202
        $region116: #{decoder_forward.1} parent=39 // pred_fallthru
          _
        // Predicated region
        $region117: #{decoder_forward.1} parent=39 // pred_check
          %p1215 = pneg %p695
        $region118: #{decoder_forward.1} parent=39 // pred_check_branch
          %1217 = sbr.rel (%p1215) target = $region120
        $region119: #{decoder_forward.1} parent=39 // pred_region
          %s1218 = sand.u32 %s65, 1
          %s1219 = scalar_lea.sflag [#allocation37], %s1218
          %s1220 = sand.u32 %s685, 1
          %s1221 = scalar_lea.vmem [#allocation36], %s1220
          %1223 = vsyncadd %s1219, 0
          %s1224 = scalar_lea.hbm %s23, %s73
          %s1226 = sshll.u32 %s1224, 4
          %s1227 = int_to_ptr.hbm [resolvable:$true] %s1226
          %s1228 = sshll.u32 %s1221, 4
          %s1229 = int_to_ptr.vmem [resolvable:$true] %s1228
          %1231 = dma.hbm_to_vmem [thread:$0]  %s1227, 16, %s1229, %s1219
        $region120: #{decoder_forward.1} parent=39 // pred_fallthru
          _
      $region40: #{decoder_forward.1} parent=5 // pred_fallthru
        _
      %p1232 = scmp.le.s32.totalorder 1, %s65
      %p1233 = scmp.lt.s32.totalorder %s65, 3
      %p1234 = pnand %p1232, %p1233
      %p1235 = pneg %p1234
      // Predicated region
      $region121: #{decoder_forward.1} parent=5 // pred_check
        _
      $region122: #{decoder_forward.1} parent=5 // pred_check_branch
        %1237 = sbr.rel (%p1234) target = $region124
      $region123: #{decoder_forward.1} parent=5 // pred_region
        %s1238 = ssub.s32 %s65, 1
        // Predicated region
        $region125: #{decoder_forward.1} parent=123 // pred_check
          %p1239 = pneg %p129
        $region126: #{decoder_forward.1} parent=123 // pred_check_branch
          %1241 = sbr.rel (%p1239) target = $region128
        $region127: #{decoder_forward.1} parent=123 // pred_region
          %1243 = dma.done [#allocation4], 256
        $region128: #{decoder_forward.1} parent=123 // pred_fallthru
          _
        // Predicated region
        $region129: #{decoder_forward.1} parent=123 // pred_check
          %p1244 = pneg %p155
        $region130: #{decoder_forward.1} parent=123 // pred_check_branch
          %1246 = sbr.rel (%p1244) target = $region132
        $region131: #{decoder_forward.1} parent=123 // pred_region
          %1248 = dma.done [#allocation7], 256
        $region132: #{decoder_forward.1} parent=123 // pred_fallthru
          _
        // Predicated region
        $region133: #{decoder_forward.1} parent=123 // pred_check
          %p1249 = pneg %p181
        $region134: #{decoder_forward.1} parent=123 // pred_check_branch
          %1251 = sbr.rel (%p1249) target = $region136
        $region135: #{decoder_forward.1} parent=123 // pred_region
          %1253 = dma.done [#allocation7], 256
        $region136: #{decoder_forward.1} parent=123 // pred_fallthru
          _
        %s1254 = sand.u32 %s70, 1
        %s1255 = scalar_lea.sflag [#allocation10], %s1254
        %s1256 = sand.u32 %s194, 1
        %s1257 = smul.addr %s1256, 192
        %s1258 = scalar_lea.vmem [#allocation9], %s1257
        // Predicated region
        $region137: #{decoder_forward.1} parent=123 // pred_check
          %p1259 = pneg %p207
        $region138: #{decoder_forward.1} parent=123 // pred_check_branch
          %1261 = sbr.rel (%p1259) target = $region140
        $region139: #{decoder_forward.1} parent=123 // pred_region
          %1263 = dma.done %s1255, 3072
        $region140: #{decoder_forward.1} parent=123 // pred_fallthru
          _
        %s1264 = sand.u32 %s70, 1
        %s1265 = scalar_lea.sflag [#allocation10], %s1264
        %s1266 = sand.u32 %s220, 1
        %s1267 = smul.addr %s1266, 3
        %s1268 = scalar_lea.vmem [#allocation11], %s1267
        // Predicated region
        $region141: #{decoder_forward.1} parent=123 // pred_check
          %p1269 = pneg %p233
        $region142: #{decoder_forward.1} parent=123 // pred_check_branch
          %1271 = sbr.rel (%p1269) target = $region144
        $region143: #{decoder_forward.1} parent=123 // pred_region
          %1273 = dma.done %s1265, 48
        $region144: #{decoder_forward.1} parent=123 // pred_fallthru
          _
        %s1274 = sand.u32 %s70, 1
        %s1275 = scalar_lea.sflag [#allocation13], %s1274
        %s1276 = sand.u32 %s246, 1
        %s1277 = smul.addr %s1276, 64
        %s1278 = scalar_lea.vmem [#allocation12], %s1277
        // Predicated region
        $region145: #{decoder_forward.1} parent=123 // pred_check
          %p1279 = pneg %p259
        $region146: #{decoder_forward.1} parent=123 // pred_check_branch
          %1281 = sbr.rel (%p1279) target = $region148
        $region147: #{decoder_forward.1} parent=123 // pred_region
          %1283 = dma.done %s1275, 1024
        $region148: #{decoder_forward.1} parent=123 // pred_fallthru
          _
        %s1284 = sand.u32 %s70, 1
        %s1285 = scalar_lea.sflag [#allocation13], %s1284
        %s1286 = sand.u32 %s272, 1
        %s1287 = scalar_lea.vmem [#allocation14], %s1286
        // Predicated region
        $region149: #{decoder_forward.1} parent=123 // pred_check
          %p1288 = pneg %p285
        $region150: #{decoder_forward.1} parent=123 // pred_check_branch
          %1290 = sbr.rel (%p1288) target = $region152
        $region151: #{decoder_forward.1} parent=123 // pred_region
          %1292 = dma.done %s1285, 16
        $region152: #{decoder_forward.1} parent=123 // pred_fallthru
          _
        %s1293 = sand.u32 %s70, 1
        %s1294 = scalar_lea.sflag [#allocation16], %s1293
        %s1295 = sand.u32 %s298, 1
        %s1296 = smul.addr %s1295, 64
        %s1297 = scalar_lea.vmem [#allocation15], %s1296
        // Predicated region
        $region153: #{decoder_forward.1} parent=123 // pred_check
          %p1298 = pneg %p311
        $region154: #{decoder_forward.1} parent=123 // pred_check_branch
          %1300 = sbr.rel (%p1298) target = $region156
        $region155: #{decoder_forward.1} parent=123 // pred_region
          %1302 = dma.done %s1294, 1024
        $region156: #{decoder_forward.1} parent=123 // pred_fallthru
          _
        %s1303 = sand.u32 %s70, 1
        %s1304 = scalar_lea.sflag [#allocation16], %s1303
        %s1305 = sand.u32 %s324, 1
        %s1306 = scalar_lea.vmem [#allocation17], %s1305
        // Predicated region
        $region157: #{decoder_forward.1} parent=123 // pred_check
          %p1307 = pneg %p337
        $region158: #{decoder_forward.1} parent=123 // pred_check_branch
          %1309 = sbr.rel (%p1307) target = $region160
        $region159: #{decoder_forward.1} parent=123 // pred_region
          %1311 = dma.done %s1304, 16
        $region160: #{decoder_forward.1} parent=123 // pred_fallthru
          _
        %s1312 = sand.u32 %s70, 1
        %s1313 = scalar_lea.sflag [#allocation19], %s1312
        %s1314 = sand.u32 %s350, 1
        %s1315 = smul.addr %s1314, 128
        %s1316 = scalar_lea.vmem [#allocation18], %s1315
        // Predicated region
        $region161: #{decoder_forward.1} parent=123 // pred_check
          %p1317 = pneg %p363
        $region162: #{decoder_forward.1} parent=123 // pred_check_branch
          %1319 = sbr.rel (%p1317) target = $region164
        $region163: #{decoder_forward.1} parent=123 // pred_region
          %1321 = dma.done %s1313, 2048
        $region164: #{decoder_forward.1} parent=123 // pred_fallthru
          _
        %s1322 = sand.u32 %s70, 1
        %s1323 = scalar_lea.sflag [#allocation19], %s1322
        %s1324 = sand.u32 %s376, 1
        %s1325 = smul.addr %s1324, 2
        %s1326 = scalar_lea.vmem [#allocation20], %s1325
        // Predicated region
        $region165: #{decoder_forward.1} parent=123 // pred_check
          %p1327 = pneg %p389
        $region166: #{decoder_forward.1} parent=123 // pred_check_branch
          %1329 = sbr.rel (%p1327) target = $region168
        $region167: #{decoder_forward.1} parent=123 // pred_region
          %1331 = dma.done %s1323, 32
        $region168: #{decoder_forward.1} parent=123 // pred_fallthru
          _
        %s1332 = sand.u32 %s70, 1
        %s1333 = scalar_lea.sflag [#allocation22], %s1332
        %s1334 = sand.u32 %s402, 1
        %s1335 = smul.addr %s1334, 64
        %s1336 = scalar_lea.vmem [#allocation21], %s1335
        // Predicated region
        $region169: #{decoder_forward.1} parent=123 // pred_check
          %p1337 = pneg %p415
        $region170: #{decoder_forward.1} parent=123 // pred_check_branch
          %1339 = sbr.rel (%p1337) target = $region172
        $region171: #{decoder_forward.1} parent=123 // pred_region
          %1341 = dma.done %s1333, 1024
        $region172: #{decoder_forward.1} parent=123 // pred_fallthru
          _
        %s1342 = sand.u32 %s70, 1
        %s1343 = scalar_lea.sflag [#allocation22], %s1342
        %s1344 = sand.u32 %s428, 1
        %s1345 = scalar_lea.vmem [#allocation23], %s1344
        // Predicated region
        $region173: #{decoder_forward.1} parent=123 // pred_check
          %p1346 = pneg %p441
        $region174: #{decoder_forward.1} parent=123 // pred_check_branch
          %1348 = sbr.rel (%p1346) target = $region176
        $region175: #{decoder_forward.1} parent=123 // pred_region
          %1350 = dma.done %s1343, 16
        $region176: #{decoder_forward.1} parent=123 // pred_fallthru
          _
        %s1351 = sand.u32 %s70, 1
        %s1352 = scalar_lea.sflag [#allocation25], %s1351
        %s1353 = sand.u32 %s454, 1
        %s1354 = smul.addr %s1353, 128
        %s1355 = scalar_lea.vmem [#allocation24], %s1354
        // Predicated region
        $region177: #{decoder_forward.1} parent=123 // pred_check
          %p1356 = pneg %p467
        $region178: #{decoder_forward.1} parent=123 // pred_check_branch
          %1358 = sbr.rel (%p1356) target = $region180
        $region179: #{decoder_forward.1} parent=123 // pred_region
          %1360 = dma.done %s1352, 2048
        $region180: #{decoder_forward.1} parent=123 // pred_fallthru
          _
        %s1361 = sand.u32 %s70, 1
        %s1362 = scalar_lea.sflag [#allocation25], %s1361
        %s1363 = sand.u32 %s506, 1
        %s1364 = smul.addr %s1363, 128
        %s1365 = scalar_lea.vmem [#allocation26], %s1364
        // Predicated region
        $region181: #{decoder_forward.1} parent=123 // pred_check
          %p1366 = pneg %p519
        $region182: #{decoder_forward.1} parent=123 // pred_check_branch
          %1368 = sbr.rel (%p1366) target = $region184
        $region183: #{decoder_forward.1} parent=123 // pred_region
          %1370 = dma.done %s1362, 2048
        $region184: #{decoder_forward.1} parent=123 // pred_fallthru
          _
        %s1371 = sand.u32 %s70, 1
        %s1372 = scalar_lea.sflag [#allocation28], %s1371
        %s1373 = sand.u32 %s532, 1
        %s1374 = scalar_lea.vmem [#allocation27], %s1373
        // Predicated region
        $region185: #{decoder_forward.1} parent=123 // pred_check
          %p1375 = pneg %p545
        $region186: #{decoder_forward.1} parent=123 // pred_check_branch
          %1377 = sbr.rel (%p1375) target = $region188
        $region187: #{decoder_forward.1} parent=123 // pred_region
          %1379 = dma.done %s1372, 16
        $region188: #{decoder_forward.1} parent=123 // pred_fallthru
          _
        %s1380 = sand.u32 %s70, 1
        %s1381 = scalar_lea.sflag [#allocation28], %s1380
        %s1382 = sand.u32 %s558, 1
        %s1383 = scalar_lea.vmem [#allocation29], %s1382
        // Predicated region
        $region189: #{decoder_forward.1} parent=123 // pred_check
          %p1384 = pneg %p571
        $region190: #{decoder_forward.1} parent=123 // pred_check_branch
          %1386 = sbr.rel (%p1384) target = $region192
        $region191: #{decoder_forward.1} parent=123 // pred_region
          %1388 = dma.done %s1381, 16
        $region192: #{decoder_forward.1} parent=123 // pred_fallthru
          _
        %s1389 = sand.u32 %s70, 1
        %s1390 = scalar_lea.sflag [#allocation31], %s1389
        %s1391 = sand.u32 %s584, 1
        %s1392 = scalar_lea.vmem [#allocation30], %s1391
        // Predicated region
        $region193: #{decoder_forward.1} parent=123 // pred_check
          %p1393 = pneg %p597
        $region194: #{decoder_forward.1} parent=123 // pred_check_branch
          %1395 = sbr.rel (%p1393) target = $region196
        $region195: #{decoder_forward.1} parent=123 // pred_region
          %1397 = dma.done %s1390, 16
        $region196: #{decoder_forward.1} parent=123 // pred_fallthru
          _
        %s1398 = sand.u32 %s70, 1
        %s1399 = scalar_lea.sflag [#allocation31], %s1398
        %s1400 = sand.u32 %s610, 1
        %s1401 = scalar_lea.vmem [#allocation32], %s1400
        // Predicated region
        $region197: #{decoder_forward.1} parent=123 // pred_check
          %p1402 = pneg %p623
        $region198: #{decoder_forward.1} parent=123 // pred_check_branch
          %1404 = sbr.rel (%p1402) target = $region200
        $region199: #{decoder_forward.1} parent=123 // pred_region
          %1406 = dma.done %s1399, 16
        $region200: #{decoder_forward.1} parent=123 // pred_fallthru
          _
        %s1407 = sand.u32 %s70, 1
        %s1408 = scalar_lea.sflag [#allocation34], %s1407
        %s1409 = sand.u32 %s636, 1
        %s1410 = scalar_lea.vmem [#allocation33], %s1409
        // Predicated region
        $region201: #{decoder_forward.1} parent=123 // pred_check
          %p1411 = pneg %p649
        $region202: #{decoder_forward.1} parent=123 // pred_check_branch
          %1413 = sbr.rel (%p1411) target = $region204
        $region203: #{decoder_forward.1} parent=123 // pred_region
          %1415 = dma.done %s1408, 16
        $region204: #{decoder_forward.1} parent=123 // pred_fallthru
          _
        %s1416 = sand.u32 %s70, 1
        %s1417 = scalar_lea.sflag [#allocation34], %s1416
        %s1418 = sand.u32 %s662, 1
        %s1419 = scalar_lea.vmem [#allocation35], %s1418
        // Predicated region
        $region205: #{decoder_forward.1} parent=123 // pred_check
          %p1420 = pneg %p675
        $region206: #{decoder_forward.1} parent=123 // pred_check_branch
          %1422 = sbr.rel (%p1420) target = $region208
        $region207: #{decoder_forward.1} parent=123 // pred_region
          %1424 = dma.done %s1417, 16
        $region208: #{decoder_forward.1} parent=123 // pred_fallthru
          _
        %s1425 = sand.u32 %s70, 1
        %s1426 = scalar_lea.sflag [#allocation37], %s1425
        %s1427 = sand.u32 %s688, 1
        %s1428 = scalar_lea.vmem [#allocation36], %s1427
        // Predicated region
        $region209: #{decoder_forward.1} parent=123 // pred_check
          %p1429 = pneg %p701
        $region210: #{decoder_forward.1} parent=123 // pred_check_branch
          %1431 = sbr.rel (%p1429) target = $region212
        $region211: #{decoder_forward.1} parent=123 // pred_region
          %1433 = dma.done %s1426, 16
        $region212: #{decoder_forward.1} parent=123 // pred_fallthru
          _
        // Predicated region
        $region213: #{decoder_forward.1} parent=123 // pred_check
          %p1434 = pneg %p743
        $region214: #{decoder_forward.1} parent=123 // pred_check_branch
          %1436 = sbr.rel (%p1434) target = $region216
        $region215: #{decoder_forward.1} parent=123 // pred_region
          %1438 = dma.done [#allocation37], 16
        $region216: #{decoder_forward.1} parent=123 // pred_fallthru
          _
        %s1439 = smul.u32 2, %s74
        %p1440 = scmp.lt.s32.totalorder %s1439, 1
        %s1441 = scalar_select %p1440, %s1439, 1
        %s1442 = smul.addr %s1441, 8
        %s1443 = scalar_lea.vmem %s0, %s1442
        %p1444 = pneg %p103
        %p1445 = pneg %p100
        %p1446 = pneg %p129
        %p1447 = pneg %p126
        %p1448 = pneg %p155
        %p1449 = pneg %p152
        %p1450 = pneg %p181
        %p1451 = pneg %p178
        %s1452 = sand.u32 %s70, 1
        %s1453 = scalar_lea.sflag [#allocation10], %s1452
        %s1454 = sand.u32 %s194, 1
        %s1455 = smul.addr %s1454, 192
        %s1456 = scalar_lea.vmem [#allocation9], %s1455
        %p1457 = pneg %p207
        %p1458 = pneg %p204
        %s1459 = sand.u32 %s70, 1
        %s1460 = scalar_lea.sflag [#allocation10], %s1459
        %s1461 = sand.u32 %s220, 1
        %s1462 = smul.addr %s1461, 3
        %s1463 = scalar_lea.vmem [#allocation11], %s1462
        %p1464 = pneg %p233
        %p1465 = pneg %p230
        %s1466 = sand.u32 %s70, 1
        %s1467 = scalar_lea.sflag [#allocation13], %s1466
        %s1468 = sand.u32 %s246, 1
        %s1469 = smul.addr %s1468, 64
        %s1470 = scalar_lea.vmem [#allocation12], %s1469
        %p1471 = pneg %p259
        %p1472 = pneg %p256
        %s1473 = sand.u32 %s70, 1
        %s1474 = scalar_lea.sflag [#allocation13], %s1473
        %s1475 = sand.u32 %s272, 1
        %s1476 = scalar_lea.vmem [#allocation14], %s1475
        %p1477 = pneg %p285
        %p1478 = pneg %p282
        %s1479 = sand.u32 %s70, 1
        %s1480 = scalar_lea.sflag [#allocation16], %s1479
        %s1481 = sand.u32 %s298, 1
        %s1482 = smul.addr %s1481, 64
        %s1483 = scalar_lea.vmem [#allocation15], %s1482
        %p1484 = pneg %p311
        %p1485 = pneg %p308
        %s1486 = sand.u32 %s70, 1
        %s1487 = scalar_lea.sflag [#allocation16], %s1486
        %s1488 = sand.u32 %s324, 1
        %s1489 = scalar_lea.vmem [#allocation17], %s1488
        %p1490 = pneg %p337
        %p1491 = pneg %p334
        %s1492 = sand.u32 %s70, 1
        %s1493 = scalar_lea.sflag [#allocation19], %s1492
        %s1494 = sand.u32 %s350, 1
        %s1495 = smul.addr %s1494, 128
        %s1496 = scalar_lea.vmem [#allocation18], %s1495
        %p1497 = pneg %p363
        %p1498 = pneg %p360
        %s1499 = sand.u32 %s70, 1
        %s1500 = scalar_lea.sflag [#allocation19], %s1499
        %s1501 = sand.u32 %s376, 1
        %s1502 = smul.addr %s1501, 2
        %s1503 = scalar_lea.vmem [#allocation20], %s1502
        %p1504 = pneg %p389
        %p1505 = pneg %p386
        %s1506 = sand.u32 %s70, 1
        %s1507 = scalar_lea.sflag [#allocation22], %s1506
        %s1508 = sand.u32 %s402, 1
        %s1509 = smul.addr %s1508, 64
        %s1510 = scalar_lea.vmem [#allocation21], %s1509
        %p1511 = pneg %p415
        %p1512 = pneg %p412
        %s1513 = sand.u32 %s70, 1
        %s1514 = scalar_lea.sflag [#allocation22], %s1513
        %s1515 = sand.u32 %s428, 1
        %s1516 = scalar_lea.vmem [#allocation23], %s1515
        %p1517 = pneg %p441
        %p1518 = pneg %p438
        %s1519 = sand.u32 %s70, 1
        %s1520 = scalar_lea.sflag [#allocation25], %s1519
        %s1521 = sand.u32 %s454, 1
        %s1522 = smul.addr %s1521, 128
        %s1523 = scalar_lea.vmem [#allocation24], %s1522
        %p1524 = pneg %p467
        %p1525 = pneg %p464
        %p1526 = scmp.lt.s32.totalorder %s75, 1
        %s1527 = scalar_select %p1526, %s75, 1
        %s1528 = smul.addr %s1527, 2
        %s1529 = scalar_lea.vmem %s15, %s1528
        %p1530 = pneg %p493
        %p1531 = pneg %p490
        %s1532 = sand.u32 %s70, 1
        %s1533 = scalar_lea.sflag [#allocation25], %s1532
        %s1534 = sand.u32 %s506, 1
        %s1535 = smul.addr %s1534, 128
        %s1536 = scalar_lea.vmem [#allocation26], %s1535
        %p1537 = pneg %p519
        %p1538 = pneg %p516
        %s1539 = sand.u32 %s70, 1
        %s1540 = scalar_lea.sflag [#allocation28], %s1539
        %s1541 = sand.u32 %s532, 1
        %s1542 = scalar_lea.vmem [#allocation27], %s1541
        %p1543 = pneg %p545
        %p1544 = pneg %p542
        %s1545 = sand.u32 %s70, 1
        %s1546 = scalar_lea.sflag [#allocation28], %s1545
        %s1547 = sand.u32 %s558, 1
        %s1548 = scalar_lea.vmem [#allocation29], %s1547
        %p1549 = pneg %p571
        %p1550 = pneg %p568
        %s1551 = sand.u32 %s70, 1
        %s1552 = scalar_lea.sflag [#allocation31], %s1551
        %s1553 = sand.u32 %s584, 1
        %s1554 = scalar_lea.vmem [#allocation30], %s1553
        %p1555 = pneg %p597
        %p1556 = pneg %p594
        %s1557 = sand.u32 %s70, 1
        %s1558 = scalar_lea.sflag [#allocation31], %s1557
        %s1559 = sand.u32 %s610, 1
        %s1560 = scalar_lea.vmem [#allocation32], %s1559
        %p1561 = pneg %p623
        %p1562 = pneg %p620
        %s1563 = sand.u32 %s70, 1
        %s1564 = scalar_lea.sflag [#allocation34], %s1563
        %s1565 = sand.u32 %s636, 1
        %s1566 = scalar_lea.vmem [#allocation33], %s1565
        %p1567 = pneg %p649
        %p1568 = pneg %p646
        %s1569 = sand.u32 %s70, 1
        %s1570 = scalar_lea.sflag [#allocation34], %s1569
        %s1571 = sand.u32 %s662, 1
        %s1572 = scalar_lea.vmem [#allocation35], %s1571
        %p1573 = pneg %p675
        %p1574 = pneg %p672
        %s1575 = sand.u32 %s70, 1
        %s1576 = scalar_lea.sflag [#allocation37], %s1575
        %s1577 = sand.u32 %s688, 1
        %s1578 = scalar_lea.vmem [#allocation36], %s1577
        %p1579 = pneg %p701
        %p1580 = pneg %p698
        %p1581 = pneg %p722
        %p1582 = pneg %p719
        %p1583 = pneg %p743
        %p1584 = pneg %p740
        %p1585 = pneg %p769
        %p1586 = pneg %p766
        %s1587 = smul.u32 2, %s74
        %p1588 = scmp.lt.s32.totalorder %s1587, 1
        %s1589 = scalar_select %p1588, %s1587, 1
        %s1590 = smul.addr %s1589, 8
        %s1591 = scalar_lea.vmem %s0, %s1590
        %s1592 = smul.u32 2, %s74
        %s1593 = smul.u32 2, %s74
        %s1594 = smul.u32 2, %s74
        %s1595 = smul.u32 2, %s74
        %p1596 = scmp.lt.s32.totalorder %s75, 1
        %s1597 = scalar_select %p1596, %s75, 1
        %s1598 = smul.addr %s1597, 2
        %s1599 = scalar_lea.vmem %s15, %s1598
        %s1600 = smul.u32 2, %s74
        %p1602 = scmp.eq.s32.totalorder %s75, 0
        // Predicated region
        $region217: #{decoder_forward.1} parent=123 // pred_check
          %p1603 = pneg %p1602
        $region218: #{decoder_forward.1} parent=123 // pred_check_branch
          %1605 = sbr.rel (%p1603) target = $region220
        $region219: #{decoder_forward.1} parent=123 // pred_region
          %v1606 = vld [vmem:[%s1591] sm:$0xff]
          %v1607 = vld [vmem:[%s1591 + $0x8] sm:$0xff]
          %1608 = vst [vmem:[#allocation2] sm:$0xff] %v1606
          %1609 = vst [vmem:[#allocation2 + $0x8] sm:$0xff] %v1607
        $region220: #{decoder_forward.1} parent=123 // pred_fallthru
          _
        %v1610 = vld [vmem:[#allocation2] sm:$0xff]
        %v1611 = vld [vmem:[#allocation2 + $0x8] sm:$0xff]
        %v1612 = vld [vmem:[#allocation3] sm:$0xff]
        %v1613 = vld [vmem:[#allocation3 + $0x8] sm:$0xff]
        %v1614 = vld [vmem:[#allocation6] sm:$0xff]
        %v1615 = vld [vmem:[#allocation6 + $0x8] sm:$0xff]
        %v1616 = vld [vmem:[#allocation8] sm:$0xff]
        %v1617 = vld [vmem:[#allocation8 + $0x8] sm:$0xff]
        %v1618 = vpack.c.bf16 %v1611, %v1610
        %v1619 = vld [vmem:[%s1258] sm:$0xff]
        %v1620 = vld [vmem:[%s1258 + $0x8] sm:$0xf]
        %v1621 = vld [vmem:[%s1258 + $0xc] sm:$0xff]
        %v1622 = vld [vmem:[%s1258 + $0x14] sm:$0xf]
        %v1623 = vld [vmem:[%s1258 + $0x18] sm:$0xff]
        %v1624 = vld [vmem:[%s1258 + $0x20] sm:$0xf]
        %v1625 = vld [vmem:[%s1258 + $0x24] sm:$0xff]
        %v1626 = vld [vmem:[%s1258 + $0x2c] sm:$0xf]
        %v1627 = vld [vmem:[%s1258 + $0x30] sm:$0xff]
        %v1628 = vld [vmem:[%s1258 + $0x38] sm:$0xf]
        %v1629 = vld [vmem:[%s1258 + $0x3c] sm:$0xff]
        %v1630 = vld [vmem:[%s1258 + $0x44] sm:$0xf]
        %v1631 = vld [vmem:[%s1258 + $0x48] sm:$0xff]
        %v1632 = vld [vmem:[%s1258 + $0x50] sm:$0xf]
        %v1633 = vld [vmem:[%s1258 + $0x54] sm:$0xff]
        %v1634 = vld [vmem:[%s1258 + $0x5c] sm:$0xf]
        %v1635 = vld [vmem:[%s1258 + $0x60] sm:$0xff]
        %v1636 = vld [vmem:[%s1258 + $0x68] sm:$0xf]
        %v1637 = vld [vmem:[%s1258 + $0x6c] sm:$0xff]
        %v1638 = vld [vmem:[%s1258 + $0x74] sm:$0xf]
        %v1639 = vld [vmem:[%s1258 + $0x78] sm:$0xff]
        %v1640 = vld [vmem:[%s1258 + $0x80] sm:$0xf]
        %v1641 = vld [vmem:[%s1258 + $0x84] sm:$0xff]
        %v1642 = vld [vmem:[%s1258 + $0x8c] sm:$0xf]
        %v1643 = vld [vmem:[%s1258 + $0x90] sm:$0xff]
        %v1644 = vld [vmem:[%s1258 + $0x98] sm:$0xf]
        %v1645 = vld [vmem:[%s1258 + $0x9c] sm:$0xff]
        %v1646 = vld [vmem:[%s1258 + $0xa4] sm:$0xf]
        %v1647 = vld [vmem:[%s1258 + $0xa8] sm:$0xff]
        %v1648 = vld [vmem:[%s1258 + $0xb0] sm:$0xf]
        %v1649 = vld [vmem:[%s1258 + $0xb4] sm:$0xff]
        %v1650 = vld [vmem:[%s1258 + $0xbc] sm:$0xf]
        %v1651 = vld [vmem:[%s1268] sm:$0x7]
        %v1653 = vperm.slane %v1651, 0
        %v1654 = vperm.slane %v1651, 1
        %v1655 = vperm.slane %v1651, 2
        %v1691 = vunpack.c.l.b16 %v1619
        %v1692 = vunpack.c.h.b16 %v1619
        %v1693 = vunpack.c.l.b16 %v1620
        %v1694 = vunpack.c.l.b16 %v1621
        %v1695 = vunpack.c.h.b16 %v1621
        %v1696 = vunpack.c.l.b16 %v1622
        %v1697 = vunpack.c.l.b16 %v1623
        %v1698 = vunpack.c.h.b16 %v1623
        %v1699 = vunpack.c.l.b16 %v1624
        %v1700 = vunpack.c.l.b16 %v1625
        %v1701 = vunpack.c.h.b16 %v1625
        %v1702 = vunpack.c.l.b16 %v1626
        %v1703 = vunpack.c.l.b16 %v1627
        %v1704 = vunpack.c.h.b16 %v1627
        %v1705 = vunpack.c.l.b16 %v1628
        %v1706 = vunpack.c.l.b16 %v1629
        %v1707 = vunpack.c.h.b16 %v1629
        %v1708 = vunpack.c.l.b16 %v1630
        %v1709 = vunpack.c.l.b16 %v1631
        %v1710 = vunpack.c.h.b16 %v1631
        %v1711 = vunpack.c.l.b16 %v1632
        %v1712 = vunpack.c.l.b16 %v1633
        %v1713 = vunpack.c.h.b16 %v1633
        %v1714 = vunpack.c.l.b16 %v1634
        %v1715 = vunpack.c.l.b16 %v1635
        %v1716 = vunpack.c.h.b16 %v1635
        %v1717 = vunpack.c.l.b16 %v1636
        %v1718 = vunpack.c.l.b16 %v1637
        %v1719 = vunpack.c.h.b16 %v1637
        %v1720 = vunpack.c.l.b16 %v1638
        %v1721 = vunpack.c.l.b16 %v1639
        %v1722 = vunpack.c.h.b16 %v1639
        %v1723 = vunpack.c.l.b16 %v1640
        %v1724 = vunpack.c.l.b16 %v1641
        %v1725 = vunpack.c.h.b16 %v1641
        %v1726 = vunpack.c.l.b16 %v1642
        %v1727 = vunpack.c.l.b16 %v1643
        %v1728 = vunpack.c.h.b16 %v1643
        %v1729 = vunpack.c.l.b16 %v1644
        %v1730 = vunpack.c.l.b16 %v1645
        %v1731 = vunpack.c.h.b16 %v1645
        %v1732 = vunpack.c.l.b16 %v1646
        %v1733 = vunpack.c.l.b16 %v1647
        %v1734 = vunpack.c.h.b16 %v1647
        %v1735 = vunpack.c.l.b16 %v1648
        %v1736 = vunpack.c.l.b16 %v1649
        %v1737 = vunpack.c.h.b16 %v1649
        %v1738 = vunpack.c.l.b16 %v1650
        %v1739 = vpack.c.b16 %v1694, %v1691
        %v1740 = vpack.c.b16 %v1695, %v1692
        %v1741 = vpack.c.b16 %v1696, %v1693
        %v1742 = vpack.c.b16 %v1700, %v1697
        %v1743 = vpack.c.b16 %v1701, %v1698
        %v1744 = vpack.c.b16 %v1702, %v1699
        %v1745 = vpack.c.b16 %v1706, %v1703
        %v1746 = vpack.c.b16 %v1707, %v1704
        %v1747 = vpack.c.b16 %v1708, %v1705
        %v1748 = vpack.c.b16 %v1712, %v1709
        %v1749 = vpack.c.b16 %v1713, %v1710
        %v1750 = vpack.c.b16 %v1714, %v1711
        %v1751 = vpack.c.b16 %v1718, %v1715
        %v1752 = vpack.c.b16 %v1719, %v1716
        %v1753 = vpack.c.b16 %v1720, %v1717
        %v1754 = vpack.c.b16 %v1724, %v1721
        %v1755 = vpack.c.b16 %v1725, %v1722
        %v1756 = vpack.c.b16 %v1726, %v1723
        %v1757 = vpack.c.b16 %v1730, %v1727
        %v1758 = vpack.c.b16 %v1731, %v1728
        %v1759 = vpack.c.b16 %v1732, %v1729
        %v1760 = vpack.c.b16 %v1736, %v1733
        %v1761 = vpack.c.b16 %v1737, %v1734
        %v1762 = vpack.c.b16 %v1738, %v1735
        %1787 = vmatpush.bf16.msra.mxu0 %v1760
        %1788 = vmatpush.bf16.msra.mxu0 %v1757
        %1789 = vmatpush.bf16.msra.mxu0 %v1754
        %1790 = vmatpush.bf16.msra.mxu0 %v1751
        %1791 = vmatpush.bf16.msra.mxu0 %v1748
        %1792 = vmatpush.bf16.msra.mxu0 %v1745
        %1793 = vmatpush.bf16.msra.mxu0 %v1742
        %1794 = vmatpush.bf16.msra.mxu0 %v1739
        %1795 = vmatmul.bf16.gmra.mxu0 %v1618
        %v1796 = vpop.f32.mrf.mxu0
        %v1797 = vadd.f32 %v1653, %v1796
        %v1798 = vpop.f32.mrf.mxu0
        %v1799 = vadd.f32 %v1653, %v1798
        %1800 = vdwg.mxu0
        %1801 = vmatpush.bf16.msra.mxu0 %v1761
        %1802 = vmatpush.bf16.msra.mxu0 %v1758
        %1803 = vmatpush.bf16.msra.mxu0 %v1755
        %1804 = vmatpush.bf16.msra.mxu0 %v1752
        %1805 = vmatpush.bf16.msra.mxu0 %v1749
        %1806 = vmatpush.bf16.msra.mxu0 %v1746
        %1807 = vmatpush.bf16.msra.mxu0 %v1743
        %1808 = vmatpush.bf16.msra.mxu0 %v1740
        %1809 = vmatmul.bf16.gmra.mxu0 %v1618
        %v1810 = vpop.f32.mrf.mxu0
        %v1811 = vadd.f32 %v1654, %v1810
        %v1812 = vpop.f32.mrf.mxu0
        %v1813 = vadd.f32 %v1654, %v1812
        %1814 = vdwg.mxu0
        %1815 = vmatpush.bf16.msra.mxu0 %v1762
        %1816 = vmatpush.bf16.msra.mxu0 %v1759
        %1817 = vmatpush.bf16.msra.mxu0 %v1756
        %1818 = vmatpush.bf16.msra.mxu0 %v1753
        %1819 = vmatpush.bf16.msra.mxu0 %v1750
        %1820 = vmatpush.bf16.msra.mxu0 %v1747
        %1821 = vmatpush.bf16.msra.mxu0 %v1744
        %1822 = vmatpush.bf16.msra.mxu0 %v1741
        %1823 = vmatmul.bf16.gmra.mxu0 %v1618
        %v1824 = vpop.f32.mrf.mxu0
        %v1825 = vadd.f32 %v1655, %v1824
        %v1826 = vpop.f32.mrf.mxu0
        %v1827 = vadd.f32 %v1655, %v1826
        %1828 = vdwg.mxu0
        %v1829 = vld [vmem:[%s1278] sm:$0xf]
        %v1830 = vld [vmem:[%s1278 + $0x4] sm:$0xf]
        %v1831 = vld [vmem:[%s1278 + $0x8] sm:$0xf]
        %v1832 = vld [vmem:[%s1278 + $0xc] sm:$0xf]
        %v1833 = vld [vmem:[%s1278 + $0x10] sm:$0xf]
        %v1834 = vld [vmem:[%s1278 + $0x14] sm:$0xf]
        %v1835 = vld [vmem:[%s1278 + $0x18] sm:$0xf]
        %v1836 = vld [vmem:[%s1278 + $0x1c] sm:$0xf]
        %v1837 = vld [vmem:[%s1278 + $0x20] sm:$0xf]
        %v1838 = vld [vmem:[%s1278 + $0x24] sm:$0xf]
        %v1839 = vld [vmem:[%s1278 + $0x28] sm:$0xf]
        %v1840 = vld [vmem:[%s1278 + $0x2c] sm:$0xf]
        %v1841 = vld [vmem:[%s1278 + $0x30] sm:$0xf]
        %v1842 = vld [vmem:[%s1278 + $0x34] sm:$0xf]
        %v1843 = vld [vmem:[%s1278 + $0x38] sm:$0xf]
        %v1844 = vld [vmem:[%s1278 + $0x3c] sm:$0xf]
        %v1845 = vpack.c.bf16 %v1797, %v1797
        %v1846 = vpack.c.bf16 %v1811, %v1811
        %v1847 = vpack.c.bf16 %v1825, %v1825
        %vm1848 = vcmp.gt.f32.partialorder %v1614, 0.0
        %v1849 = vsel %vm1848, 0.0, -1e+09
        %vm1850 = vcmask 261120
        %v1852 = vsel %vm1850, %v1845, 0
        %v1855 = vsel %vm1850, %v1846, 0
        %1857 = vmatpush.bf16.xpose.msra.mxu0 0
        %1858 = vmatpush.bf16.xpose.msra.mxu0 0
        %1859 = vmatpush.bf16.xpose.msra.mxu0 0
        %1860 = vmatpush.bf16.xpose.msra.mxu0 0
        %1861 = vmatpush.bf16.xpose.msra.mxu0 0
        %1862 = vmatpush.bf16.xpose.msra.mxu0 0
        %1863 = vmatpush.bf16.xpose.msra.mxu0 0
        %1864 = vmatpush.bf16.xpose.msra.mxu0 %v1855
        %1865 = vmatmul.bf16.gmra.mxu0 %v1852
        %v1866 = vpop.f32.mrf.mxu0
        %v1867 = vadd.f32 %v1849, %v1866
        %v1868 = vpop.f32.mrf.mxu0
        %1869 = vdwg.mxu0
        %vm1870 = vcmask 64512
        %v1871 = vsel %vm1870, %v1867, -inf
        %1872 = vmax.xlane.f32.xlu0 %v1871
        %v1873 = vpop.xlane.xlu0 %1872
        %v1874 = vsub.f32 %v1867, %v1873
        %v1875 = vmul.f32 %v1874, 1.442695
        %v1876 = vpow.pop %v1875
        %v1877 = vsel %vm1870, %v1876, 0.0
        %1878 = vadd.xlane.f32.xlu0 %v1877
        %v1879 = vpop.xlane.xlu0 %1878
        %v1880 = vrcp.pop %v1879
        %v1881 = vmul.f32 %v1876, %v1880
        %v1882 = vpack.c.bf16 %v1881, %v1881
        %v1884 = vsel %vm1870, %v1882, 0
        %vm1886 = vcmask 1043456
        %v1888 = vsel %vm1886, %v1847, 0
        %1890 = vmatpush.bf16.msra.mxu0 0
        %1891 = vmatpush.bf16.msra.mxu0 0
        %1892 = vmatpush.bf16.msra.mxu0 0
        %1893 = vmatpush.bf16.msra.mxu0 0
        %1894 = vmatpush.bf16.msra.mxu0 0
        %1895 = vmatpush.bf16.msra.mxu0 0
        %1896 = vmatpush.bf16.msra.mxu0 0
        %1897 = vmatpush.bf16.msra.mxu0 %v1888
        %1898 = vmatmul.bf16.gmra.mxu0 %v1884
        %v1899 = vpop.f32.mrf.mxu0
        %v1900 = vadd.f32 0.0, %v1899
        %v1901 = vpop.f32.mrf.mxu0
        %1902 = vdwg.mxu0
        %v1903 = vpack.c.bf16 %v1900, %v1900
        %v1905 = vunpack.c.l.b16 %v1845
        %v1906 = vpack.c.b16 %v1905, %v1905
        %1907 = vrot.lane.b32.xlu0 %v1906, 96
        %v1908 = vpop.permute.xlu0 %1907
        %v1910 = vunpack.c.l.b16 %v1846
        %v1911 = vpack.c.b16 %v1910, %v1910
        %1912 = vrot.lane.b32.xlu0 %v1911, 96
        %v1913 = vpop.permute.xlu0 %1912
        %v1915 = vsel %vm1850, %v1908, 0
        %v1918 = vsel %vm1850, %v1913, 0
        %1920 = vmatpush.bf16.xpose.msra.mxu0 0
        %1921 = vmatpush.bf16.xpose.msra.mxu0 0
        %1922 = vmatpush.bf16.xpose.msra.mxu0 0
        %1923 = vmatpush.bf16.xpose.msra.mxu0 0
        %1924 = vmatpush.bf16.xpose.msra.mxu0 0
        %1925 = vmatpush.bf16.xpose.msra.mxu0 0
        %1926 = vmatpush.bf16.xpose.msra.mxu0 0
        %1927 = vmatpush.bf16.xpose.msra.mxu0 %v1918
        %1928 = vmatmul.bf16.gmra.mxu0 %v1915
        %v1929 = vpop.f32.mrf.mxu0
        %v1930 = vadd.f32 %v1849, %v1929
        %v1931 = vpop.f32.mrf.mxu0
        %1932 = vdwg.mxu0
        %v1933 = vsel %vm1870, %v1930, -inf
        %1934 = vmax.xlane.f32.xlu0 %v1933
        %v1935 = vpop.xlane.xlu0 %1934
        %v1936 = vsub.f32 %v1930, %v1935
        %v1937 = vmul.f32 %v1936, 1.442695
        %v1938 = vpow.pop %v1937
        %v1939 = vsel %vm1870, %v1938, 0.0
        %1940 = vadd.xlane.f32.xlu0 %v1939
        %v1941 = vpop.xlane.xlu0 %1940
        %v1942 = vrcp.pop %v1941
        %v1943 = vmul.f32 %v1938, %v1942
        %v1944 = vpack.c.bf16 %v1943, %v1943
        %v1946 = vunpack.c.l.b16 %v1847
        %v1947 = vpack.c.b16 %v1946, %v1946
        %1948 = vrot.lane.b32.xlu0 %v1947, 96
        %v1949 = vpop.permute.xlu0 %1948
        %v1951 = vsel %vm1870, %v1944, 0
        %v1954 = vsel %vm1886, %v1949, 0
        %1956 = vmatpush.bf16.msra.mxu0 0
        %1957 = vmatpush.bf16.msra.mxu0 0
        %1958 = vmatpush.bf16.msra.mxu0 0
        %1959 = vmatpush.bf16.msra.mxu0 0
        %1960 = vmatpush.bf16.msra.mxu0 0
        %1961 = vmatpush.bf16.msra.mxu0 0
        %1962 = vmatpush.bf16.msra.mxu0 0
        %1963 = vmatpush.bf16.msra.mxu0 %v1954
        %1964 = vmatmul.bf16.gmra.mxu0 %v1951
        %v1965 = vpop.f32.mrf.mxu0
        %v1966 = vadd.f32 0.0, %v1965
        %v1967 = vpop.f32.mrf.mxu0
        %1968 = vdwg.mxu0
        %v1969 = vpack.c.bf16 %v1966, %v1966
        %v1974 = vunpack.c.l.b16 %v1833
        %v1975 = vunpack.c.l.b16 %v1834
        %v1976 = vunpack.c.l.b16 %v1835
        %v1977 = vunpack.c.l.b16 %v1836
        %v1978 = vpack.c.b16 %v1975, %v1974
        %v1979 = vpack.c.b16 %v1977, %v1976
        %v1983 = vsel %vm1850, %v1969, 0
        %1985 = vmatpush.bf16.msra.mxu0 0
        %1986 = vmatpush.bf16.msra.mxu0 0
        %1987 = vmatpush.bf16.msra.mxu0 0
        %1988 = vmatpush.bf16.msra.mxu0 0
        %1989 = vmatpush.bf16.msra.mxu0 0
        %1990 = vmatpush.bf16.msra.mxu0 0
        %1991 = vmatpush.bf16.msra.mxu0 %v1979
        %1992 = vmatpush.bf16.msra.mxu0 %v1978
        %1993 = vmatmul.bf16.gmra.mxu0 %v1983
        %v1994 = vpop.f32.mrf.mxu0
        %v1995 = vadd.f32 0.0, %v1994
        %v1996 = vpop.f32.mrf.mxu0
        %1997 = vdwg.mxu0
        %v2002 = vunpack.c.l.b16 %v1829
        %v2003 = vunpack.c.l.b16 %v1830
        %v2004 = vunpack.c.l.b16 %v1831
        %v2005 = vunpack.c.l.b16 %v1832
        %v2006 = vpack.c.b16 %v2003, %v2002
        %v2007 = vpack.c.b16 %v2005, %v2004
        %v2011 = vsel %vm1850, %v1903, 0
        %2013 = vmatpush.bf16.msra.mxu0 0
        %2014 = vmatpush.bf16.msra.mxu0 0
        %2015 = vmatpush.bf16.msra.mxu0 0
        %2016 = vmatpush.bf16.msra.mxu0 0
        %2017 = vmatpush.bf16.msra.mxu0 0
        %2018 = vmatpush.bf16.msra.mxu0 0
        %2019 = vmatpush.bf16.msra.mxu0 %v2007
        %2020 = vmatpush.bf16.msra.mxu0 %v2006
        %2021 = vmatmul.bf16.gmra.mxu0 %v2011
        %v2022 = vpop.f32.mrf.mxu0
        %v2023 = vadd.f32 %v1995, %v2022
        %v2024 = vpop.f32.mrf.mxu0
        %2025 = vdwg.mxu0
        %2026 = vrot.lane.b32.xlu0 %v1906, 64
        %v2027 = vpop.permute.xlu0 %2026
        %2028 = vrot.lane.b32.xlu0 %v1911, 64
        %v2029 = vpop.permute.xlu0 %2028
        %v2031 = vsel %vm1850, %v2027, 0
        %v2034 = vsel %vm1850, %v2029, 0
        %2036 = vmatpush.bf16.xpose.msra.mxu0 0
        %2037 = vmatpush.bf16.xpose.msra.mxu0 0
        %2038 = vmatpush.bf16.xpose.msra.mxu0 0
        %2039 = vmatpush.bf16.xpose.msra.mxu0 0
        %2040 = vmatpush.bf16.xpose.msra.mxu0 0
        %2041 = vmatpush.bf16.xpose.msra.mxu0 0
        %2042 = vmatpush.bf16.xpose.msra.mxu0 0
        %2043 = vmatpush.bf16.xpose.msra.mxu0 %v2034
        %2044 = vmatmul.bf16.gmra.mxu0 %v2031
        %v2045 = vpop.f32.mrf.mxu0
        %v2046 = vadd.f32 %v1849, %v2045
        %v2047 = vpop.f32.mrf.mxu0
        %2048 = vdwg.mxu0
        %v2049 = vsel %vm1870, %v2046, -inf
        %2050 = vmax.xlane.f32.xlu0 %v2049
        %v2051 = vpop.xlane.xlu0 %2050
        %v2052 = vsub.f32 %v2046, %v2051
        %v2053 = vmul.f32 %v2052, 1.442695
        %v2054 = vpow.pop %v2053
        %v2055 = vsel %vm1870, %v2054, 0.0
        %2056 = vadd.xlane.f32.xlu0 %v2055
        %v2057 = vpop.xlane.xlu0 %2056
        %v2058 = vrcp.pop %v2057
        %v2059 = vmul.f32 %v2054, %v2058
        %v2060 = vpack.c.bf16 %v2059, %v2059
        %2061 = vrot.lane.b32.xlu0 %v1947, 64
        %v2062 = vpop.permute.xlu0 %2061
        %v2064 = vsel %vm1870, %v2060, 0
        %v2067 = vsel %vm1886, %v2062, 0
        %2069 = vmatpush.bf16.msra.mxu0 0
        %2070 = vmatpush.bf16.msra.mxu0 0
        %2071 = vmatpush.bf16.msra.mxu0 0
        %2072 = vmatpush.bf16.msra.mxu0 0
        %2073 = vmatpush.bf16.msra.mxu0 0
        %2074 = vmatpush.bf16.msra.mxu0 0
        %2075 = vmatpush.bf16.msra.mxu0 0
        %2076 = vmatpush.bf16.msra.mxu0 %v2067
        %2077 = vmatmul.bf16.gmra.mxu0 %v2064
        %v2078 = vpop.f32.mrf.mxu0
        %v2079 = vadd.f32 0.0, %v2078
        %v2080 = vpop.f32.mrf.mxu0
        %2081 = vdwg.mxu0
        %v2082 = vpack.c.bf16 %v2079, %v2079
        %v2087 = vunpack.c.l.b16 %v1837
        %v2088 = vunpack.c.l.b16 %v1838
        %v2089 = vunpack.c.l.b16 %v1839
        %v2090 = vunpack.c.l.b16 %v1840
        %v2091 = vpack.c.b16 %v2088, %v2087
        %v2092 = vpack.c.b16 %v2090, %v2089
        %v2096 = vsel %vm1850, %v2082, 0
        %2098 = vmatpush.bf16.msra.mxu0 0
        %2099 = vmatpush.bf16.msra.mxu0 0
        %2100 = vmatpush.bf16.msra.mxu0 0
        %2101 = vmatpush.bf16.msra.mxu0 0
        %2102 = vmatpush.bf16.msra.mxu0 0
        %2103 = vmatpush.bf16.msra.mxu0 0
        %2104 = vmatpush.bf16.msra.mxu0 %v2092
        %2105 = vmatpush.bf16.msra.mxu0 %v2091
        %2106 = vmatmul.bf16.gmra.mxu0 %v2096
        %v2107 = vpop.f32.mrf.mxu0
        %v2108 = vadd.f32 0.0, %v2107
        %v2109 = vpop.f32.mrf.mxu0
        %2110 = vdwg.mxu0
        %v2111 = vadd.f32 %v2023, %v2108
        %2112 = vrot.lane.b32.xlu0 %v1906, 32
        %v2113 = vpop.permute.xlu0 %2112
        %2114 = vrot.lane.b32.xlu0 %v1911, 32
        %v2115 = vpop.permute.xlu0 %2114
        %v2117 = vsel %vm1850, %v2113, 0
        %v2120 = vsel %vm1850, %v2115, 0
        %2122 = vmatpush.bf16.xpose.msra.mxu0 0
        %2123 = vmatpush.bf16.xpose.msra.mxu0 0
        %2124 = vmatpush.bf16.xpose.msra.mxu0 0
        %2125 = vmatpush.bf16.xpose.msra.mxu0 0
        %2126 = vmatpush.bf16.xpose.msra.mxu0 0
        %2127 = vmatpush.bf16.xpose.msra.mxu0 0
        %2128 = vmatpush.bf16.xpose.msra.mxu0 0
        %2129 = vmatpush.bf16.xpose.msra.mxu0 %v2120
        %2130 = vmatmul.bf16.gmra.mxu0 %v2117
        %v2131 = vpop.f32.mrf.mxu0
        %v2132 = vadd.f32 %v1849, %v2131
        %v2133 = vpop.f32.mrf.mxu0
        %2134 = vdwg.mxu0
        %v2135 = vsel %vm1870, %v2132, -inf
        %2136 = vmax.xlane.f32.xlu0 %v2135
        %v2137 = vpop.xlane.xlu0 %2136
        %v2138 = vsub.f32 %v2132, %v2137
        %v2139 = vmul.f32 %v2138, 1.442695
        %v2140 = vpow.pop %v2139
        %v2141 = vsel %vm1870, %v2140, 0.0
        %2142 = vadd.xlane.f32.xlu0 %v2141
        %v2143 = vpop.xlane.xlu0 %2142
        %v2144 = vrcp.pop %v2143
        %v2145 = vmul.f32 %v2140, %v2144
        %v2146 = vpack.c.bf16 %v2145, %v2145
        %2147 = vrot.lane.b32.xlu0 %v1947, 32
        %v2148 = vpop.permute.xlu0 %2147
        %v2150 = vsel %vm1870, %v2146, 0
        %v2153 = vsel %vm1886, %v2148, 0
        %2155 = vmatpush.bf16.msra.mxu0 0
        %2156 = vmatpush.bf16.msra.mxu0 0
        %2157 = vmatpush.bf16.msra.mxu0 0
        %2158 = vmatpush.bf16.msra.mxu0 0
        %2159 = vmatpush.bf16.msra.mxu0 0
        %2160 = vmatpush.bf16.msra.mxu0 0
        %2161 = vmatpush.bf16.msra.mxu0 0
        %2162 = vmatpush.bf16.msra.mxu0 %v2153
        %2163 = vmatmul.bf16.gmra.mxu0 %v2150
        %v2164 = vpop.f32.mrf.mxu0
        %v2165 = vadd.f32 0.0, %v2164
        %v2166 = vpop.f32.mrf.mxu0
        %2167 = vdwg.mxu0
        %v2168 = vpack.c.bf16 %v2165, %v2165
        %v2173 = vunpack.c.l.b16 %v1841
        %v2174 = vunpack.c.l.b16 %v1842
        %v2175 = vunpack.c.l.b16 %v1843
        %v2176 = vunpack.c.l.b16 %v1844
        %v2177 = vpack.c.b16 %v2174, %v2173
        %v2178 = vpack.c.b16 %v2176, %v2175
        %v2182 = vsel %vm1850, %v2168, 0
        %2184 = vmatpush.bf16.msra.mxu0 0
        %2185 = vmatpush.bf16.msra.mxu0 0
        %2186 = vmatpush.bf16.msra.mxu0 0
        %2187 = vmatpush.bf16.msra.mxu0 0
        %2188 = vmatpush.bf16.msra.mxu0 0
        %2189 = vmatpush.bf16.msra.mxu0 0
        %2190 = vmatpush.bf16.msra.mxu0 %v2178
        %2191 = vmatpush.bf16.msra.mxu0 %v2177
        %2192 = vmatmul.bf16.gmra.mxu0 %v2182
        %v2193 = vpop.f32.mrf.mxu0
        %v2194 = vadd.f32 0.0, %v2193
        %v2195 = vpop.f32.mrf.mxu0
        %2196 = vdwg.mxu0
        %v2197 = vadd.f32 %v2111, %v2194
        %v2198 = vpack.c.bf16 %v1799, %v1799
        %v2199 = vpack.c.bf16 %v1813, %v1813
        %v2200 = vpack.c.bf16 %v1827, %v1827
        %vm2201 = vcmp.gt.f32.partialorder %v1615, 0.0
        %v2202 = vsel %vm2201, 0.0, -1e+09
        %v2204 = vsel %vm1850, %v2198, 0
        %v2207 = vsel %vm1850, %v2199, 0
        %2209 = vmatpush.bf16.xpose.msra.mxu0 0
        %2210 = vmatpush.bf16.xpose.msra.mxu0 0
        %2211 = vmatpush.bf16.xpose.msra.mxu0 0
        %2212 = vmatpush.bf16.xpose.msra.mxu0 0
        %2213 = vmatpush.bf16.xpose.msra.mxu0 0
        %2214 = vmatpush.bf16.xpose.msra.mxu0 0
        %2215 = vmatpush.bf16.xpose.msra.mxu0 0
        %2216 = vmatpush.bf16.xpose.msra.mxu0 %v2207
        %2217 = vmatmul.bf16.gmra.mxu0 %v2204
        %v2218 = vpop.f32.mrf.mxu0
        %v2219 = vadd.f32 %v2202, %v2218
        %v2220 = vpop.f32.mrf.mxu0
        %2221 = vdwg.mxu0
        %v2222 = vsel %vm1870, %v2219, -inf
        %2223 = vmax.xlane.f32.xlu0 %v2222
        %v2224 = vpop.xlane.xlu0 %2223
        %v2225 = vsub.f32 %v2219, %v2224
        %v2226 = vmul.f32 %v2225, 1.442695
        %v2227 = vpow.pop %v2226
        %v2228 = vsel %vm1870, %v2227, 0.0
        %2229 = vadd.xlane.f32.xlu0 %v2228
        %v2230 = vpop.xlane.xlu0 %2229
        %v2231 = vrcp.pop %v2230
        %v2232 = vmul.f32 %v2227, %v2231
        %v2233 = vpack.c.bf16 %v2232, %v2232
        %v2235 = vsel %vm1870, %v2233, 0
        %v2238 = vsel %vm1886, %v2200, 0
        %2240 = vmatpush.bf16.msra.mxu0 0
        %2241 = vmatpush.bf16.msra.mxu0 0
        %2242 = vmatpush.bf16.msra.mxu0 0
        %2243 = vmatpush.bf16.msra.mxu0 0
        %2244 = vmatpush.bf16.msra.mxu0 0
        %2245 = vmatpush.bf16.msra.mxu0 0
        %2246 = vmatpush.bf16.msra.mxu0 0
        %2247 = vmatpush.bf16.msra.mxu0 %v2238
        %2248 = vmatmul.bf16.gmra.mxu0 %v2235
        %v2249 = vpop.f32.mrf.mxu0
        %v2250 = vadd.f32 0.0, %v2249
        %v2251 = vpop.f32.mrf.mxu0
        %2252 = vdwg.mxu0
        %v2253 = vpack.c.bf16 %v2250, %v2250
        %v2255 = vunpack.c.l.b16 %v2198
        %v2256 = vpack.c.b16 %v2255, %v2255
        %2257 = vrot.lane.b32.xlu0 %v2256, 96
        %v2258 = vpop.permute.xlu0 %2257
        %v2260 = vunpack.c.l.b16 %v2199
        %v2261 = vpack.c.b16 %v2260, %v2260
        %2262 = vrot.lane.b32.xlu0 %v2261, 96
        %v2263 = vpop.permute.xlu0 %2262
        %v2265 = vsel %vm1850, %v2258, 0
        %v2268 = vsel %vm1850, %v2263, 0
        %2270 = vmatpush.bf16.xpose.msra.mxu0 0
        %2271 = vmatpush.bf16.xpose.msra.mxu0 0
        %2272 = vmatpush.bf16.xpose.msra.mxu0 0
        %2273 = vmatpush.bf16.xpose.msra.mxu0 0
        %2274 = vmatpush.bf16.xpose.msra.mxu0 0
        %2275 = vmatpush.bf16.xpose.msra.mxu0 0
        %2276 = vmatpush.bf16.xpose.msra.mxu0 0
        %2277 = vmatpush.bf16.xpose.msra.mxu0 %v2268
        %2278 = vmatmul.bf16.gmra.mxu0 %v2265
        %v2279 = vpop.f32.mrf.mxu0
        %v2280 = vadd.f32 %v2202, %v2279
        %v2281 = vpop.f32.mrf.mxu0
        %2282 = vdwg.mxu0
        %v2283 = vsel %vm1870, %v2280, -inf
        %2284 = vmax.xlane.f32.xlu0 %v2283
        %v2285 = vpop.xlane.xlu0 %2284
        %v2286 = vsub.f32 %v2280, %v2285
        %v2287 = vmul.f32 %v2286, 1.442695
        %v2288 = vpow.pop %v2287
        %v2289 = vsel %vm1870, %v2288, 0.0
        %2290 = vadd.xlane.f32.xlu0 %v2289
        %v2291 = vpop.xlane.xlu0 %2290
        %v2292 = vrcp.pop %v2291
        %v2293 = vmul.f32 %v2288, %v2292
        %v2294 = vpack.c.bf16 %v2293, %v2293
        %v2296 = vunpack.c.l.b16 %v2200
        %v2297 = vpack.c.b16 %v2296, %v2296
        %2298 = vrot.lane.b32.xlu0 %v2297, 96
        %v2299 = vpop.permute.xlu0 %2298
        %v2301 = vsel %vm1870, %v2294, 0
        %v2304 = vsel %vm1886, %v2299, 0
        %2306 = vmatpush.bf16.msra.mxu0 0
        %2307 = vmatpush.bf16.msra.mxu0 0
        %2308 = vmatpush.bf16.msra.mxu0 0
        %2309 = vmatpush.bf16.msra.mxu0 0
        %2310 = vmatpush.bf16.msra.mxu0 0
        %2311 = vmatpush.bf16.msra.mxu0 0
        %2312 = vmatpush.bf16.msra.mxu0 0
        %2313 = vmatpush.bf16.msra.mxu0 %v2304
        %2314 = vmatmul.bf16.gmra.mxu0 %v2301
        %v2315 = vpop.f32.mrf.mxu0
        %v2316 = vadd.f32 0.0, %v2315
        %v2317 = vpop.f32.mrf.mxu0
        %2318 = vdwg.mxu0
        %v2319 = vpack.c.bf16 %v2316, %v2316
        %v2321 = vsel %vm1850, %v2319, 0
        %2323 = vmatpush.bf16.msra.mxu0 0
        %2324 = vmatpush.bf16.msra.mxu0 0
        %2325 = vmatpush.bf16.msra.mxu0 0
        %2326 = vmatpush.bf16.msra.mxu0 0
        %2327 = vmatpush.bf16.msra.mxu0 0
        %2328 = vmatpush.bf16.msra.mxu0 0
        %2329 = vmatpush.bf16.msra.mxu0 %v1979
        %2330 = vmatpush.bf16.msra.mxu0 %v1978
        %2331 = vmatmul.bf16.gmra.mxu0 %v2321
        %v2332 = vpop.f32.mrf.mxu0
        %v2333 = vadd.f32 0.0, %v2332
        %v2334 = vpop.f32.mrf.mxu0
        %2335 = vdwg.mxu0
        %v2337 = vsel %vm1850, %v2253, 0
        %2339 = vmatpush.bf16.msra.mxu0 0
        %2340 = vmatpush.bf16.msra.mxu0 0
        %2341 = vmatpush.bf16.msra.mxu0 0
        %2342 = vmatpush.bf16.msra.mxu0 0
        %2343 = vmatpush.bf16.msra.mxu0 0
        %2344 = vmatpush.bf16.msra.mxu0 0
        %2345 = vmatpush.bf16.msra.mxu0 %v2007
        %2346 = vmatpush.bf16.msra.mxu0 %v2006
        %2347 = vmatmul.bf16.gmra.mxu0 %v2337
        %v2348 = vpop.f32.mrf.mxu0
        %v2349 = vadd.f32 %v2333, %v2348
        %v2350 = vpop.f32.mrf.mxu0
        %2351 = vdwg.mxu0
        %2352 = vrot.lane.b32.xlu0 %v2256, 64
        %v2353 = vpop.permute.xlu0 %2352
        %2354 = vrot.lane.b32.xlu0 %v2261, 64
        %v2355 = vpop.permute.xlu0 %2354
        %v2357 = vsel %vm1850, %v2353, 0
        %v2360 = vsel %vm1850, %v2355, 0
        %2362 = vmatpush.bf16.xpose.msra.mxu0 0
        %2363 = vmatpush.bf16.xpose.msra.mxu0 0
        %2364 = vmatpush.bf16.xpose.msra.mxu0 0
        %2365 = vmatpush.bf16.xpose.msra.mxu0 0
        %2366 = vmatpush.bf16.xpose.msra.mxu0 0
        %2367 = vmatpush.bf16.xpose.msra.mxu0 0
        %2368 = vmatpush.bf16.xpose.msra.mxu0 0
        %2369 = vmatpush.bf16.xpose.msra.mxu0 %v2360
        %2370 = vmatmul.bf16.gmra.mxu0 %v2357
        %v2371 = vpop.f32.mrf.mxu0
        %v2372 = vadd.f32 %v2202, %v2371
        %v2373 = vpop.f32.mrf.mxu0
        %2374 = vdwg.mxu0
        %v2375 = vsel %vm1870, %v2372, -inf
        %2376 = vmax.xlane.f32.xlu0 %v2375
        %v2377 = vpop.xlane.xlu0 %2376
        %v2378 = vsub.f32 %v2372, %v2377
        %v2379 = vmul.f32 %v2378, 1.442695
        %v2380 = vpow.pop %v2379
        %v2381 = vsel %vm1870, %v2380, 0.0
        %2382 = vadd.xlane.f32.xlu0 %v2381
        %v2383 = vpop.xlane.xlu0 %2382
        %v2384 = vrcp.pop %v2383
        %v2385 = vmul.f32 %v2380, %v2384
        %v2386 = vpack.c.bf16 %v2385, %v2385
        %2387 = vrot.lane.b32.xlu0 %v2297, 64
        %v2388 = vpop.permute.xlu0 %2387
        %v2390 = vsel %vm1870, %v2386, 0
        %v2393 = vsel %vm1886, %v2388, 0
        %2395 = vmatpush.bf16.msra.mxu0 0
        %2396 = vmatpush.bf16.msra.mxu0 0
        %2397 = vmatpush.bf16.msra.mxu0 0
        %2398 = vmatpush.bf16.msra.mxu0 0
        %2399 = vmatpush.bf16.msra.mxu0 0
        %2400 = vmatpush.bf16.msra.mxu0 0
        %2401 = vmatpush.bf16.msra.mxu0 0
        %2402 = vmatpush.bf16.msra.mxu0 %v2393
        %2403 = vmatmul.bf16.gmra.mxu0 %v2390
        %v2404 = vpop.f32.mrf.mxu0
        %v2405 = vadd.f32 0.0, %v2404
        %v2406 = vpop.f32.mrf.mxu0
        %2407 = vdwg.mxu0
        %v2408 = vpack.c.bf16 %v2405, %v2405
        %v2410 = vsel %vm1850, %v2408, 0
        %2412 = vmatpush.bf16.msra.mxu0 0
        %2413 = vmatpush.bf16.msra.mxu0 0
        %2414 = vmatpush.bf16.msra.mxu0 0
        %2415 = vmatpush.bf16.msra.mxu0 0
        %2416 = vmatpush.bf16.msra.mxu0 0
        %2417 = vmatpush.bf16.msra.mxu0 0
        %2418 = vmatpush.bf16.msra.mxu0 %v2092
        %2419 = vmatpush.bf16.msra.mxu0 %v2091
        %2420 = vmatmul.bf16.gmra.mxu0 %v2410
        %v2421 = vpop.f32.mrf.mxu0
        %v2422 = vadd.f32 0.0, %v2421
        %v2423 = vpop.f32.mrf.mxu0
        %2424 = vdwg.mxu0
        %v2425 = vadd.f32 %v2349, %v2422
        %2426 = vrot.lane.b32.xlu0 %v2256, 32
        %v2427 = vpop.permute.xlu0 %2426
        %2428 = vrot.lane.b32.xlu0 %v2261, 32
        %v2429 = vpop.permute.xlu0 %2428
        %v2431 = vsel %vm1850, %v2427, 0
        %v2434 = vsel %vm1850, %v2429, 0
        %2436 = vmatpush.bf16.xpose.msra.mxu0 0
        %2437 = vmatpush.bf16.xpose.msra.mxu0 0
        %2438 = vmatpush.bf16.xpose.msra.mxu0 0
        %2439 = vmatpush.bf16.xpose.msra.mxu0 0
        %2440 = vmatpush.bf16.xpose.msra.mxu0 0
        %2441 = vmatpush.bf16.xpose.msra.mxu0 0
        %2442 = vmatpush.bf16.xpose.msra.mxu0 0
        %2443 = vmatpush.bf16.xpose.msra.mxu0 %v2434
        %2444 = vmatmul.bf16.gmra.mxu0 %v2431
        %v2445 = vpop.f32.mrf.mxu0
        %v2446 = vadd.f32 %v2202, %v2445
        %v2447 = vpop.f32.mrf.mxu0
        %2448 = vdwg.mxu0
        %v2449 = vsel %vm1870, %v2446, -inf
        %2450 = vmax.xlane.f32.xlu0 %v2449
        %v2451 = vpop.xlane.xlu0 %2450
        %v2452 = vsub.f32 %v2446, %v2451
        %v2453 = vmul.f32 %v2452, 1.442695
        %v2454 = vpow.pop %v2453
        %v2455 = vsel %vm1870, %v2454, 0.0
        %2456 = vadd.xlane.f32.xlu0 %v2455
        %v2457 = vpop.xlane.xlu0 %2456
        %v2458 = vrcp.pop %v2457
        %v2459 = vmul.f32 %v2454, %v2458
        %v2460 = vpack.c.bf16 %v2459, %v2459
        %2461 = vrot.lane.b32.xlu0 %v2297, 32
        %v2462 = vpop.permute.xlu0 %2461
        %v2464 = vsel %vm1870, %v2460, 0
        %v2467 = vsel %vm1886, %v2462, 0
        %2469 = vmatpush.bf16.msra.mxu0 0
        %2470 = vmatpush.bf16.msra.mxu0 0
        %2471 = vmatpush.bf16.msra.mxu0 0
        %2472 = vmatpush.bf16.msra.mxu0 0
        %2473 = vmatpush.bf16.msra.mxu0 0
        %2474 = vmatpush.bf16.msra.mxu0 0
        %2475 = vmatpush.bf16.msra.mxu0 0
        %2476 = vmatpush.bf16.msra.mxu0 %v2467
        %2477 = vmatmul.bf16.gmra.mxu0 %v2464
        %v2478 = vpop.f32.mrf.mxu0
        %v2479 = vadd.f32 0.0, %v2478
        %v2480 = vpop.f32.mrf.mxu0
        %2481 = vdwg.mxu0
        %v2482 = vpack.c.bf16 %v2479, %v2479
        %v2484 = vsel %vm1850, %v2482, 0
        %2486 = vmatpush.bf16.msra.mxu0 0
        %2487 = vmatpush.bf16.msra.mxu0 0
        %2488 = vmatpush.bf16.msra.mxu0 0
        %2489 = vmatpush.bf16.msra.mxu0 0
        %2490 = vmatpush.bf16.msra.mxu0 0
        %2491 = vmatpush.bf16.msra.mxu0 0
        %2492 = vmatpush.bf16.msra.mxu0 %v2178
        %2493 = vmatpush.bf16.msra.mxu0 %v2177
        %2494 = vmatmul.bf16.gmra.mxu0 %v2484
        %v2495 = vpop.f32.mrf.mxu0
        %v2496 = vadd.f32 0.0, %v2495
        %v2497 = vpop.f32.mrf.mxu0
        %2498 = vdwg.mxu0
        %v2499 = vadd.f32 %v2425, %v2496
        %v2500 = vld [vmem:[%s1287] sm:$0x1]
        %v2502 = vperm.slane %v2500, 0
        %v2504 = vadd.f32 %v2197, %v2502
        %v2505 = vadd.f32 %v2499, %v2502
        %v2506 = vadd.f32 %v1610, %v2504
        %v2507 = vadd.f32 %v1611, %v2505
        %v2508 = vld [vmem:[%s1383] sm:$0x1]
        %v2509 = vld [vmem:[%s1392] sm:$0x1]
        %2510 = vadd.xlane.f32.xlu0 %v2506
        %v2511 = vpop.xlane.xlu0 %2510
        %2512 = vadd.xlane.f32.xlu0 %v2507
        %v2513 = vpop.xlane.xlu0 %2512
        %v2514 = vrcp.pop 128.0
        %v2515 = vmul.f32 128.0, %v2514
        %v2516 = vsub.f32 1.0, %v2515
        %v2517 = vmul.f32 %v2514, %v2516
        %v2518 = vadd.f32 %v2514, %v2517
        %vm2519 = vweird.f32 %v2514
        %v2520 = vsel %vm2519, %v2514, %v2518
        %v2521 = vmul.f32 %v2511, %v2520
        %v2522 = vmul.f32 %v2513, %v2520
        %v2523 = vsub.f32 %v2506, %v2521
        %v2524 = vsub.f32 %v2507, %v2522
        %v2525 = vmul.f32 %v2523, %v2523
        %v2526 = vmul.f32 %v2524, %v2524
        %2527 = vadd.xlane.f32.xlu0 %v2525
        %v2528 = vpop.xlane.xlu0 %2527
        %2529 = vadd.xlane.f32.xlu0 %v2526
        %v2530 = vpop.xlane.xlu0 %2529
        %v2531 = vmul.f32 %v2528, %v2520
        %v2532 = vmul.f32 %v2530, %v2520
        %v2533 = vadd.f32 %v2531, 1e-05
        %v2534 = vadd.f32 %v2532, 1e-05
        %v2535 = vrsqrt.pop %v2533
        %v2536 = vmul.f32 %v2535, %v2533
        %v2537 = vmul.f32 %v2536, %v2535
        %v2538 = vmul.f32 0.5, %v2537
        %v2539 = vsub.f32 1.5, %v2538
        %v2540 = vmul.f32 %v2535, %v2539
        %vm2541 = vweird.f32 %v2533
        %vm2542 = vweird.f32 %v2535
        %vm2543 = vmor %vm2541, %vm2542
        %v2544 = vsel %vm2543, %v2535, %v2540
        %v2545 = vrsqrt.pop %v2534
        %v2546 = vmul.f32 %v2545, %v2534
        %v2547 = vmul.f32 %v2546, %v2545
        %v2548 = vmul.f32 0.5, %v2547
        %v2549 = vsub.f32 1.5, %v2548
        %v2550 = vmul.f32 %v2545, %v2549
        %vm2551 = vweird.f32 %v2534
        %vm2552 = vweird.f32 %v2545
        %vm2553 = vmor %vm2551, %vm2552
        %v2554 = vsel %vm2553, %v2545, %v2550
        %v2555 = vmul.f32 %v2523, %v2544
        %v2556 = vmul.f32 %v2524, %v2554
        %v2558 = vperm.slane %v2508, 0
        %v2560 = vmul.f32 %v2555, %v2558
        %v2561 = vmul.f32 %v2556, %v2558
        %v2563 = vperm.slane %v2509, 0
        %v2565 = vadd.f32 %v2560, %v2563
        %v2566 = vadd.f32 %v2561, %v2563
        %v2567 = vpack.c.bf16 %v2566, %v2565
        %v2568 = vld [vmem:[%s1297] sm:$0xf]
        %v2569 = vld [vmem:[%s1297 + $0x4] sm:$0xf]
        %v2570 = vld [vmem:[%s1297 + $0x8] sm:$0xf]
        %v2571 = vld [vmem:[%s1297 + $0xc] sm:$0xf]
        %v2572 = vld [vmem:[%s1297 + $0x10] sm:$0xf]
        %v2573 = vld [vmem:[%s1297 + $0x14] sm:$0xf]
        %v2574 = vld [vmem:[%s1297 + $0x18] sm:$0xf]
        %v2575 = vld [vmem:[%s1297 + $0x1c] sm:$0xf]
        %v2576 = vld [vmem:[%s1297 + $0x20] sm:$0xf]
        %v2577 = vld [vmem:[%s1297 + $0x24] sm:$0xf]
        %v2578 = vld [vmem:[%s1297 + $0x28] sm:$0xf]
        %v2579 = vld [vmem:[%s1297 + $0x2c] sm:$0xf]
        %v2580 = vld [vmem:[%s1297 + $0x30] sm:$0xf]
        %v2581 = vld [vmem:[%s1297 + $0x34] sm:$0xf]
        %v2582 = vld [vmem:[%s1297 + $0x38] sm:$0xf]
        %v2583 = vld [vmem:[%s1297 + $0x3c] sm:$0xf]
        %v2584 = vld [vmem:[%s1306] sm:$0x1]
        %v2586 = vperm.slane %v2584, 0
        %v2604 = vunpack.c.l.b16 %v2568
        %v2605 = vunpack.c.l.b16 %v2569
        %v2606 = vunpack.c.l.b16 %v2570
        %v2607 = vunpack.c.l.b16 %v2571
        %v2608 = vunpack.c.l.b16 %v2572
        %v2609 = vunpack.c.l.b16 %v2573
        %v2610 = vunpack.c.l.b16 %v2574
        %v2611 = vunpack.c.l.b16 %v2575
        %v2612 = vunpack.c.l.b16 %v2576
        %v2613 = vunpack.c.l.b16 %v2577
        %v2614 = vunpack.c.l.b16 %v2578
        %v2615 = vunpack.c.l.b16 %v2579
        %v2616 = vunpack.c.l.b16 %v2580
        %v2617 = vunpack.c.l.b16 %v2581
        %v2618 = vunpack.c.l.b16 %v2582
        %v2619 = vunpack.c.l.b16 %v2583
        %v2620 = vpack.c.b16 %v2605, %v2604
        %v2621 = vpack.c.b16 %v2607, %v2606
        %v2622 = vpack.c.b16 %v2609, %v2608
        %v2623 = vpack.c.b16 %v2611, %v2610
        %v2624 = vpack.c.b16 %v2613, %v2612
        %v2625 = vpack.c.b16 %v2615, %v2614
        %v2626 = vpack.c.b16 %v2617, %v2616
        %v2627 = vpack.c.b16 %v2619, %v2618
        %2636 = vmatpush.bf16.msra.mxu0 %v2627
        %2637 = vmatpush.bf16.msra.mxu0 %v2626
        %2638 = vmatpush.bf16.msra.mxu0 %v2625
        %2639 = vmatpush.bf16.msra.mxu0 %v2624
        %2640 = vmatpush.bf16.msra.mxu0 %v2623
        %2641 = vmatpush.bf16.msra.mxu0 %v2622
        %2642 = vmatpush.bf16.msra.mxu0 %v2621
        %2643 = vmatpush.bf16.msra.mxu0 %v2620
        %2644 = vmatmul.bf16.gmra.mxu0 %v2567
        %v2645 = vpop.f32.mrf.mxu0
        %v2646 = vadd.f32 %v2586, %v2645
        %v2647 = vpop.f32.mrf.mxu0
        %v2648 = vadd.f32 %v2586, %v2647
        %2649 = vdwg.mxu0
        %v2650 = vpack.c.bf16 %v1613, %v1612
        %v2651 = vld [vmem:[%s1316] sm:$0xff]
        %v2652 = vld [vmem:[%s1316 + $0x8] sm:$0xff]
        %v2653 = vld [vmem:[%s1316 + $0x10] sm:$0xff]
        %v2654 = vld [vmem:[%s1316 + $0x18] sm:$0xff]
        %v2655 = vld [vmem:[%s1316 + $0x20] sm:$0xff]
        %v2656 = vld [vmem:[%s1316 + $0x28] sm:$0xff]
        %v2657 = vld [vmem:[%s1316 + $0x30] sm:$0xff]
        %v2658 = vld [vmem:[%s1316 + $0x38] sm:$0xff]
        %v2659 = vld [vmem:[%s1316 + $0x40] sm:$0xff]
        %v2660 = vld [vmem:[%s1316 + $0x48] sm:$0xff]
        %v2661 = vld [vmem:[%s1316 + $0x50] sm:$0xff]
        %v2662 = vld [vmem:[%s1316 + $0x58] sm:$0xff]
        %v2663 = vld [vmem:[%s1316 + $0x60] sm:$0xff]
        %v2664 = vld [vmem:[%s1316 + $0x68] sm:$0xff]
        %v2665 = vld [vmem:[%s1316 + $0x70] sm:$0xff]
        %v2666 = vld [vmem:[%s1316 + $0x78] sm:$0xff]
        %v2667 = vld [vmem:[%s1326] sm:$0x3]
        %v2669 = vperm.slane %v2667, 0
        %v2670 = vperm.slane %v2667, 1
        %v2689 = vunpack.c.l.b16 %v2651
        %v2690 = vunpack.c.h.b16 %v2651
        %v2691 = vunpack.c.l.b16 %v2652
        %v2692 = vunpack.c.h.b16 %v2652
        %v2693 = vunpack.c.l.b16 %v2653
        %v2694 = vunpack.c.h.b16 %v2653
        %v2695 = vunpack.c.l.b16 %v2654
        %v2696 = vunpack.c.h.b16 %v2654
        %v2697 = vunpack.c.l.b16 %v2655
        %v2698 = vunpack.c.h.b16 %v2655
        %v2699 = vunpack.c.l.b16 %v2656
        %v2700 = vunpack.c.h.b16 %v2656
        %v2701 = vunpack.c.l.b16 %v2657
        %v2702 = vunpack.c.h.b16 %v2657
        %v2703 = vunpack.c.l.b16 %v2658
        %v2704 = vunpack.c.h.b16 %v2658
        %v2705 = vunpack.c.l.b16 %v2659
        %v2706 = vunpack.c.h.b16 %v2659
        %v2707 = vunpack.c.l.b16 %v2660
        %v2708 = vunpack.c.h.b16 %v2660
        %v2709 = vunpack.c.l.b16 %v2661
        %v2710 = vunpack.c.h.b16 %v2661
        %v2711 = vunpack.c.l.b16 %v2662
        %v2712 = vunpack.c.h.b16 %v2662
        %v2713 = vunpack.c.l.b16 %v2663
        %v2714 = vunpack.c.h.b16 %v2663
        %v2715 = vunpack.c.l.b16 %v2664
        %v2716 = vunpack.c.h.b16 %v2664
        %v2717 = vunpack.c.l.b16 %v2665
        %v2718 = vunpack.c.h.b16 %v2665
        %v2719 = vunpack.c.l.b16 %v2666
        %v2720 = vunpack.c.h.b16 %v2666
        %v2721 = vpack.c.b16 %v2691, %v2689
        %v2722 = vpack.c.b16 %v2692, %v2690
        %v2723 = vpack.c.b16 %v2695, %v2693
        %v2724 = vpack.c.b16 %v2696, %v2694
        %v2725 = vpack.c.b16 %v2699, %v2697
        %v2726 = vpack.c.b16 %v2700, %v2698
        %v2727 = vpack.c.b16 %v2703, %v2701
        %v2728 = vpack.c.b16 %v2704, %v2702
        %v2729 = vpack.c.b16 %v2707, %v2705
        %v2730 = vpack.c.b16 %v2708, %v2706
        %v2731 = vpack.c.b16 %v2711, %v2709
        %v2732 = vpack.c.b16 %v2712, %v2710
        %v2733 = vpack.c.b16 %v2715, %v2713
        %v2734 = vpack.c.b16 %v2716, %v2714
        %v2735 = vpack.c.b16 %v2719, %v2717
        %v2736 = vpack.c.b16 %v2720, %v2718
        %2753 = vmatpush.bf16.msra.mxu0 %v2735
        %2754 = vmatpush.bf16.msra.mxu0 %v2733
        %2755 = vmatpush.bf16.msra.mxu0 %v2731
        %2756 = vmatpush.bf16.msra.mxu0 %v2729
        %2757 = vmatpush.bf16.msra.mxu0 %v2727
        %2758 = vmatpush.bf16.msra.mxu0 %v2725
        %2759 = vmatpush.bf16.msra.mxu0 %v2723
        %2760 = vmatpush.bf16.msra.mxu0 %v2721
        %2761 = vmatmul.bf16.gmra.mxu0 %v2650
        %v2762 = vpop.f32.mrf.mxu0
        %v2763 = vadd.f32 %v2669, %v2762
        %v2764 = vpop.f32.mrf.mxu0
        %v2765 = vadd.f32 %v2669, %v2764
        %2766 = vdwg.mxu0
        %2767 = vmatpush.bf16.msra.mxu0 %v2736
        %2768 = vmatpush.bf16.msra.mxu0 %v2734
        %2769 = vmatpush.bf16.msra.mxu0 %v2732
        %2770 = vmatpush.bf16.msra.mxu0 %v2730
        %2771 = vmatpush.bf16.msra.mxu0 %v2728
        %2772 = vmatpush.bf16.msra.mxu0 %v2726
        %2773 = vmatpush.bf16.msra.mxu0 %v2724
        %2774 = vmatpush.bf16.msra.mxu0 %v2722
        %2775 = vmatmul.bf16.gmra.mxu0 %v2650
        %v2776 = vpop.f32.mrf.mxu0
        %v2777 = vadd.f32 %v2670, %v2776
        %v2778 = vpop.f32.mrf.mxu0
        %v2779 = vadd.f32 %v2670, %v2778
        %2780 = vdwg.mxu0
        %v2781 = vld [vmem:[%s1336] sm:$0xf]
        %v2782 = vld [vmem:[%s1336 + $0x4] sm:$0xf]
        %v2783 = vld [vmem:[%s1336 + $0x8] sm:$0xf]
        %v2784 = vld [vmem:[%s1336 + $0xc] sm:$0xf]
        %v2785 = vld [vmem:[%s1336 + $0x10] sm:$0xf]
        %v2786 = vld [vmem:[%s1336 + $0x14] sm:$0xf]
        %v2787 = vld [vmem:[%s1336 + $0x18] sm:$0xf]
        %v2788 = vld [vmem:[%s1336 + $0x1c] sm:$0xf]
        %v2789 = vld [vmem:[%s1336 + $0x20] sm:$0xf]
        %v2790 = vld [vmem:[%s1336 + $0x24] sm:$0xf]
        %v2791 = vld [vmem:[%s1336 + $0x28] sm:$0xf]
        %v2792 = vld [vmem:[%s1336 + $0x2c] sm:$0xf]
        %v2793 = vld [vmem:[%s1336 + $0x30] sm:$0xf]
        %v2794 = vld [vmem:[%s1336 + $0x34] sm:$0xf]
        %v2795 = vld [vmem:[%s1336 + $0x38] sm:$0xf]
        %v2796 = vld [vmem:[%s1336 + $0x3c] sm:$0xf]
        %v2797 = vpack.c.bf16 %v2646, %v2646
        %v2798 = vpack.c.bf16 %v2763, %v2763
        %v2799 = vpack.c.bf16 %v2777, %v2777
        %vm2800 = vcmp.gt.f32.partialorder %v1616, 0.0
        %v2801 = vsel %vm2800, 0.0, -1e+09
        %v2803 = vsel %vm1850, %v2797, 0
        %v2806 = vsel %vm1850, %v2798, 0
        %2808 = vmatpush.bf16.xpose.msra.mxu0 0
        %2809 = vmatpush.bf16.xpose.msra.mxu0 0
        %2810 = vmatpush.bf16.xpose.msra.mxu0 0
        %2811 = vmatpush.bf16.xpose.msra.mxu0 0
        %2812 = vmatpush.bf16.xpose.msra.mxu0 0
        %2813 = vmatpush.bf16.xpose.msra.mxu0 0
        %2814 = vmatpush.bf16.xpose.msra.mxu0 0
        %2815 = vmatpush.bf16.xpose.msra.mxu0 %v2806
        %2816 = vmatmul.bf16.gmra.mxu0 %v2803
        %v2817 = vpop.f32.mrf.mxu0
        %v2818 = vadd.f32 %v2801, %v2817
        %v2819 = vpop.f32.mrf.mxu0
        %2820 = vdwg.mxu0
        %v2821 = vsel %vm1870, %v2818, -inf
        %2822 = vmax.xlane.f32.xlu0 %v2821
        %v2823 = vpop.xlane.xlu0 %2822
        %v2824 = vsub.f32 %v2818, %v2823
        %v2825 = vmul.f32 %v2824, 1.442695
        %v2826 = vpow.pop %v2825
        %v2827 = vsel %vm1870, %v2826, 0.0
        %2828 = vadd.xlane.f32.xlu0 %v2827
        %v2829 = vpop.xlane.xlu0 %2828
        %v2830 = vrcp.pop %v2829
        %v2831 = vmul.f32 %v2826, %v2830
        %v2832 = vpack.c.bf16 %v2831, %v2831
        %v2834 = vsel %vm1870, %v2832, 0
        %v2837 = vsel %vm1886, %v2799, 0
        %2839 = vmatpush.bf16.msra.mxu0 0
        %2840 = vmatpush.bf16.msra.mxu0 0
        %2841 = vmatpush.bf16.msra.mxu0 0
        %2842 = vmatpush.bf16.msra.mxu0 0
        %2843 = vmatpush.bf16.msra.mxu0 0
        %2844 = vmatpush.bf16.msra.mxu0 0
        %2845 = vmatpush.bf16.msra.mxu0 0
        %2846 = vmatpush.bf16.msra.mxu0 %v2837
        %2847 = vmatmul.bf16.gmra.mxu0 %v2834
        %v2848 = vpop.f32.mrf.mxu0
        %v2849 = vadd.f32 0.0, %v2848
        %v2850 = vpop.f32.mrf.mxu0
        %2851 = vdwg.mxu0
        %v2852 = vpack.c.bf16 %v2849, %v2849
        %v2854 = vunpack.c.l.b16 %v2797
        %v2855 = vpack.c.b16 %v2854, %v2854
        %2856 = vrot.lane.b32.xlu0 %v2855, 96
        %v2857 = vpop.permute.xlu0 %2856
        %v2859 = vunpack.c.l.b16 %v2798
        %v2860 = vpack.c.b16 %v2859, %v2859
        %2861 = vrot.lane.b32.xlu0 %v2860, 96
        %v2862 = vpop.permute.xlu0 %2861
        %v2864 = vsel %vm1850, %v2857, 0
        %v2867 = vsel %vm1850, %v2862, 0
        %2869 = vmatpush.bf16.xpose.msra.mxu0 0
        %2870 = vmatpush.bf16.xpose.msra.mxu0 0
        %2871 = vmatpush.bf16.xpose.msra.mxu0 0
        %2872 = vmatpush.bf16.xpose.msra.mxu0 0
        %2873 = vmatpush.bf16.xpose.msra.mxu0 0
        %2874 = vmatpush.bf16.xpose.msra.mxu0 0
        %2875 = vmatpush.bf16.xpose.msra.mxu0 0
        %2876 = vmatpush.bf16.xpose.msra.mxu0 %v2867
        %2877 = vmatmul.bf16.gmra.mxu0 %v2864
        %v2878 = vpop.f32.mrf.mxu0
        %v2879 = vadd.f32 %v2801, %v2878
        %v2880 = vpop.f32.mrf.mxu0
        %2881 = vdwg.mxu0
        %v2882 = vsel %vm1870, %v2879, -inf
        %2883 = vmax.xlane.f32.xlu0 %v2882
        %v2884 = vpop.xlane.xlu0 %2883
        %v2885 = vsub.f32 %v2879, %v2884
        %v2886 = vmul.f32 %v2885, 1.442695
        %v2887 = vpow.pop %v2886
        %v2888 = vsel %vm1870, %v2887, 0.0
        %2889 = vadd.xlane.f32.xlu0 %v2888
        %v2890 = vpop.xlane.xlu0 %2889
        %v2891 = vrcp.pop %v2890
        %v2892 = vmul.f32 %v2887, %v2891
        %v2893 = vpack.c.bf16 %v2892, %v2892
        %v2895 = vunpack.c.l.b16 %v2799
        %v2896 = vpack.c.b16 %v2895, %v2895
        %2897 = vrot.lane.b32.xlu0 %v2896, 96
        %v2898 = vpop.permute.xlu0 %2897
        %v2900 = vsel %vm1870, %v2893, 0
        %v2903 = vsel %vm1886, %v2898, 0
        %2905 = vmatpush.bf16.msra.mxu0 0
        %2906 = vmatpush.bf16.msra.mxu0 0
        %2907 = vmatpush.bf16.msra.mxu0 0
        %2908 = vmatpush.bf16.msra.mxu0 0
        %2909 = vmatpush.bf16.msra.mxu0 0
        %2910 = vmatpush.bf16.msra.mxu0 0
        %2911 = vmatpush.bf16.msra.mxu0 0
        %2912 = vmatpush.bf16.msra.mxu0 %v2903
        %2913 = vmatmul.bf16.gmra.mxu0 %v2900
        %v2914 = vpop.f32.mrf.mxu0
        %v2915 = vadd.f32 0.0, %v2914
        %v2916 = vpop.f32.mrf.mxu0
        %2917 = vdwg.mxu0
        %v2918 = vpack.c.bf16 %v2915, %v2915
        %v2923 = vunpack.c.l.b16 %v2785
        %v2924 = vunpack.c.l.b16 %v2786
        %v2925 = vunpack.c.l.b16 %v2787
        %v2926 = vunpack.c.l.b16 %v2788
        %v2927 = vpack.c.b16 %v2924, %v2923
        %v2928 = vpack.c.b16 %v2926, %v2925
        %v2932 = vsel %vm1850, %v2918, 0
        %2934 = vmatpush.bf16.msra.mxu0 0
        %2935 = vmatpush.bf16.msra.mxu0 0
        %2936 = vmatpush.bf16.msra.mxu0 0
        %2937 = vmatpush.bf16.msra.mxu0 0
        %2938 = vmatpush.bf16.msra.mxu0 0
        %2939 = vmatpush.bf16.msra.mxu0 0
        %2940 = vmatpush.bf16.msra.mxu0 %v2928
        %2941 = vmatpush.bf16.msra.mxu0 %v2927
        %2942 = vmatmul.bf16.gmra.mxu0 %v2932
        %v2943 = vpop.f32.mrf.mxu0
        %v2944 = vadd.f32 0.0, %v2943
        %v2945 = vpop.f32.mrf.mxu0
        %2946 = vdwg.mxu0
        %v2951 = vunpack.c.l.b16 %v2781
        %v2952 = vunpack.c.l.b16 %v2782
        %v2953 = vunpack.c.l.b16 %v2783
        %v2954 = vunpack.c.l.b16 %v2784
        %v2955 = vpack.c.b16 %v2952, %v2951
        %v2956 = vpack.c.b16 %v2954, %v2953
        %v2960 = vsel %vm1850, %v2852, 0
        %2962 = vmatpush.bf16.msra.mxu0 0
        %2963 = vmatpush.bf16.msra.mxu0 0
        %2964 = vmatpush.bf16.msra.mxu0 0
        %2965 = vmatpush.bf16.msra.mxu0 0
        %2966 = vmatpush.bf16.msra.mxu0 0
        %2967 = vmatpush.bf16.msra.mxu0 0
        %2968 = vmatpush.bf16.msra.mxu0 %v2956
        %2969 = vmatpush.bf16.msra.mxu0 %v2955
        %2970 = vmatmul.bf16.gmra.mxu0 %v2960
        %v2971 = vpop.f32.mrf.mxu0
        %v2972 = vadd.f32 %v2944, %v2971
        %v2973 = vpop.f32.mrf.mxu0
        %2974 = vdwg.mxu0
        %2975 = vrot.lane.b32.xlu0 %v2855, 64
        %v2976 = vpop.permute.xlu0 %2975
        %2977 = vrot.lane.b32.xlu0 %v2860, 64
        %v2978 = vpop.permute.xlu0 %2977
        %v2980 = vsel %vm1850, %v2976, 0
        %v2983 = vsel %vm1850, %v2978, 0
        %2985 = vmatpush.bf16.xpose.msra.mxu0 0
        %2986 = vmatpush.bf16.xpose.msra.mxu0 0
        %2987 = vmatpush.bf16.xpose.msra.mxu0 0
        %2988 = vmatpush.bf16.xpose.msra.mxu0 0
        %2989 = vmatpush.bf16.xpose.msra.mxu0 0
        %2990 = vmatpush.bf16.xpose.msra.mxu0 0
        %2991 = vmatpush.bf16.xpose.msra.mxu0 0
        %2992 = vmatpush.bf16.xpose.msra.mxu0 %v2983
        %2993 = vmatmul.bf16.gmra.mxu0 %v2980
        %v2994 = vpop.f32.mrf.mxu0
        %v2995 = vadd.f32 %v2801, %v2994
        %v2996 = vpop.f32.mrf.mxu0
        %2997 = vdwg.mxu0
        %v2998 = vsel %vm1870, %v2995, -inf
        %2999 = vmax.xlane.f32.xlu0 %v2998
        %v3000 = vpop.xlane.xlu0 %2999
        %v3001 = vsub.f32 %v2995, %v3000
        %v3002 = vmul.f32 %v3001, 1.442695
        %v3003 = vpow.pop %v3002
        %v3004 = vsel %vm1870, %v3003, 0.0
        %3005 = vadd.xlane.f32.xlu0 %v3004
        %v3006 = vpop.xlane.xlu0 %3005
        %v3007 = vrcp.pop %v3006
        %v3008 = vmul.f32 %v3003, %v3007
        %v3009 = vpack.c.bf16 %v3008, %v3008
        %3010 = vrot.lane.b32.xlu0 %v2896, 64
        %v3011 = vpop.permute.xlu0 %3010
        %v3013 = vsel %vm1870, %v3009, 0
        %v3016 = vsel %vm1886, %v3011, 0
        %3018 = vmatpush.bf16.msra.mxu0 0
        %3019 = vmatpush.bf16.msra.mxu0 0
        %3020 = vmatpush.bf16.msra.mxu0 0
        %3021 = vmatpush.bf16.msra.mxu0 0
        %3022 = vmatpush.bf16.msra.mxu0 0
        %3023 = vmatpush.bf16.msra.mxu0 0
        %3024 = vmatpush.bf16.msra.mxu0 0
        %3025 = vmatpush.bf16.msra.mxu0 %v3016
        %3026 = vmatmul.bf16.gmra.mxu0 %v3013
        %v3027 = vpop.f32.mrf.mxu0
        %v3028 = vadd.f32 0.0, %v3027
        %v3029 = vpop.f32.mrf.mxu0
        %3030 = vdwg.mxu0
        %v3031 = vpack.c.bf16 %v3028, %v3028
        %v3036 = vunpack.c.l.b16 %v2789
        %v3037 = vunpack.c.l.b16 %v2790
        %v3038 = vunpack.c.l.b16 %v2791
        %v3039 = vunpack.c.l.b16 %v2792
        %v3040 = vpack.c.b16 %v3037, %v3036
        %v3041 = vpack.c.b16 %v3039, %v3038
        %v3045 = vsel %vm1850, %v3031, 0
        %3047 = vmatpush.bf16.msra.mxu0 0
        %3048 = vmatpush.bf16.msra.mxu0 0
        %3049 = vmatpush.bf16.msra.mxu0 0
        %3050 = vmatpush.bf16.msra.mxu0 0
        %3051 = vmatpush.bf16.msra.mxu0 0
        %3052 = vmatpush.bf16.msra.mxu0 0
        %3053 = vmatpush.bf16.msra.mxu0 %v3041
        %3054 = vmatpush.bf16.msra.mxu0 %v3040
        %3055 = vmatmul.bf16.gmra.mxu0 %v3045
        %v3056 = vpop.f32.mrf.mxu0
        %v3057 = vadd.f32 0.0, %v3056
        %v3058 = vpop.f32.mrf.mxu0
        %3059 = vdwg.mxu0
        %v3060 = vadd.f32 %v2972, %v3057
        %3061 = vrot.lane.b32.xlu0 %v2855, 32
        %v3062 = vpop.permute.xlu0 %3061
        %3063 = vrot.lane.b32.xlu0 %v2860, 32
        %v3064 = vpop.permute.xlu0 %3063
        %v3066 = vsel %vm1850, %v3062, 0
        %v3069 = vsel %vm1850, %v3064, 0
        %3071 = vmatpush.bf16.xpose.msra.mxu0 0
        %3072 = vmatpush.bf16.xpose.msra.mxu0 0
        %3073 = vmatpush.bf16.xpose.msra.mxu0 0
        %3074 = vmatpush.bf16.xpose.msra.mxu0 0
        %3075 = vmatpush.bf16.xpose.msra.mxu0 0
        %3076 = vmatpush.bf16.xpose.msra.mxu0 0
        %3077 = vmatpush.bf16.xpose.msra.mxu0 0
        %3078 = vmatpush.bf16.xpose.msra.mxu0 %v3069
        %3079 = vmatmul.bf16.gmra.mxu0 %v3066
        %v3080 = vpop.f32.mrf.mxu0
        %v3081 = vadd.f32 %v2801, %v3080
        %v3082 = vpop.f32.mrf.mxu0
        %3083 = vdwg.mxu0
        %v3084 = vsel %vm1870, %v3081, -inf
        %3085 = vmax.xlane.f32.xlu0 %v3084
        %v3086 = vpop.xlane.xlu0 %3085
        %v3087 = vsub.f32 %v3081, %v3086
        %v3088 = vmul.f32 %v3087, 1.442695
        %v3089 = vpow.pop %v3088
        %v3090 = vsel %vm1870, %v3089, 0.0
        %3091 = vadd.xlane.f32.xlu0 %v3090
        %v3092 = vpop.xlane.xlu0 %3091
        %v3093 = vrcp.pop %v3092
        %v3094 = vmul.f32 %v3089, %v3093
        %v3095 = vpack.c.bf16 %v3094, %v3094
        %3096 = vrot.lane.b32.xlu0 %v2896, 32
        %v3097 = vpop.permute.xlu0 %3096
        %v3099 = vsel %vm1870, %v3095, 0
        %v3102 = vsel %vm1886, %v3097, 0
        %3104 = vmatpush.bf16.msra.mxu0 0
        %3105 = vmatpush.bf16.msra.mxu0 0
        %3106 = vmatpush.bf16.msra.mxu0 0
        %3107 = vmatpush.bf16.msra.mxu0 0
        %3108 = vmatpush.bf16.msra.mxu0 0
        %3109 = vmatpush.bf16.msra.mxu0 0
        %3110 = vmatpush.bf16.msra.mxu0 0
        %3111 = vmatpush.bf16.msra.mxu0 %v3102
        %3112 = vmatmul.bf16.gmra.mxu0 %v3099
        %v3113 = vpop.f32.mrf.mxu0
        %v3114 = vadd.f32 0.0, %v3113
        %v3115 = vpop.f32.mrf.mxu0
        %3116 = vdwg.mxu0
        %v3117 = vpack.c.bf16 %v3114, %v3114
        %v3122 = vunpack.c.l.b16 %v2793
        %v3123 = vunpack.c.l.b16 %v2794
        %v3124 = vunpack.c.l.b16 %v2795
        %v3125 = vunpack.c.l.b16 %v2796
        %v3126 = vpack.c.b16 %v3123, %v3122
        %v3127 = vpack.c.b16 %v3125, %v3124
        %v3131 = vsel %vm1850, %v3117, 0
        %3133 = vmatpush.bf16.msra.mxu0 0
        %3134 = vmatpush.bf16.msra.mxu0 0
        %3135 = vmatpush.bf16.msra.mxu0 0
        %3136 = vmatpush.bf16.msra.mxu0 0
        %3137 = vmatpush.bf16.msra.mxu0 0
        %3138 = vmatpush.bf16.msra.mxu0 0
        %3139 = vmatpush.bf16.msra.mxu0 %v3127
        %3140 = vmatpush.bf16.msra.mxu0 %v3126
        %3141 = vmatmul.bf16.gmra.mxu0 %v3131
        %v3142 = vpop.f32.mrf.mxu0
        %v3143 = vadd.f32 0.0, %v3142
        %v3144 = vpop.f32.mrf.mxu0
        %3145 = vdwg.mxu0
        %v3146 = vadd.f32 %v3060, %v3143
        %v3147 = vpack.c.bf16 %v2648, %v2648
        %v3148 = vpack.c.bf16 %v2765, %v2765
        %v3149 = vpack.c.bf16 %v2779, %v2779
        %vm3150 = vcmp.gt.f32.partialorder %v1617, 0.0
        %v3151 = vsel %vm3150, 0.0, -1e+09
        %v3153 = vsel %vm1850, %v3147, 0
        %v3156 = vsel %vm1850, %v3148, 0
        %3158 = vmatpush.bf16.xpose.msra.mxu0 0
        %3159 = vmatpush.bf16.xpose.msra.mxu0 0
        %3160 = vmatpush.bf16.xpose.msra.mxu0 0
        %3161 = vmatpush.bf16.xpose.msra.mxu0 0
        %3162 = vmatpush.bf16.xpose.msra.mxu0 0
        %3163 = vmatpush.bf16.xpose.msra.mxu0 0
        %3164 = vmatpush.bf16.xpose.msra.mxu0 0
        %3165 = vmatpush.bf16.xpose.msra.mxu0 %v3156
        %3166 = vmatmul.bf16.gmra.mxu0 %v3153
        %v3167 = vpop.f32.mrf.mxu0
        %v3168 = vadd.f32 %v3151, %v3167
        %v3169 = vpop.f32.mrf.mxu0
        %3170 = vdwg.mxu0
        %v3171 = vsel %vm1870, %v3168, -inf
        %3172 = vmax.xlane.f32.xlu0 %v3171
        %v3173 = vpop.xlane.xlu0 %3172
        %v3174 = vsub.f32 %v3168, %v3173
        %v3175 = vmul.f32 %v3174, 1.442695
        %v3176 = vpow.pop %v3175
        %v3177 = vsel %vm1870, %v3176, 0.0
        %3178 = vadd.xlane.f32.xlu0 %v3177
        %v3179 = vpop.xlane.xlu0 %3178
        %v3180 = vrcp.pop %v3179
        %v3181 = vmul.f32 %v3176, %v3180
        %v3182 = vpack.c.bf16 %v3181, %v3181
        %v3184 = vsel %vm1870, %v3182, 0
        %v3187 = vsel %vm1886, %v3149, 0
        %3189 = vmatpush.bf16.msra.mxu0 0
        %3190 = vmatpush.bf16.msra.mxu0 0
        %3191 = vmatpush.bf16.msra.mxu0 0
        %3192 = vmatpush.bf16.msra.mxu0 0
        %3193 = vmatpush.bf16.msra.mxu0 0
        %3194 = vmatpush.bf16.msra.mxu0 0
        %3195 = vmatpush.bf16.msra.mxu0 0
        %3196 = vmatpush.bf16.msra.mxu0 %v3187
        %3197 = vmatmul.bf16.gmra.mxu0 %v3184
        %v3198 = vpop.f32.mrf.mxu0
        %v3199 = vadd.f32 0.0, %v3198
        %v3200 = vpop.f32.mrf.mxu0
        %3201 = vdwg.mxu0
        %v3202 = vpack.c.bf16 %v3199, %v3199
        %v3204 = vunpack.c.l.b16 %v3147
        %v3205 = vpack.c.b16 %v3204, %v3204
        %3206 = vrot.lane.b32.xlu0 %v3205, 96
        %v3207 = vpop.permute.xlu0 %3206
        %v3209 = vunpack.c.l.b16 %v3148
        %v3210 = vpack.c.b16 %v3209, %v3209
        %3211 = vrot.lane.b32.xlu0 %v3210, 96
        %v3212 = vpop.permute.xlu0 %3211
        %v3214 = vsel %vm1850, %v3207, 0
        %v3217 = vsel %vm1850, %v3212, 0
        %3219 = vmatpush.bf16.xpose.msra.mxu0 0
        %3220 = vmatpush.bf16.xpose.msra.mxu0 0
        %3221 = vmatpush.bf16.xpose.msra.mxu0 0
        %3222 = vmatpush.bf16.xpose.msra.mxu0 0
        %3223 = vmatpush.bf16.xpose.msra.mxu0 0
        %3224 = vmatpush.bf16.xpose.msra.mxu0 0
        %3225 = vmatpush.bf16.xpose.msra.mxu0 0
        %3226 = vmatpush.bf16.xpose.msra.mxu0 %v3217
        %3227 = vmatmul.bf16.gmra.mxu0 %v3214
        %v3228 = vpop.f32.mrf.mxu0
        %v3229 = vadd.f32 %v3151, %v3228
        %v3230 = vpop.f32.mrf.mxu0
        %3231 = vdwg.mxu0
        %v3232 = vsel %vm1870, %v3229, -inf
        %3233 = vmax.xlane.f32.xlu0 %v3232
        %v3234 = vpop.xlane.xlu0 %3233
        %v3235 = vsub.f32 %v3229, %v3234
        %v3236 = vmul.f32 %v3235, 1.442695
        %v3237 = vpow.pop %v3236
        %v3238 = vsel %vm1870, %v3237, 0.0
        %3239 = vadd.xlane.f32.xlu0 %v3238
        %v3240 = vpop.xlane.xlu0 %3239
        %v3241 = vrcp.pop %v3240
        %v3242 = vmul.f32 %v3237, %v3241
        %v3243 = vpack.c.bf16 %v3242, %v3242
        %v3245 = vunpack.c.l.b16 %v3149
        %v3246 = vpack.c.b16 %v3245, %v3245
        %3247 = vrot.lane.b32.xlu0 %v3246, 96
        %v3248 = vpop.permute.xlu0 %3247
        %v3250 = vsel %vm1870, %v3243, 0
        %v3253 = vsel %vm1886, %v3248, 0
        %3255 = vmatpush.bf16.msra.mxu0 0
        %3256 = vmatpush.bf16.msra.mxu0 0
        %3257 = vmatpush.bf16.msra.mxu0 0
        %3258 = vmatpush.bf16.msra.mxu0 0
        %3259 = vmatpush.bf16.msra.mxu0 0
        %3260 = vmatpush.bf16.msra.mxu0 0
        %3261 = vmatpush.bf16.msra.mxu0 0
        %3262 = vmatpush.bf16.msra.mxu0 %v3253
        %3263 = vmatmul.bf16.gmra.mxu0 %v3250
        %v3264 = vpop.f32.mrf.mxu0
        %v3265 = vadd.f32 0.0, %v3264
        %v3266 = vpop.f32.mrf.mxu0
        %3267 = vdwg.mxu0
        %v3268 = vpack.c.bf16 %v3265, %v3265
        %v3270 = vsel %vm1850, %v3268, 0
        %3272 = vmatpush.bf16.msra.mxu0 0
        %3273 = vmatpush.bf16.msra.mxu0 0
        %3274 = vmatpush.bf16.msra.mxu0 0
        %3275 = vmatpush.bf16.msra.mxu0 0
        %3276 = vmatpush.bf16.msra.mxu0 0
        %3277 = vmatpush.bf16.msra.mxu0 0
        %3278 = vmatpush.bf16.msra.mxu0 %v2928
        %3279 = vmatpush.bf16.msra.mxu0 %v2927
        %3280 = vmatmul.bf16.gmra.mxu0 %v3270
        %v3281 = vpop.f32.mrf.mxu0
        %v3282 = vadd.f32 0.0, %v3281
        %v3283 = vpop.f32.mrf.mxu0
        %3284 = vdwg.mxu0
        %v3286 = vsel %vm1850, %v3202, 0
        %3288 = vmatpush.bf16.msra.mxu0 0
        %3289 = vmatpush.bf16.msra.mxu0 0
        %3290 = vmatpush.bf16.msra.mxu0 0
        %3291 = vmatpush.bf16.msra.mxu0 0
        %3292 = vmatpush.bf16.msra.mxu0 0
        %3293 = vmatpush.bf16.msra.mxu0 0
        %3294 = vmatpush.bf16.msra.mxu0 %v2956
        %3295 = vmatpush.bf16.msra.mxu0 %v2955
        %3296 = vmatmul.bf16.gmra.mxu0 %v3286
        %v3297 = vpop.f32.mrf.mxu0
        %v3298 = vadd.f32 %v3282, %v3297
        %v3299 = vpop.f32.mrf.mxu0
        %3300 = vdwg.mxu0
        %3301 = vrot.lane.b32.xlu0 %v3205, 64
        %v3302 = vpop.permute.xlu0 %3301
        %3303 = vrot.lane.b32.xlu0 %v3210, 64
        %v3304 = vpop.permute.xlu0 %3303
        %v3306 = vsel %vm1850, %v3302, 0
        %v3309 = vsel %vm1850, %v3304, 0
        %3311 = vmatpush.bf16.xpose.msra.mxu0 0
        %3312 = vmatpush.bf16.xpose.msra.mxu0 0
        %3313 = vmatpush.bf16.xpose.msra.mxu0 0
        %3314 = vmatpush.bf16.xpose.msra.mxu0 0
        %3315 = vmatpush.bf16.xpose.msra.mxu0 0
        %3316 = vmatpush.bf16.xpose.msra.mxu0 0
        %3317 = vmatpush.bf16.xpose.msra.mxu0 0
        %3318 = vmatpush.bf16.xpose.msra.mxu0 %v3309
        %3319 = vmatmul.bf16.gmra.mxu0 %v3306
        %v3320 = vpop.f32.mrf.mxu0
        %v3321 = vadd.f32 %v3151, %v3320
        %v3322 = vpop.f32.mrf.mxu0
        %3323 = vdwg.mxu0
        %v3324 = vsel %vm1870, %v3321, -inf
        %3325 = vmax.xlane.f32.xlu0 %v3324
        %v3326 = vpop.xlane.xlu0 %3325
        %v3327 = vsub.f32 %v3321, %v3326
        %v3328 = vmul.f32 %v3327, 1.442695
        %v3329 = vpow.pop %v3328
        %v3330 = vsel %vm1870, %v3329, 0.0
        %3331 = vadd.xlane.f32.xlu0 %v3330
        %v3332 = vpop.xlane.xlu0 %3331
        %v3333 = vrcp.pop %v3332
        %v3334 = vmul.f32 %v3329, %v3333
        %v3335 = vpack.c.bf16 %v3334, %v3334
        %3336 = vrot.lane.b32.xlu0 %v3246, 64
        %v3337 = vpop.permute.xlu0 %3336
        %v3339 = vsel %vm1870, %v3335, 0
        %v3342 = vsel %vm1886, %v3337, 0
        %3344 = vmatpush.bf16.msra.mxu0 0
        %3345 = vmatpush.bf16.msra.mxu0 0
        %3346 = vmatpush.bf16.msra.mxu0 0
        %3347 = vmatpush.bf16.msra.mxu0 0
        %3348 = vmatpush.bf16.msra.mxu0 0
        %3349 = vmatpush.bf16.msra.mxu0 0
        %3350 = vmatpush.bf16.msra.mxu0 0
        %3351 = vmatpush.bf16.msra.mxu0 %v3342
        %3352 = vmatmul.bf16.gmra.mxu0 %v3339
        %v3353 = vpop.f32.mrf.mxu0
        %v3354 = vadd.f32 0.0, %v3353
        %v3355 = vpop.f32.mrf.mxu0
        %3356 = vdwg.mxu0
        %v3357 = vpack.c.bf16 %v3354, %v3354
        %v3359 = vsel %vm1850, %v3357, 0
        %3361 = vmatpush.bf16.msra.mxu0 0
        %3362 = vmatpush.bf16.msra.mxu0 0
        %3363 = vmatpush.bf16.msra.mxu0 0
        %3364 = vmatpush.bf16.msra.mxu0 0
        %3365 = vmatpush.bf16.msra.mxu0 0
        %3366 = vmatpush.bf16.msra.mxu0 0
        %3367 = vmatpush.bf16.msra.mxu0 %v3041
        %3368 = vmatpush.bf16.msra.mxu0 %v3040
        %3369 = vmatmul.bf16.gmra.mxu0 %v3359
        %v3370 = vpop.f32.mrf.mxu0
        %v3371 = vadd.f32 0.0, %v3370
        %v3372 = vpop.f32.mrf.mxu0
        %3373 = vdwg.mxu0
        %v3374 = vadd.f32 %v3298, %v3371
        %3375 = vrot.lane.b32.xlu0 %v3205, 32
        %v3376 = vpop.permute.xlu0 %3375
        %3377 = vrot.lane.b32.xlu0 %v3210, 32
        %v3378 = vpop.permute.xlu0 %3377
        %v3380 = vsel %vm1850, %v3376, 0
        %v3383 = vsel %vm1850, %v3378, 0
        %3385 = vmatpush.bf16.xpose.msra.mxu0 0
        %3386 = vmatpush.bf16.xpose.msra.mxu0 0
        %3387 = vmatpush.bf16.xpose.msra.mxu0 0
        %3388 = vmatpush.bf16.xpose.msra.mxu0 0
        %3389 = vmatpush.bf16.xpose.msra.mxu0 0
        %3390 = vmatpush.bf16.xpose.msra.mxu0 0
        %3391 = vmatpush.bf16.xpose.msra.mxu0 0
        %3392 = vmatpush.bf16.xpose.msra.mxu0 %v3383
        %3393 = vmatmul.bf16.gmra.mxu0 %v3380
        %v3394 = vpop.f32.mrf.mxu0
        %v3395 = vadd.f32 %v3151, %v3394
        %v3396 = vpop.f32.mrf.mxu0
        %3397 = vdwg.mxu0
        %v3398 = vsel %vm1870, %v3395, -inf
        %3399 = vmax.xlane.f32.xlu0 %v3398
        %v3400 = vpop.xlane.xlu0 %3399
        %v3401 = vsub.f32 %v3395, %v3400
        %v3402 = vmul.f32 %v3401, 1.442695
        %v3403 = vpow.pop %v3402
        %v3404 = vsel %vm1870, %v3403, 0.0
        %3405 = vadd.xlane.f32.xlu0 %v3404
        %v3406 = vpop.xlane.xlu0 %3405
        %v3407 = vrcp.pop %v3406
        %v3408 = vmul.f32 %v3403, %v3407
        %v3409 = vpack.c.bf16 %v3408, %v3408
        %3410 = vrot.lane.b32.xlu0 %v3246, 32
        %v3411 = vpop.permute.xlu0 %3410
        %v3413 = vsel %vm1870, %v3409, 0
        %v3416 = vsel %vm1886, %v3411, 0
        %3418 = vmatpush.bf16.msra.mxu0 0
        %3419 = vmatpush.bf16.msra.mxu0 0
        %3420 = vmatpush.bf16.msra.mxu0 0
        %3421 = vmatpush.bf16.msra.mxu0 0
        %3422 = vmatpush.bf16.msra.mxu0 0
        %3423 = vmatpush.bf16.msra.mxu0 0
        %3424 = vmatpush.bf16.msra.mxu0 0
        %3425 = vmatpush.bf16.msra.mxu0 %v3416
        %3426 = vmatmul.bf16.gmra.mxu0 %v3413
        %v3427 = vpop.f32.mrf.mxu0
        %v3428 = vadd.f32 0.0, %v3427
        %v3429 = vpop.f32.mrf.mxu0
        %3430 = vdwg.mxu0
        %v3431 = vpack.c.bf16 %v3428, %v3428
        %v3433 = vsel %vm1850, %v3431, 0
        %3435 = vmatpush.bf16.msra.mxu0 0
        %3436 = vmatpush.bf16.msra.mxu0 0
        %3437 = vmatpush.bf16.msra.mxu0 0
        %3438 = vmatpush.bf16.msra.mxu0 0
        %3439 = vmatpush.bf16.msra.mxu0 0
        %3440 = vmatpush.bf16.msra.mxu0 0
        %3441 = vmatpush.bf16.msra.mxu0 %v3127
        %3442 = vmatpush.bf16.msra.mxu0 %v3126
        %3443 = vmatmul.bf16.gmra.mxu0 %v3433
        %v3444 = vpop.f32.mrf.mxu0
        %v3445 = vadd.f32 0.0, %v3444
        %v3446 = vpop.f32.mrf.mxu0
        %3447 = vdwg.mxu0
        %v3448 = vadd.f32 %v3374, %v3445
        %v3449 = vld [vmem:[%s1345] sm:$0x1]
        %v3451 = vperm.slane %v3449, 0
        %v3453 = vadd.f32 %v3146, %v3451
        %v3454 = vadd.f32 %v3448, %v3451
        %v3455 = vadd.f32 %v2565, %v3453
        %v3456 = vadd.f32 %v2566, %v3454
        %v3457 = vld [vmem:[%s1401] sm:$0x1]
        %v3458 = vld [vmem:[%s1410] sm:$0x1]
        %3459 = vadd.xlane.f32.xlu0 %v3455
        %v3460 = vpop.xlane.xlu0 %3459
        %3461 = vadd.xlane.f32.xlu0 %v3456
        %v3462 = vpop.xlane.xlu0 %3461
        %v3463 = vmul.f32 %v3460, %v2520
        %v3464 = vmul.f32 %v3462, %v2520
        %v3465 = vsub.f32 %v3455, %v3463
        %v3466 = vsub.f32 %v3456, %v3464
        %v3467 = vmul.f32 %v3465, %v3465
        %v3468 = vmul.f32 %v3466, %v3466
        %3469 = vadd.xlane.f32.xlu0 %v3467
        %v3470 = vpop.xlane.xlu0 %3469
        %3471 = vadd.xlane.f32.xlu0 %v3468
        %v3472 = vpop.xlane.xlu0 %3471
        %v3473 = vmul.f32 %v3470, %v2520
        %v3474 = vmul.f32 %v3472, %v2520
        %v3475 = vadd.f32 %v3473, 1e-05
        %v3476 = vadd.f32 %v3474, 1e-05
        %v3477 = vrsqrt.pop %v3475
        %v3478 = vmul.f32 %v3477, %v3475
        %v3479 = vmul.f32 %v3478, %v3477
        %v3480 = vmul.f32 0.5, %v3479
        %v3481 = vsub.f32 1.5, %v3480
        %v3482 = vmul.f32 %v3477, %v3481
        %vm3483 = vweird.f32 %v3475
        %vm3484 = vweird.f32 %v3477
        %vm3485 = vmor %vm3483, %vm3484
        %v3486 = vsel %vm3485, %v3477, %v3482
        %v3487 = vrsqrt.pop %v3476
        %v3488 = vmul.f32 %v3487, %v3476
        %v3489 = vmul.f32 %v3488, %v3487
        %v3490 = vmul.f32 0.5, %v3489
        %v3491 = vsub.f32 1.5, %v3490
        %v3492 = vmul.f32 %v3487, %v3491
        %vm3493 = vweird.f32 %v3476
        %vm3494 = vweird.f32 %v3487
        %vm3495 = vmor %vm3493, %vm3494
        %v3496 = vsel %vm3495, %v3487, %v3492
        %v3497 = vmul.f32 %v3465, %v3486
        %v3498 = vmul.f32 %v3466, %v3496
        %v3500 = vperm.slane %v3457, 0
        %v3502 = vmul.f32 %v3497, %v3500
        %v3503 = vmul.f32 %v3498, %v3500
        %v3505 = vperm.slane %v3458, 0
        %v3507 = vadd.f32 %v3502, %v3505
        %v3508 = vadd.f32 %v3503, %v3505
        %v3509 = vpack.c.bf16 %v3508, %v3507
        %v3510 = vld [vmem:[%s1355] sm:$0xff]
        %v3511 = vld [vmem:[%s1355 + $0x8] sm:$0xff]
        %v3512 = vld [vmem:[%s1355 + $0x10] sm:$0xff]
        %v3513 = vld [vmem:[%s1355 + $0x18] sm:$0xff]
        %v3514 = vld [vmem:[%s1355 + $0x20] sm:$0xff]
        %v3515 = vld [vmem:[%s1355 + $0x28] sm:$0xff]
        %v3516 = vld [vmem:[%s1355 + $0x30] sm:$0xff]
        %v3517 = vld [vmem:[%s1355 + $0x38] sm:$0xff]
        %v3518 = vld [vmem:[%s1355 + $0x40] sm:$0xff]
        %v3519 = vld [vmem:[%s1355 + $0x48] sm:$0xff]
        %v3520 = vld [vmem:[%s1355 + $0x50] sm:$0xff]
        %v3521 = vld [vmem:[%s1355 + $0x58] sm:$0xff]
        %v3522 = vld [vmem:[%s1355 + $0x60] sm:$0xff]
        %v3523 = vld [vmem:[%s1355 + $0x68] sm:$0xff]
        %v3524 = vld [vmem:[%s1355 + $0x70] sm:$0xff]
        %v3525 = vld [vmem:[%s1355 + $0x78] sm:$0xff]
        %v3526 = vld [vmem:[%s1599] sm:$0x3]
        %v3528 = vperm.slane %v3526, 0
        %v3529 = vperm.slane %v3526, 1
        %v3548 = vunpack.c.l.b16 %v3510
        %v3549 = vunpack.c.h.b16 %v3510
        %v3550 = vunpack.c.l.b16 %v3511
        %v3551 = vunpack.c.h.b16 %v3511
        %v3552 = vunpack.c.l.b16 %v3512
        %v3553 = vunpack.c.h.b16 %v3512
        %v3554 = vunpack.c.l.b16 %v3513
        %v3555 = vunpack.c.h.b16 %v3513
        %v3556 = vunpack.c.l.b16 %v3514
        %v3557 = vunpack.c.h.b16 %v3514
        %v3558 = vunpack.c.l.b16 %v3515
        %v3559 = vunpack.c.h.b16 %v3515
        %v3560 = vunpack.c.l.b16 %v3516
        %v3561 = vunpack.c.h.b16 %v3516
        %v3562 = vunpack.c.l.b16 %v3517
        %v3563 = vunpack.c.h.b16 %v3517
        %v3564 = vunpack.c.l.b16 %v3518
        %v3565 = vunpack.c.h.b16 %v3518
        %v3566 = vunpack.c.l.b16 %v3519
        %v3567 = vunpack.c.h.b16 %v3519
        %v3568 = vunpack.c.l.b16 %v3520
        %v3569 = vunpack.c.h.b16 %v3520
        %v3570 = vunpack.c.l.b16 %v3521
        %v3571 = vunpack.c.h.b16 %v3521
        %v3572 = vunpack.c.l.b16 %v3522
        %v3573 = vunpack.c.h.b16 %v3522
        %v3574 = vunpack.c.l.b16 %v3523
        %v3575 = vunpack.c.h.b16 %v3523
        %v3576 = vunpack.c.l.b16 %v3524
        %v3577 = vunpack.c.h.b16 %v3524
        %v3578 = vunpack.c.l.b16 %v3525
        %v3579 = vunpack.c.h.b16 %v3525
        %v3580 = vpack.c.b16 %v3550, %v3548
        %v3581 = vpack.c.b16 %v3551, %v3549
        %v3582 = vpack.c.b16 %v3554, %v3552
        %v3583 = vpack.c.b16 %v3555, %v3553
        %v3584 = vpack.c.b16 %v3558, %v3556
        %v3585 = vpack.c.b16 %v3559, %v3557
        %v3586 = vpack.c.b16 %v3562, %v3560
        %v3587 = vpack.c.b16 %v3563, %v3561
        %v3588 = vpack.c.b16 %v3566, %v3564
        %v3589 = vpack.c.b16 %v3567, %v3565
        %v3590 = vpack.c.b16 %v3570, %v3568
        %v3591 = vpack.c.b16 %v3571, %v3569
        %v3592 = vpack.c.b16 %v3574, %v3572
        %v3593 = vpack.c.b16 %v3575, %v3573
        %v3594 = vpack.c.b16 %v3578, %v3576
        %v3595 = vpack.c.b16 %v3579, %v3577
        %3612 = vmatpush.bf16.msra.mxu0 %v3594
        %3613 = vmatpush.bf16.msra.mxu0 %v3592
        %3614 = vmatpush.bf16.msra.mxu0 %v3590
        %3615 = vmatpush.bf16.msra.mxu0 %v3588
        %3616 = vmatpush.bf16.msra.mxu0 %v3586
        %3617 = vmatpush.bf16.msra.mxu0 %v3584
        %3618 = vmatpush.bf16.msra.mxu0 %v3582
        %3619 = vmatpush.bf16.msra.mxu0 %v3580
        %3620 = vmatmul.bf16.gmra.mxu0 %v3509
        %v3621 = vpop.f32.mrf.mxu0
        %v3622 = vadd.f32 %v3528, %v3621
        %v3623 = vpop.f32.mrf.mxu0
        %v3624 = vadd.f32 %v3528, %v3623
        %3625 = vdwg.mxu0
        %3626 = vmatpush.bf16.msra.mxu0 %v3595
        %3627 = vmatpush.bf16.msra.mxu0 %v3593
        %3628 = vmatpush.bf16.msra.mxu0 %v3591
        %3629 = vmatpush.bf16.msra.mxu0 %v3589
        %3630 = vmatpush.bf16.msra.mxu0 %v3587
        %3631 = vmatpush.bf16.msra.mxu0 %v3585
        %3632 = vmatpush.bf16.msra.mxu0 %v3583
        %3633 = vmatpush.bf16.msra.mxu0 %v3581
        %3634 = vmatmul.bf16.gmra.mxu0 %v3509
        %v3635 = vpop.f32.mrf.mxu0
        %v3636 = vadd.f32 %v3529, %v3635
        %v3637 = vpop.f32.mrf.mxu0
        %v3638 = vadd.f32 %v3529, %v3637
        %3639 = vdwg.mxu0
        %v3640 = vmax.f32 %v3622, 0.0
        %v3641 = vmax.f32 %v3636, 0.0
        %v3642 = vmax.f32 %v3624, 0.0
        %v3643 = vmax.f32 %v3638, 0.0
        %v3644 = vpack.c.bf16 %v3642, %v3640
        %v3645 = vpack.c.bf16 %v3643, %v3641
        %v3646 = vld [vmem:[%s1365] sm:$0xf]
        %v3647 = vld [vmem:[%s1365 + $0x4] sm:$0xf]
        %v3648 = vld [vmem:[%s1365 + $0x8] sm:$0xf]
        %v3649 = vld [vmem:[%s1365 + $0xc] sm:$0xf]
        %v3650 = vld [vmem:[%s1365 + $0x10] sm:$0xf]
        %v3651 = vld [vmem:[%s1365 + $0x14] sm:$0xf]
        %v3652 = vld [vmem:[%s1365 + $0x18] sm:$0xf]
        %v3653 = vld [vmem:[%s1365 + $0x1c] sm:$0xf]
        %v3654 = vld [vmem:[%s1365 + $0x20] sm:$0xf]
        %v3655 = vld [vmem:[%s1365 + $0x24] sm:$0xf]
        %v3656 = vld [vmem:[%s1365 + $0x28] sm:$0xf]
        %v3657 = vld [vmem:[%s1365 + $0x2c] sm:$0xf]
        %v3658 = vld [vmem:[%s1365 + $0x30] sm:$0xf]
        %v3659 = vld [vmem:[%s1365 + $0x34] sm:$0xf]
        %v3660 = vld [vmem:[%s1365 + $0x38] sm:$0xf]
        %v3661 = vld [vmem:[%s1365 + $0x3c] sm:$0xf]
        %v3662 = vld [vmem:[%s1365 + $0x40] sm:$0xf]
        %v3663 = vld [vmem:[%s1365 + $0x44] sm:$0xf]
        %v3664 = vld [vmem:[%s1365 + $0x48] sm:$0xf]
        %v3665 = vld [vmem:[%s1365 + $0x4c] sm:$0xf]
        %v3666 = vld [vmem:[%s1365 + $0x50] sm:$0xf]
        %v3667 = vld [vmem:[%s1365 + $0x54] sm:$0xf]
        %v3668 = vld [vmem:[%s1365 + $0x58] sm:$0xf]
        %v3669 = vld [vmem:[%s1365 + $0x5c] sm:$0xf]
        %v3670 = vld [vmem:[%s1365 + $0x60] sm:$0xf]
        %v3671 = vld [vmem:[%s1365 + $0x64] sm:$0xf]
        %v3672 = vld [vmem:[%s1365 + $0x68] sm:$0xf]
        %v3673 = vld [vmem:[%s1365 + $0x6c] sm:$0xf]
        %v3674 = vld [vmem:[%s1365 + $0x70] sm:$0xf]
        %v3675 = vld [vmem:[%s1365 + $0x74] sm:$0xf]
        %v3676 = vld [vmem:[%s1365 + $0x78] sm:$0xf]
        %v3677 = vld [vmem:[%s1365 + $0x7c] sm:$0xf]
        %v3678 = vld [vmem:[%s1374] sm:$0x1]
        %v3680 = vperm.slane %v3678, 0
        %v3714 = vunpack.c.l.b16 %v3646
        %v3715 = vunpack.c.l.b16 %v3647
        %v3716 = vunpack.c.l.b16 %v3648
        %v3717 = vunpack.c.l.b16 %v3649
        %v3718 = vunpack.c.l.b16 %v3650
        %v3719 = vunpack.c.l.b16 %v3651
        %v3720 = vunpack.c.l.b16 %v3652
        %v3721 = vunpack.c.l.b16 %v3653
        %v3722 = vunpack.c.l.b16 %v3654
        %v3723 = vunpack.c.l.b16 %v3655
        %v3724 = vunpack.c.l.b16 %v3656
        %v3725 = vunpack.c.l.b16 %v3657
        %v3726 = vunpack.c.l.b16 %v3658
        %v3727 = vunpack.c.l.b16 %v3659
        %v3728 = vunpack.c.l.b16 %v3660
        %v3729 = vunpack.c.l.b16 %v3661
        %v3730 = vunpack.c.l.b16 %v3662
        %v3731 = vunpack.c.l.b16 %v3663
        %v3732 = vunpack.c.l.b16 %v3664
        %v3733 = vunpack.c.l.b16 %v3665
        %v3734 = vunpack.c.l.b16 %v3666
        %v3735 = vunpack.c.l.b16 %v3667
        %v3736 = vunpack.c.l.b16 %v3668
        %v3737 = vunpack.c.l.b16 %v3669
        %v3738 = vunpack.c.l.b16 %v3670
        %v3739 = vunpack.c.l.b16 %v3671
        %v3740 = vunpack.c.l.b16 %v3672
        %v3741 = vunpack.c.l.b16 %v3673
        %v3742 = vunpack.c.l.b16 %v3674
        %v3743 = vunpack.c.l.b16 %v3675
        %v3744 = vunpack.c.l.b16 %v3676
        %v3745 = vunpack.c.l.b16 %v3677
        %v3746 = vpack.c.b16 %v3715, %v3714
        %v3747 = vpack.c.b16 %v3717, %v3716
        %v3748 = vpack.c.b16 %v3719, %v3718
        %v3749 = vpack.c.b16 %v3721, %v3720
        %v3750 = vpack.c.b16 %v3723, %v3722
        %v3751 = vpack.c.b16 %v3725, %v3724
        %v3752 = vpack.c.b16 %v3727, %v3726
        %v3753 = vpack.c.b16 %v3729, %v3728
        %v3754 = vpack.c.b16 %v3731, %v3730
        %v3755 = vpack.c.b16 %v3733, %v3732
        %v3756 = vpack.c.b16 %v3735, %v3734
        %v3757 = vpack.c.b16 %v3737, %v3736
        %v3758 = vpack.c.b16 %v3739, %v3738
        %v3759 = vpack.c.b16 %v3741, %v3740
        %v3760 = vpack.c.b16 %v3743, %v3742
        %v3761 = vpack.c.b16 %v3745, %v3744
        %3778 = vmatpush.bf16.msra.mxu0 %v3753
        %3779 = vmatpush.bf16.msra.mxu0 %v3752
        %3780 = vmatpush.bf16.msra.mxu0 %v3751
        %3781 = vmatpush.bf16.msra.mxu0 %v3750
        %3782 = vmatpush.bf16.msra.mxu0 %v3749
        %3783 = vmatpush.bf16.msra.mxu0 %v3748
        %3784 = vmatpush.bf16.msra.mxu0 %v3747
        %3785 = vmatpush.bf16.msra.mxu0 %v3746
        %3786 = vmatmul.bf16.gmra.mxu0 %v3644
        %v3787 = vpop.f32.mrf.mxu0
        %v3788 = vadd.f32 %v3680, %v3787
        %v3789 = vpop.f32.mrf.mxu0
        %v3790 = vadd.f32 %v3680, %v3789
        %3791 = vdwg.mxu0
        %3792 = vmatpush.bf16.msra.mxu0 %v3761
        %3793 = vmatpush.bf16.msra.mxu0 %v3760
        %3794 = vmatpush.bf16.msra.mxu0 %v3759
        %3795 = vmatpush.bf16.msra.mxu0 %v3758
        %3796 = vmatpush.bf16.msra.mxu0 %v3757
        %3797 = vmatpush.bf16.msra.mxu0 %v3756
        %3798 = vmatpush.bf16.msra.mxu0 %v3755
        %3799 = vmatpush.bf16.msra.mxu0 %v3754
        %3800 = vmatmul.bf16.gmra.mxu0 %v3645
        %v3801 = vpop.f32.mrf.mxu0
        %v3802 = vadd.f32 %v3788, %v3801
        %v3803 = vpop.f32.mrf.mxu0
        %v3804 = vadd.f32 %v3790, %v3803
        %3805 = vdwg.mxu0
        %v3806 = vadd.f32 %v3507, %v3802
        %v3807 = vadd.f32 %v3508, %v3804
        %v3808 = vld [vmem:[%s1419] sm:$0x1]
        %v3809 = vld [vmem:[%s1428] sm:$0x1]
        %3810 = vadd.xlane.f32.xlu0 %v3806
        %v3811 = vpop.xlane.xlu0 %3810
        %3812 = vadd.xlane.f32.xlu0 %v3807
        %v3813 = vpop.xlane.xlu0 %3812
        %v3814 = vmul.f32 %v3811, %v2520
        %v3815 = vmul.f32 %v3813, %v2520
        %v3816 = vsub.f32 %v3806, %v3814
        %v3817 = vsub.f32 %v3807, %v3815
        %v3818 = vmul.f32 %v3816, %v3816
        %v3819 = vmul.f32 %v3817, %v3817
        %3820 = vadd.xlane.f32.xlu0 %v3818
        %v3821 = vpop.xlane.xlu0 %3820
        %3822 = vadd.xlane.f32.xlu0 %v3819
        %v3823 = vpop.xlane.xlu0 %3822
        %v3824 = vmul.f32 %v3821, %v2520
        %v3825 = vmul.f32 %v3823, %v2520
        %v3826 = vadd.f32 %v3824, 1e-05
        %v3827 = vadd.f32 %v3825, 1e-05
        %v3828 = vrsqrt.pop %v3826
        %v3829 = vmul.f32 %v3828, %v3826
        %v3830 = vmul.f32 %v3829, %v3828
        %v3831 = vmul.f32 0.5, %v3830
        %v3832 = vsub.f32 1.5, %v3831
        %v3833 = vmul.f32 %v3828, %v3832
        %vm3834 = vweird.f32 %v3826
        %vm3835 = vweird.f32 %v3828
        %vm3836 = vmor %vm3834, %vm3835
        %v3837 = vsel %vm3836, %v3828, %v3833
        %v3838 = vrsqrt.pop %v3827
        %v3839 = vmul.f32 %v3838, %v3827
        %v3840 = vmul.f32 %v3839, %v3838
        %v3841 = vmul.f32 0.5, %v3840
        %v3842 = vsub.f32 1.5, %v3841
        %v3843 = vmul.f32 %v3838, %v3842
        %vm3844 = vweird.f32 %v3827
        %vm3845 = vweird.f32 %v3838
        %vm3846 = vmor %vm3844, %vm3845
        %v3847 = vsel %vm3846, %v3838, %v3843
        %v3848 = vmul.f32 %v3816, %v3837
        %v3849 = vmul.f32 %v3817, %v3847
        %v3851 = vperm.slane %v3808, 0
        %v3853 = vmul.f32 %v3848, %v3851
        %v3854 = vmul.f32 %v3849, %v3851
        %v3856 = vperm.slane %v3809, 0
        %v3858 = vadd.f32 %v3853, %v3856
        %v3859 = vadd.f32 %v3854, %v3856
        %3860 = vst [vmem:[#allocation2] sm:$0xff] %v3858
        %3861 = vst [vmem:[#allocation2 + $0x8] sm:$0xff] %v3859
        %p3862 = scmp.eq.s32.totalorder %s75, 1
        // Predicated region
        $region221: #{decoder_forward.1} parent=123 // pred_check
          %p3863 = pneg %p3862
        $region222: #{decoder_forward.1} parent=123 // pred_check_branch
          %3865 = sbr.rel (%p3863) target = $region224
        $region223: #{decoder_forward.1} parent=123 // pred_region
          %v3866 = vld [vmem:[%s24] sm:$0x1]
          %v3867 = vld [vmem:[#allocation38] sm:$0x1]
          %3868 = vadd.xlane.f32.xlu0 %v3858
          %v3869 = vpop.xlane.xlu0 %3868
          %3870 = vadd.xlane.f32.xlu0 %v3859
          %v3871 = vpop.xlane.xlu0 %3870
          %v3872 = vmul.f32 %v3869, %v2520
          %v3873 = vmul.f32 %v3871, %v2520
          %v3874 = vsub.f32 %v3858, %v3872
          %v3875 = vsub.f32 %v3859, %v3873
          %v3876 = vmul.f32 %v3874, %v3874
          %v3877 = vmul.f32 %v3875, %v3875
          %3878 = vadd.xlane.f32.xlu0 %v3876
          %v3879 = vpop.xlane.xlu0 %3878
          %3880 = vadd.xlane.f32.xlu0 %v3877
          %v3881 = vpop.xlane.xlu0 %3880
          %v3882 = vmul.f32 %v3879, %v2520
          %v3883 = vmul.f32 %v3881, %v2520
          %v3884 = vadd.f32 %v3882, 1e-05
          %v3885 = vadd.f32 %v3883, 1e-05
          %v3886 = vrsqrt.pop %v3884
          %v3887 = vmul.f32 %v3886, %v3884
          %v3888 = vmul.f32 %v3887, %v3886
          %v3889 = vmul.f32 0.5, %v3888
          %v3890 = vsub.f32 1.5, %v3889
          %v3891 = vmul.f32 %v3886, %v3890
          %vm3892 = vweird.f32 %v3884
          %vm3893 = vweird.f32 %v3886
          %vm3894 = vmor %vm3892, %vm3893
          %v3895 = vsel %vm3894, %v3886, %v3891
          %v3896 = vrsqrt.pop %v3885
          %v3897 = vmul.f32 %v3896, %v3885
          %v3898 = vmul.f32 %v3897, %v3896
          %v3899 = vmul.f32 0.5, %v3898
          %v3900 = vsub.f32 1.5, %v3899
          %v3901 = vmul.f32 %v3896, %v3900
          %vm3902 = vweird.f32 %v3885
          %vm3903 = vweird.f32 %v3896
          %vm3904 = vmor %vm3902, %vm3903
          %v3905 = vsel %vm3904, %v3896, %v3901
          %v3906 = vmul.f32 %v3874, %v3895
          %v3907 = vmul.f32 %v3875, %v3905
          %v3909 = vperm.slane %v3866, 0
          %v3911 = vmul.f32 %v3906, %v3909
          %v3912 = vmul.f32 %v3907, %v3909
          %v3914 = vperm.slane %v3867, 0
          %v3916 = vadd.f32 %v3911, %v3914
          %v3917 = vadd.f32 %v3912, %v3914
          %3918 = vst [vmem:[#allocation39] sm:$0xff] %v3916
          %3919 = vst [vmem:[#allocation39 + $0x8] sm:$0xff] %v3917
        $region224: #{decoder_forward.1} parent=123 // pred_fallthru
          _
        // Predicated region
        $region225: #{decoder_forward.1} parent=123 // pred_check
          %p3920 = pneg %p766
        $region226: #{decoder_forward.1} parent=123 // pred_check_branch
          %3922 = sbr.rel (%p3920) target = $region228
        $region227: #{decoder_forward.1} parent=123 // pred_region
          %s3923 = smul.u32 2, %s74
          %3925 = vsyncadd [#allocation5], 0
          %s3926 = smul.addr %s3923, 8
          %s3927 = scalar_lea.hbm %s26, %s3926
          %s3928 = sshll.u32 [#allocation39], 4
          %s3929 = int_to_ptr.vmem [resolvable:$true] %s3928
          %s3930 = sshll.u32 %s3927, 4
          %s3931 = int_to_ptr.hbm [resolvable:$true] %s3930
          %3936 = dma.vmem_to_hbm [thread:$0]  %s3929, 256, %s3931, [#allocation5], 128, 128, 8
        $region228: #{decoder_forward.1} parent=123 // pred_fallthru
          _
        // Predicated region
        $region229: #{decoder_forward.1} parent=123 // pred_check
          %p3937 = pneg %p766
        $region230: #{decoder_forward.1} parent=123 // pred_check_branch
          %3939 = sbr.rel (%p3937) target = $region232
        $region231: #{decoder_forward.1} parent=123 // pred_region
          %3941 = dma.done [#allocation5], 256
        $region232: #{decoder_forward.1} parent=123 // pred_fallthru
          _
      $region124: #{decoder_forward.1} parent=5 // pred_fallthru
        _
      %p3942 = scmp.le.s32.totalorder 2, %s65
      // Predicated region
      $region233: #{decoder_forward.1} parent=5 // pred_check
        %p3943 = pneg %p3942
      $region234: #{decoder_forward.1} parent=5 // pred_check_branch
        %3945 = sbr.rel (%p3943) target = $region236
      $region235: #{decoder_forward.1} parent=5 // pred_region
        %s3946 = ssub.s32 %s65, 2
      $region236: #{decoder_forward.1} parent=5 // pred_fallthru
        _
    $region6: #{decoder_forward.1} parent=1 // loop_footer
      %s69 = sadd.s32 1, %s65
    $region7: #{decoder_forward.1} parent=1 // loop_footer_branch
      %64 = sbr.rel target = $region3
    $region8: #{decoder_forward.1} parent=1 // loop_exit
      _
    %3947 = vsyncpa [#allocation4], 1
    %s3948 = scalar_lea.sflag [#allocation4], 1
    %3949 = vsyncpa %s3948, 1
    %3950 = vsyncpa [#allocation7], 1
    %3951 = vsyncpa [#allocation10], 1
    %s3952 = scalar_lea.sflag [#allocation10], 1
    %3953 = vsyncpa %s3952, 1
    %3954 = vsyncpa [#allocation13], 1
    %s3955 = scalar_lea.sflag [#allocation13], 1
    %3956 = vsyncpa %s3955, 1
    %3957 = vsyncpa [#allocation16], 1
    %s3958 = scalar_lea.sflag [#allocation16], 1
    %3959 = vsyncpa %s3958, 1
    %3960 = vsyncpa [#allocation19], 1
    %s3961 = scalar_lea.sflag [#allocation19], 1
    %3962 = vsyncpa %s3961, 1
    %3963 = vsyncpa [#allocation22], 1
    %s3964 = scalar_lea.sflag [#allocation22], 1
    %3965 = vsyncpa %s3964, 1
    %3966 = vsyncpa [#allocation25], 1
    %s3967 = scalar_lea.sflag [#allocation25], 1
    %3968 = vsyncpa %s3967, 1
    %3969 = vsyncpa [#allocation28], 1
    %s3970 = scalar_lea.sflag [#allocation28], 1
    %3971 = vsyncpa %s3970, 1
    %3972 = vsyncpa [#allocation31], 1
    %s3973 = scalar_lea.sflag [#allocation31], 1
    %3974 = vsyncpa %s3973, 1
    %3975 = vsyncpa [#allocation34], 1
    %s3976 = scalar_lea.sflag [#allocation34], 1
    %3977 = vsyncpa %s3976, 1
    %3978 = vsyncpa [#allocation37], 1
    %s3979 = scalar_lea.sflag [#allocation37], 1
    %3980 = vsyncpa %s3979, 1
    %3981 = vsyncpa [#allocation5], 1
    %s3982 = scalar_lea.sflag [#allocation5], 1
    %3983 = vsyncpa %s3982, 1

</llo_original>
